<compile_context>
chip_gen: v6e
topology: v6e:2x2x1
jax: 0.10.0
libtpu: 0.0.40
codegen_flags: <defaults>
</compile_context>

<pallas_src>
import functools

import jax
import jax.numpy as jnp
import numpy as np
from jax.experimental import pallas as pl
from jax.experimental.pallas import tpu as pltpu


# ---------------------------------------------------------------------------
# Pallas kernels
# ---------------------------------------------------------------------------
def _encoder_kernel(x_ref, *refs, n_layers):
    """refs = [w0, b0, w1, b1, ..., o_ref]. h = relu(...relu(x@w0+b0)...@wk+bk)."""
    h = x_ref[...]
    for i in range(n_layers):
        w = refs[2 * i][...]
        b = refs[2 * i + 1][...]
        h = jnp.maximum(
            jnp.dot(h, w, preferred_element_type=jnp.float32) + b, 0.0)
    refs[-1][...] = h.astype(refs[-1].dtype)


def _mid_kernel(h_ref, wl_ref, bl_ref, *refs, n_dec):
    """MaxPool over last axis (77) + fc_latent + decoder hidden Linear+ReLU stack.

    refs = [wd0, bd0, wd1, bd1, ..., z_ref, d_ref]
    """
    pooled = jnp.max(h_ref[...], axis=-1)                          # (N, H) XLU reduce
    z = jnp.dot(pooled, wl_ref[...],
                preferred_element_type=jnp.float32) + bl_ref[...]  # (N, latent)
    d = z
    for i in range(n_dec):
        w = refs[2 * i][...]
        b = refs[2 * i + 1][...]
        d = jnp.maximum(
            jnp.dot(d, w, preferred_element_type=jnp.float32) + b, 0.0)
    refs[-2][...] = z.astype(refs[-2].dtype)
    refs[-1][...] = d.astype(refs[-1].dtype)


def _dec_out_kernel(x_ref, w_ref, b_ref, o_ref):
    # x is f32 (M, K); cast to bf16 in-kernel (tiny, per-step, free) so the
    # matmul against the bf16-streamed weight is a native bf16 MXU matmul with
    # f32 accumulation.
    x = x_ref[...].astype(jnp.bfloat16)
    acc = jnp.dot(x, w_ref[...], preferred_element_type=jnp.float32)
    # tanh on the (M, tn) tile runs on the EUP slot -> free under the weight DMA.
    o_ref[...] = jnp.tanh(acc + b_ref[...]).astype(o_ref.dtype)


# ---------------------------------------------------------------------------
# Pallas wrappers
# ---------------------------------------------------------------------------
def encoder_stack(x2d, enc_layers):
    """relu MLP chain on (M, 768). All layers fused, fully VMEM resident."""
    # TODO(synk): for large batch (N*77*768*4 B per operand, double-buffered),
    # add an M-tiled grid (rows a multiple of 8) instead of grid=(1,); not
    # needed at batch=2 and it keeps the full-array-extent (8,128) exception.
    M = x2d.shape[0]
    H_out = enc_layers[-1][0].shape[1]
    flat = [x2d]
    in_specs = [pl.BlockSpec(x2d.shape, lambda i: (0, 0))]
    for (w, b) in enc_layers:
        flat += [w, b]
        in_specs += [pl.BlockSpec(w.shape, lambda i: (0, 0)),
                     pl.BlockSpec(b.shape, lambda i: (0, 0))]
    return pl.pallas_call(
        functools.partial(_encoder_kernel, n_layers=len(enc_layers)),
        out_shape=jax.ShapeDtypeStruct((M, H_out), x2d.dtype),
        grid=(1,),
        in_specs=in_specs,
        out_specs=pl.BlockSpec((M, H_out), lambda i: (0, 0)),
    )(*flat)


def pool_latent_dec(h3, fc_latent, dec_layers):
    """MaxPool1d(77) + fc_latent + decoder hidden stack, one fused pallas_call."""
    N, H, _T = h3.shape
    latent = fc_latent[0].shape[1]
    D_out = dec_layers[-1][0].shape[1]
    flat = [h3, fc_latent[0], fc_latent[1]]
    in_specs = [pl.BlockSpec(h3.shape, lambda i: (0, 0, 0)),
                pl.BlockSpec(fc_latent[0].shape, lambda i: (0, 0)),
                pl.BlockSpec(fc_latent[1].shape, lambda i: (0, 0))]
    for (w, b) in dec_layers:
        flat += [w, b]
        in_specs += [pl.BlockSpec(w.shape, lambda i: (0, 0)),
                     pl.BlockSpec(b.shape, lambda i: (0, 0))]
    z, d = pl.pallas_call(
        functools.partial(_mid_kernel, n_dec=len(dec_layers)),
        out_shape=(jax.ShapeDtypeStruct((N, latent), h3.dtype),
                   jax.ShapeDtypeStruct((N, D_out), h3.dtype)),
        grid=(1,),
        in_specs=in_specs,
        out_specs=(pl.BlockSpec((N, latent), lambda i: (0, 0)),
                   pl.BlockSpec((N, D_out), lambda i: (0, 0))),
    )(*flat)
    return z, d


def _default_max_tn():
    """Per-generation output-tile cap for dec_out (see header comment)."""
    try:
        kind = jax.devices()[0].device_kind.lower()
    except Exception:
        return 4224
    # Single-TensorCore chips (v5e / v6e): fewer, bigger tiles (7 grid steps).
    single_tc = ("lite" in kind) or ("v5e" in kind) or ("v6e" in kind)
    # Multi-TC chips (v7x / v5p / v4 megacore): 14 steps -> even split per core.
    return 8448 if single_tc else 4224


def dec_out_linear(d, w_bf16, b, max_tn=None):
    """y = tanh(d @ w + b), tiled over the (large) output dim only.

    d: (M, K) f32, w_bf16: (K, Nout) bfloat16, b: (1, Nout) f32.  No padding:
    K is 8-aligned and Nout is 128-aligned for this model (256 x 59136).  The
    bf16 weight is streamed once from HBM in tn-wide tiles (largest
    128-multiple divisor of Nout that is <= max_tn), double-buffered, with
    lane-dense unmasked stores.
    """
    M, K = d.shape
    Kw, Nout = w_bf16.shape
    assert Kw == K
    assert K % 8 == 0 and Nout % 128 == 0, "dec_out dims must be TPU-aligned"
    if max_tn is None:
        max_tn = _default_max_tn()
    tn = max(t for t in range(128, max_tn + 1, 128) if Nout % t == 0)
    # TODO(synk): if an xprof trace shows exposed DMA at step boundaries with the
    # larger tiles, add pipeline_mode=pl.Buffered(3) on the weight BlockSpec.
    return pl.pallas_call(
        _dec_out_kernel,
        out_shape=jax.ShapeDtypeStruct((M, Nout), d.dtype),
        grid_spec=pltpu.PrefetchScalarGridSpec(
            num_scalar_prefetch=0,
            grid=(Nout // tn,),
            in_specs=[pl.BlockSpec((M, K), lambda j: (0, 0)),
                      pl.BlockSpec((K, tn), lambda j: (0, j)),
                      pl.BlockSpec((1, tn), lambda j: (0, j))],
            out_specs=pl.BlockSpec((M, tn), lambda j: (0, j)),
        ),
        compiler_params=pltpu.CompilerParams(dimension_semantics=("parallel",)),
    )(d, w_bf16, b)


# ---------------------------------------------------------------------------
# Parameter init (deterministic; matches PyTorch Linear init scheme)
# ---------------------------------------------------------------------------
def init_linear(key, in_dim, out_dim):
    k1, k2 = jax.random.split(key)
    bound = 1.0 / float(np.sqrt(in_dim))
    w = jax.random.uniform(k1, (in_dim, out_dim), jnp.float32, -bound, bound)
    b = jax.random.uniform(k2, (1, out_dim), jnp.float32, -bound, bound)
    return w, b


def init_autoencoder(key, input_dim, latent_dim, enc_hidden, dec_hidden):
    params = {"enc_layers": [], "dec_layers": []}
    dims_in = input_dim
    for h in enc_hidden:
        key, sub = jax.random.split(key)
        params["enc_layers"].append(init_linear(sub, dims_in, h))
        dims_in = h
    key, sub = jax.random.split(key)
    params["fc_latent"] = init_linear(sub, enc_hidden[-1], latent_dim)
    dims_in = latent_dim
    for h in dec_hidden:
        key, sub = jax.random.split(key)
        params["dec_layers"].append(init_linear(sub, dims_in, h))
        dims_in = h
    key, sub = jax.random.split(key)
    w_out, b_out = init_linear(sub, dec_hidden[-1], 77 * input_dim)
    # The dec_out weight is the only HBM-bound tensor (~58 MiB in f32); store it
    # in bfloat16 once here (outside jit). Bias stays f32 (added to f32 acc).
    params["dec_out"] = (w_out.astype(jnp.bfloat16), b_out)
    return params


# ---------------------------------------------------------------------------
# AutoEncoder forward (Encoder -> Decoder), dropout = identity (eval), noise=0
# ---------------------------------------------------------------------------
def autoencoder_forward(params, x):
    N = x.shape[0]
    assert x.shape == (N, 77, 768)

    # ---- Encoder ----
    x2d = x.reshape(N * 77, 768)                       # free metadata reshape
    h = encoder_stack(x2d, params["enc_layers"])       # (N*77, H_last)
    H_last = params["enc_layers"][-1][0].shape[1]
    # NOTE: PyTorch does a raw .view (row-major reshape), NOT a transpose.
    h3 = h.reshape(N, H_last, 77)
    # MaxPool1d(77) + fc_latent + decoder hidden layers, one fused kernel.
    z, d = pool_latent_dec(h3, params["fc_latent"], params["dec_layers"])

    # ---- Decoder output layer (the only HBM-bound layer, bf16 weight stream) --
    recon_flat = dec_out_linear(d, *params["dec_out"])  # (N, 77*768), tanh
    return recon_flat.reshape(N, 77, 768), z


# ---------------------------------------------------------------------------
# Pure-JAX reference (for correctness check; mirrors the bf16 dec_out storage)
# ---------------------------------------------------------------------------
def reference_forward(params, x):
    N = x.shape[0]
    hp = jax.lax.Precision.HIGHEST
    h = x.reshape(-1, 768)
    for (w, b) in params["enc_layers"]:
        h = jnp.maximum(jnp.dot(h, w, precision=hp) + b, 0.0)
    H_last = params["enc_layers"][-1][0].shape[1]
    h = h.reshape(N, H_last, 77)
    h = jnp.max(h, axis=-1)
    w, b = params["fc_latent"]
    z = jnp.dot(h, w, precision=hp) + b
    d = z
    for (w, b) in params["dec_layers"]:
        d = jnp.maximum(jnp.dot(d, w, precision=hp) + b, 0.0)
    w, b = params["dec_out"]
    # Mirror the kernel's bf16 operand quantization, accumulate in f32.
    d_q = d.astype(jnp.bfloat16).astype(jnp.float32)
    w_q = w.astype(jnp.float32)
    d = jnp.tanh(jnp.dot(d_q, w_q, precision=hp) + b)
    return d.reshape(N, 77, 768), z


if __name__ == "__main__":
    # Module config (input_dim must be 768 per the forward() asserts / views).
    input_dim = 768
    latent_dim = 32
    enc_hidden = [256, 128]
    dec_hidden = [128, 256]
    batch = 2

    key = jax.random.PRNGKey(0)
    key, pkey, xkey = jax.random.split(key, 3)
    params = init_autoencoder(pkey, input_dim, latent_dim, enc_hidden, dec_hidden)
    x = jax.random.normal(xkey, (batch, 77, input_dim), jnp.float32)

    recon, z = jax.jit(autoencoder_forward)(params, x)
    jax.block_until_ready(recon)
    jax.block_until_ready(z)

    assert recon.shape == (batch, 77, 768)
    assert z.shape == (batch, latent_dim)

    ref_recon, ref_z = reference_forward(params, x)
    np.testing.assert_allclose(np.asarray(recon), np.asarray(ref_recon),
                               rtol=1e-2, atol=1e-2)
    np.testing.assert_allclose(np.asarray(z), np.asarray(ref_z),
                               rtol=1e-2, atol=1e-2)

    # TODO(synk): Dropout / gaussian-noise injection are training-only stochastic ops;
    # they are identity here (eval semantics). Unused Encoder.reduction_layers,
    # SelfAttentionPooling and the optional codebook are not on the forward path.
    print("KERNEL_OK")
</pallas_src>

<mosaic_0001>
module attributes {stable_mosaic.version = 11 : i64} {
  func.func @_encoder_kernel(%arg0: i32, %arg1: memref<154x768xf32, #tpu.memory_space<vmem>>, %arg2: memref<768x256xf32, #tpu.memory_space<vmem>>, %arg3: memref<1x256xf32, #tpu.memory_space<vmem>>, %arg4: memref<256x128xf32, #tpu.memory_space<vmem>>, %arg5: memref<1x128xf32, #tpu.memory_space<vmem>>, %arg6: memref<154x128xf32, #tpu.memory_space<vmem>>) attributes {dimension_semantics = [#tpu.dimension_semantics<arbitrary>], iteration_bounds = array<i64: 1>, scalar_prefetch = 0 : i64, scratch_operands = 0 : i64, tpu.core_type = #tpu.core_type<tc>, window_params = [{pipeline_mode = #tpu.pipeline_mode<synchronous>, transform_indices = @transform_0, window_bounds = array<i64: 154, 768>}, {pipeline_mode = #tpu.pipeline_mode<synchronous>, transform_indices = @transform_1, window_bounds = array<i64: 768, 256>}, {pipeline_mode = #tpu.pipeline_mode<synchronous>, transform_indices = @transform_2, window_bounds = array<i64: 1, 256>}, {pipeline_mode = #tpu.pipeline_mode<synchronous>, transform_indices = @transform_3, window_bounds = array<i64: 256, 128>}, {pipeline_mode = #tpu.pipeline_mode<synchronous>, transform_indices = @transform_4, window_bounds = array<i64: 1, 128>}, {pipeline_mode = #tpu.pipeline_mode<synchronous>, transform_indices = @transform_5, window_bounds = array<i64: 154, 128>}]} {
    %c0 = arith.constant 0 : index
    %c0_0 = arith.constant 0 : index
    %0 = vector.load %arg1[%c0, %c0_0] : memref<154x768xf32, #tpu.memory_space<vmem>>, vector<154x768xf32>
    %c0_1 = arith.constant 0 : index
    %c0_2 = arith.constant 0 : index
    %1 = vector.load %arg2[%c0_1, %c0_2] : memref<768x256xf32, #tpu.memory_space<vmem>>, vector<768x256xf32>
    %c0_3 = arith.constant 0 : index
    %c0_4 = arith.constant 0 : index
    %2 = vector.load %arg3[%c0_3, %c0_4] : memref<1x256xf32, #tpu.memory_space<vmem>>, vector<1x256xf32>
    %cst = arith.constant dense<0.000000e+00> : vector<154x256xf32>
    %3 = tpu.matmul %0, %1, %cst {dimension_numbers = #tpu.dot_dimension_numbers<[1], [0], [0], [1], [0, 0, 1, 1], [], []>} : vector<154x768xf32>, vector<768x256xf32>, vector<154x256xf32> -> vector<154x256xf32>
    %4 = vector.broadcast %2 : vector<1x256xf32> to vector<154x256xf32>
    %5 = arith.addf %3, %4 : vector<154x256xf32>
    %cst_5 = arith.constant 0.000000e+00 : f32
    %6 = vector.broadcast %cst_5 : f32 to vector<154x256xf32>
    %7 = arith.maximumf %5, %6 : vector<154x256xf32>
    %c0_6 = arith.constant 0 : index
    %c0_7 = arith.constant 0 : index
    %8 = vector.load %arg4[%c0_6, %c0_7] : memref<256x128xf32, #tpu.memory_space<vmem>>, vector<256x128xf32>
    %c0_8 = arith.constant 0 : index
    %c0_9 = arith.constant 0 : index
    %9 = vector.load %arg5[%c0_8, %c0_9] : memref<1x128xf32, #tpu.memory_space<vmem>>, vector<1x128xf32>
    %cst_10 = arith.constant dense<0.000000e+00> : vector<154x128xf32>
    %10 = tpu.matmul %7, %8, %cst_10 {dimension_numbers = #tpu.dot_dimension_numbers<[1], [0], [0], [1], [0, 0, 1, 1], [], []>} : vector<154x256xf32>, vector<256x128xf32>, vector<154x128xf32> -> vector<154x128xf32>
    %11 = vector.broadcast %9 : vector<1x128xf32> to vector<154x128xf32>
    %12 = arith.addf %10, %11 : vector<154x128xf32>
    %cst_11 = arith.constant 0.000000e+00 : f32
    %13 = vector.broadcast %cst_11 : f32 to vector<154x128xf32>
    %14 = arith.maximumf %12, %13 : vector<154x128xf32>
    %c0_12 = arith.constant 0 : index
    %c0_13 = arith.constant 0 : index
    %15 = vector.load %arg6[%c0_12, %c0_13] : memref<154x128xf32, #tpu.memory_space<vmem>>, vector<154x128xf32>
    tpu.vector_store %arg6[%c0_12, %c0_13], %14 {strides = array<i32>} : memref<154x128xf32, #tpu.memory_space<vmem>>, vector<154x128xf32>,
    return
  }
  func.func @transform_0(%arg0: i32) -> (i32, i32) {
    %c0_i32 = arith.constant 0 : i32
    %c0_i32_0 = arith.constant 0 : i32
    %c0_i32_1 = arith.constant 0 : i32
    return %c0_i32, %c0_i32_0 : i32, i32
  }
  func.func @transform_1(%arg0: i32) -> (i32, i32) {
    %c0_i32 = arith.constant 0 : i32
    %c0_i32_0 = arith.constant 0 : i32
    %c0_i32_1 = arith.constant 0 : i32
    return %c0_i32, %c0_i32_0 : i32, i32
  }
  func.func @transform_2(%arg0: i32) -> (i32, i32) {
    %c0_i32 = arith.constant 0 : i32
    %c0_i32_0 = arith.constant 0 : i32
    %c0_i32_1 = arith.constant 0 : i32
    return %c0_i32, %c0_i32_0 : i32, i32
  }
  func.func @transform_3(%arg0: i32) -> (i32, i32) {
    %c0_i32 = arith.constant 0 : i32
    %c0_i32_0 = arith.constant 0 : i32
    %c0_i32_1 = arith.constant 0 : i32
    return %c0_i32, %c0_i32_0 : i32, i32
  }
  func.func @transform_4(%arg0: i32) -> (i32, i32) {
    %c0_i32 = arith.constant 0 : i32
    %c0_i32_0 = arith.constant 0 : i32
    %c0_i32_1 = arith.constant 0 : i32
    return %c0_i32, %c0_i32_0 : i32, i32
  }
  func.func @transform_5(%arg0: i32) -> (i32, i32) {
    %c0_i32 = arith.constant 0 : i32
    %c0_i32_0 = arith.constant 0 : i32
    %c0_i32_1 = arith.constant 0 : i32
    return %c0_i32, %c0_i32_0 : i32, i32
  }
}

module attributes {stable_mosaic.version = 11 : i64} {
  func.func @_mid_kernel(%arg0: i32, %arg1: memref<2x128x77xf32, #tpu.memory_space<vmem>>, %arg2: memref<128x32xf32, #tpu.memory_space<vmem>>, %arg3: memref<1x32xf32, #tpu.memory_space<vmem>>, %arg4: memref<32x128xf32, #tpu.memory_space<vmem>>, %arg5: memref<1x128xf32, #tpu.memory_space<vmem>>, %arg6: memref<128x256xf32, #tpu.memory_space<vmem>>, %arg7: memref<1x256xf32, #tpu.memory_space<vmem>>, %arg8: memref<2x32xf32, #tpu.memory_space<vmem>>, %arg9: memref<2x256xf32, #tpu.memory_space<vmem>>) attributes {dimension_semantics = [#tpu.dimension_semantics<arbitrary>], iteration_bounds = array<i64: 1>, scalar_prefetch = 0 : i64, scratch_operands = 0 : i64, tpu.core_type = #tpu.core_type<tc>, window_params = [{pipeline_mode = #tpu.pipeline_mode<synchronous>, transform_indices = @transform_0, window_bounds = array<i64: 2, 128, 77>}, {pipeline_mode = #tpu.pipeline_mode<synchronous>, transform_indices = @transform_1, window_bounds = array<i64: 128, 32>}, {pipeline_mode = #tpu.pipeline_mode<synchronous>, transform_indices = @transform_2, window_bounds = array<i64: 1, 32>}, {pipeline_mode = #tpu.pipeline_mode<synchronous>, transform_indices = @transform_3, window_bounds = array<i64: 32, 128>}, {pipeline_mode = #tpu.pipeline_mode<synchronous>, transform_indices = @transform_4, window_bounds = array<i64: 1, 128>}, {pipeline_mode = #tpu.pipeline_mode<synchronous>, transform_indices = @transform_5, window_bounds = array<i64: 128, 256>}, {pipeline_mode = #tpu.pipeline_mode<synchronous>, transform_indices = @transform_6, window_bounds = array<i64: 1, 256>}, {pipeline_mode = #tpu.pipeline_mode<synchronous>, transform_indices = @transform_7, window_bounds = array<i64: 2, 32>}, {pipeline_mode = #tpu.pipeline_mode<synchronous>, transform_indices = @transform_8, window_bounds = array<i64: 2, 256>}]} {
    %c0 = arith.constant 0 : index
    %c0_0 = arith.constant 0 : index
    %c0_1 = arith.constant 0 : index
    %0 = vector.load %arg1[%c0, %c0_0, %c0_1] : memref<2x128x77xf32, #tpu.memory_space<vmem>>, vector<2x128x77xf32>
    %cst = arith.constant dense<0xFF800000> : vector<2x128xf32>
    %1 = vector.multi_reduction <maximumf>, %0, %cst [2] : vector<2x128x77xf32> to vector<2x128xf32>
    %c0_2 = arith.constant 0 : index
    %c0_3 = arith.constant 0 : index
    %2 = vector.load %arg2[%c0_2, %c0_3] : memref<128x32xf32, #tpu.memory_space<vmem>>, vector<128x32xf32>
    %cst_4 = arith.constant dense<0.000000e+00> : vector<2x32xf32>
    %3 = tpu.matmul %1, %2, %cst_4 {dimension_numbers = #tpu.dot_dimension_numbers<[1], [0], [0], [1], [0, 0, 1, 1], [], []>} : vector<2x128xf32>, vector<128x32xf32>, vector<2x32xf32> -> vector<2x32xf32>
    %c0_5 = arith.constant 0 : index
    %c0_6 = arith.constant 0 : index
    %4 = vector.load %arg3[%c0_5, %c0_6] : memref<1x32xf32, #tpu.memory_space<vmem>>, vector<1x32xf32>
    %5 = vector.broadcast %4 : vector<1x32xf32> to vector<2x32xf32>
    %6 = arith.addf %3, %5 : vector<2x32xf32>
    %c0_7 = arith.constant 0 : index
    %c0_8 = arith.constant 0 : index
    %7 = vector.load %arg4[%c0_7, %c0_8] : memref<32x128xf32, #tpu.memory_space<vmem>>, vector<32x128xf32>
    %c0_9 = arith.constant 0 : index
    %c0_10 = arith.constant 0 : index
    %8 = vector.load %arg5[%c0_9, %c0_10] : memref<1x128xf32, #tpu.memory_space<vmem>>, vector<1x128xf32>
    %cst_11 = arith.constant dense<0.000000e+00> : vector<2x128xf32>
    %9 = tpu.matmul %6, %7, %cst_11 {dimension_numbers = #tpu.dot_dimension_numbers<[1], [0], [0], [1], [0, 0, 1, 1], [], []>} : vector<2x32xf32>, vector<32x128xf32>, vector<2x128xf32> -> vector<2x128xf32>
    %10 = vector.broadcast %8 : vector<1x128xf32> to vector<2x128xf32>
    %11 = arith.addf %9, %10 : vector<2x128xf32>
    %cst_12 = arith.constant 0.000000e+00 : f32
    %12 = vector.broadcast %cst_12 : f32 to vector<2x128xf32>
    %13 = arith.maximumf %11, %12 : vector<2x128xf32>
    %c0_13 = arith.constant 0 : index
    %c0_14 = arith.constant 0 : index
    %14 = vector.load %arg6[%c0_13, %c0_14] : memref<128x256xf32, #tpu.memory_space<vmem>>, vector<128x256xf32>
    %c0_15 = arith.constant 0 : index
    %c0_16 = arith.constant 0 : index
    %15 = vector.load %arg7[%c0_15, %c0_16] : memref<1x256xf32, #tpu.memory_space<vmem>>, vector<1x256xf32>
    %cst_17 = arith.constant dense<0.000000e+00> : vector<2x256xf32>
    %16 = tpu.matmul %13, %14, %cst_17 {dimension_numbers = #tpu.dot_dimension_numbers<[1], [0], [0], [1], [0, 0, 1, 1], [], []>} : vector<2x128xf32>, vector<128x256xf32>, vector<2x256xf32> -> vector<2x256xf32>
    %17 = vector.broadcast %15 : vector<1x256xf32> to vector<2x256xf32>
    %18 = arith.addf %16, %17 : vector<2x256xf32>
    %cst_18 = arith.constant 0.000000e+00 : f32
    %19 = vector.broadcast %cst_18 : f32 to vector<2x256xf32>
    %20 = arith.maximumf %18, %19 : vector<2x256xf32>
    %c0_19 = arith.constant 0 : index
    %c0_20 = arith.constant 0 : index
    %21 = vector.load %arg8[%c0_19, %c0_20] : memref<2x32xf32, #tpu.memory_space<vmem>>, vector<2x32xf32>
    tpu.vector_store %arg8[%c0_19, %c0_20], %6 {strides = array<i32>} : memref<2x32xf32, #tpu.memory_space<vmem>>, vector<2x32xf32>,
    %c0_21 = arith.constant 0 : index
    %c0_22 = arith.constant 0 : index
    %22 = vector.load %arg9[%c0_21, %c0_22] : memref<2x256xf32, #tpu.memory_space<vmem>>, vector<2x256xf32>
    tpu.vector_store %arg9[%c0_21, %c0_22], %20 {strides = array<i32>} : memref<2x256xf32, #tpu.memory_space<vmem>>, vector<2x256xf32>,
    return
  }
  func.func @transform_0(%arg0: i32) -> (i32, i32, i32) {
    %c0_i32 = arith.constant 0 : i32
    %c0_i32_0 = arith.constant 0 : i32
    %c0_i32_1 = arith.constant 0 : i32
    %c0_i32_2 = arith.constant 0 : i32
    return %c0_i32, %c0_i32_0, %c0_i32_1 : i32, i32, i32
  }
  func.func @transform_1(%arg0: i32) -> (i32, i32) {
    %c0_i32 = arith.constant 0 : i32
    %c0_i32_0 = arith.constant 0 : i32
    %c0_i32_1 = arith.constant 0 : i32
    return %c0_i32, %c0_i32_0 : i32, i32
  }
  func.func @transform_2(%arg0: i32) -> (i32, i32) {
    %c0_i32 = arith.constant 0 : i32
    %c0_i32_0 = arith.constant 0 : i32
    %c0_i32_1 = arith.constant 0 : i32
    return %c0_i32, %c0_i32_0 : i32, i32
  }
  func.func @transform_3(%arg0: i32) -> (i32, i32) {
    %c0_i32 = arith.constant 0 : i32
    %c0_i32_0 = arith.constant 0 : i32
    %c0_i32_1 = arith.constant 0 : i32
    return %c0_i32, %c0_i32_0 : i32, i32
  }
  func.func @transform_4(%arg0: i32) -> (i32, i32) {
    %c0_i32 = arith.constant 0 : i32
    %c0_i32_0 = arith.constant 0 : i32
    %c0_i32_1 = arith.constant 0 : i32
    return %c0_i32, %c0_i32_0 : i32, i32
  }
  func.func @transform_5(%arg0: i32) -> (i32, i32) {
    %c0_i32 = arith.constant 0 : i32
    %c0_i32_0 = arith.constant 0 : i32
    %c0_i32_1 = arith.constant 0 : i32
    return %c0_i32, %c0_i32_0 : i32, i32
  }
  func.func @transform_6(%arg0: i32) -> (i32, i32) {
    %c0_i32 = arith.constant 0 : i32
    %c0_i32_0 = arith.constant 0 : i32
    %c0_i32_1 = arith.constant 0 : i32
    return %c0_i32, %c0_i32_0 : i32, i32
  }
  func.func @transform_7(%arg0: i32) -> (i32, i32) {
    %c0_i32 = arith.constant 0 : i32
    %c0_i32_0 = arith.constant 0 : i32
    %c0_i32_1 = arith.constant 0 : i32
    return %c0_i32, %c0_i32_0 : i32, i32
  }
  func.func @transform_8(%arg0: i32) -> (i32, i32) {
    %c0_i32 = arith.constant 0 : i32
    %c0_i32_0 = arith.constant 0 : i32
    %c0_i32_1 = arith.constant 0 : i32
    return %c0_i32, %c0_i32_0 : i32, i32
  }
}

module attributes {stable_mosaic.version = 11 : i64} {
  func.func @_dec_out_kernel(%arg0: i32, %arg1: memref<2x256xf32, #tpu.memory_space<vmem>>, %arg2: memref<256x4224xbf16, #tpu.memory_space<vmem>>, %arg3: memref<1x4224xf32, #tpu.memory_space<vmem>>, %arg4: memref<2x4224xf32, #tpu.memory_space<vmem>>) attributes {dimension_semantics = [#tpu.dimension_semantics<parallel>], iteration_bounds = array<i64: 14>, scalar_prefetch = 0 : i64, scratch_operands = 0 : i64, tpu.core_type = #tpu.core_type<tc>, window_params = [{pipeline_mode = #tpu.pipeline_mode<synchronous>, transform_indices = @transform_0, window_bounds = array<i64: 2, 256>}, {transform_indices = @transform_1, window_bounds = array<i64: 256, 4224>}, {transform_indices = @transform_2, window_bounds = array<i64: 1, 4224>}, {transform_indices = @transform_3, window_bounds = array<i64: 2, 4224>}]} {
    %c0 = arith.constant 0 : index
    %c0_0 = arith.constant 0 : index
    %0 = vector.load %arg1[%c0, %c0_0] : memref<2x256xf32, #tpu.memory_space<vmem>>, vector<2x256xf32>
    %1 = arith.truncf %0 : vector<2x256xf32> to vector<2x256xbf16>
    %c0_1 = arith.constant 0 : index
    %c0_2 = arith.constant 0 : index
    %2 = vector.load %arg2[%c0_1, %c0_2] : memref<256x4224xbf16, #tpu.memory_space<vmem>>, vector<256x4224xbf16>
    %cst = arith.constant dense<0.000000e+00> : vector<2x4224xf32>
    %3 = tpu.matmul %1, %2, %cst {dimension_numbers = #tpu.dot_dimension_numbers<[1], [0], [0], [1], [0, 0, 1, 1], [], []>} : vector<2x256xbf16>, vector<256x4224xbf16>, vector<2x4224xf32> -> vector<2x4224xf32>
    %c0_3 = arith.constant 0 : index
    %c0_4 = arith.constant 0 : index
    %4 = vector.load %arg3[%c0_3, %c0_4] : memref<1x4224xf32, #tpu.memory_space<vmem>>, vector<1x4224xf32>
    %5 = vector.broadcast %4 : vector<1x4224xf32> to vector<2x4224xf32>
    %6 = arith.addf %3, %5 : vector<2x4224xf32>
    %7 = math.tanh %6 : vector<2x4224xf32>
    %c0_5 = arith.constant 0 : index
    %c0_6 = arith.constant 0 : index
    %8 = vector.load %arg4[%c0_5, %c0_6] : memref<2x4224xf32, #tpu.memory_space<vmem>>, vector<2x4224xf32>
    tpu.vector_store %arg4[%c0_5, %c0_6], %7 {strides = array<i32>} : memref<2x4224xf32, #tpu.memory_space<vmem>>, vector<2x4224xf32>,
    return
  }
  func.func @transform_0(%arg0: i32) -> (i32, i32) {
    %c0_i32 = arith.constant 0 : i32
    %c0_i32_0 = arith.constant 0 : i32
    %c0_i32_1 = arith.constant 0 : i32
    return %c0_i32, %c0_i32_0 : i32, i32
  }
  func.func @transform_1(%arg0: i32) -> (i32, i32) {
    %c0_i32 = arith.constant 0 : i32
    %c0_i32_0 = arith.constant 0 : i32
    return %c0_i32, %arg0 : i32, i32
  }
  func.func @transform_2(%arg0: i32) -> (i32, i32) {
    %c0_i32 = arith.constant 0 : i32
    %c0_i32_0 = arith.constant 0 : i32
    return %c0_i32, %arg0 : i32, i32
  }
  func.func @transform_3(%arg0: i32) -> (i32, i32) {
    %c0_i32 = arith.constant 0 : i32
    %c0_i32_0 = arith.constant 0 : i32
    return %c0_i32, %arg0 : i32, i32
  }
}

</mosaic_0001>

<llo_original>
// kernel: autoencoder_forward.4
$region0: #{autoencoder_forward.4}
  #allocation0 [shape = 'u32[]', space=smem, size = 0x4, offset = 0x4, fixed_abs, tag = 'smem constant byte address 0x4 - core index']
  #allocation1 [shape = 'u32[144,128]{1,0:T(1,128)}', space=vmem, size = 0x12000, scoped, tag = 'internal scratch']
  %s0 = inlined_call_operand.vmem [shape: f32[2,128,77], index: 0, kind: input, shape index: {}]
  %s1 = inlined_call_operand.vmem [shape: f32[128,32], index: 1, kind: input, shape index: {}]
  %s2 = inlined_call_operand.hbm [shape: f32[1,32], index: 2, kind: input, shape index: {}]
  %s3 = inlined_call_operand.hbm [shape: f32[32,128], index: 3, kind: input, shape index: {}]
  %s4 = inlined_call_operand.hbm [shape: f32[1,128], index: 4, kind: input, shape index: {}]
  %s5 = inlined_call_operand.hbm [shape: f32[128,256], index: 5, kind: input, shape index: {}]
  %s6 = inlined_call_operand.hbm [shape: f32[1,256], index: 6, kind: input, shape index: {}]
  %s7 = inlined_call_operand.hbm [shape: f32[2,32], index: 7, kind: output, shape index: {0}]
  %s8 = inlined_call_operand.vmem [shape: f32[2,256], index: 8, kind: output, shape index: {1}]
  %9 = xla_tuple %s7, %s8
  %s10 = sld [smem:[#allocation0]]
  $region66: #{autoencoder_forward.4} parent=0
    _
  %s12 = ssub.s32 1, %s10
  %s13 = scalar_select 0, %s12, %s10
  $region1: #{autoencoder_forward.4} parent=0
    #allocation2 [shape = 'u8[512]{0}', space=vmem, size = 0x400, scoped, tag = 'input window, operand 2, single buffered']
    #allocation3 [shape = 's32[1]{0}', space=sflag, size = 0x4, scoped, tag = 'scoped memory for autoencoder_forward.4']
    #allocation4 [shape = 's32[1]{0}', space=sflag, size = 0x4, scoped, tag = 'scoped memory for autoencoder_forward.4']
    #allocation5 [shape = 'u8[16384]{0}', space=vmem, size = 0x4000, scoped, tag = 'input window, operand 3, single buffered']
    #allocation6 [shape = 's32[1]{0}', space=sflag, size = 0x4, scoped, tag = 'scoped memory for autoencoder_forward.4']
    #allocation7 [shape = 'u8[512]{0}', space=vmem, size = 0x400, scoped, tag = 'input window, operand 4, single buffered']
    #allocation8 [shape = 'u8[131072]{0}', space=vmem, size = 0x20000, scoped, tag = 'input window, operand 5, single buffered']
    #allocation9 [shape = 's32[1]{0}', space=sflag, size = 0x4, scoped, tag = 'scoped memory for autoencoder_forward.4']
    #allocation10 [shape = 'u8[1024]{0}', space=vmem, size = 0x400, scoped, tag = 'input window, operand 6, single buffered']
    #allocation11 [shape = 'u8[1024]{0}', space=vmem, size = 0x400, scoped, tag = 'output window, operand 0, single buffered']
    %14 = vsyncpa [#allocation3], 0
    %15 = vsyncpa [#allocation6], 0
    %16 = vsyncpa [#allocation9], 0
    %17 = vsyncpa [#allocation4], 0
    // Predicated region
    $region2: #{autoencoder_forward.4} parent=1 // pred_check
      _
    $region3: #{autoencoder_forward.4} parent=1 // pred_check_branch
      %19 = sbr.rel (0) target = $region5
    $region4: #{autoencoder_forward.4} parent=1 // pred_region
      _
    $region5: #{autoencoder_forward.4} parent=1 // pred_fallthru
      _
    // Predicated region
    $region6: #{autoencoder_forward.4} parent=1 // pred_check
      _
    $region7: #{autoencoder_forward.4} parent=1 // pred_check_branch
      %21 = sbr.rel (0) target = $region9
    $region8: #{autoencoder_forward.4} parent=1 // pred_region
      _
    $region9: #{autoencoder_forward.4} parent=1 // pred_fallthru
      _
    // Predicated region
    $region10: #{autoencoder_forward.4} parent=1 // pred_check
      _
    $region11: #{autoencoder_forward.4} parent=1 // pred_check_branch
      %23 = sbr.rel (0) target = $region13
    $region12: #{autoencoder_forward.4} parent=1 // pred_region
      %s25 = ssub.s32 16, 16
      %26 = vsyncadd [#allocation3], %s25
      %s28 = sshll.u32 [#allocation2], 4
      %s29 = int_to_ptr.vmem [resolvable:$true] %s28
      %31 = dma.hbm_to_vmem [thread:$0]  %s2, 16, %s29, [#allocation3]
    $region13: #{autoencoder_forward.4} parent=1 // pred_fallthru
      _
    // Predicated region
    $region14: #{autoencoder_forward.4} parent=1 // pred_check
      _
    $region15: #{autoencoder_forward.4} parent=1 // pred_check_branch
      %33 = sbr.rel (0) target = $region17
    $region16: #{autoencoder_forward.4} parent=1 // pred_region
      %s35 = ssub.s32 512, 512
      %36 = vsyncadd [#allocation6], %s35
      %s37 = sshll.u32 [#allocation5], 4
      %s38 = int_to_ptr.vmem [resolvable:$true] %s37
      %43 = dma.hbm_to_vmem [thread:$0]  %s3, 512, %s38, [#allocation6], 128, 128, 8
    $region17: #{autoencoder_forward.4} parent=1 // pred_fallthru
      _
    // Predicated region
    $region18: #{autoencoder_forward.4} parent=1 // pred_check
      _
    $region19: #{autoencoder_forward.4} parent=1 // pred_check_branch
      %45 = sbr.rel (0) target = $region21
    $region20: #{autoencoder_forward.4} parent=1 // pred_region
      %s47 = ssub.s32 16, 16
      %48 = vsyncadd [#allocation6], %s47
      %s50 = sshll.u32 [#allocation7], 4
      %s51 = int_to_ptr.vmem [resolvable:$true] %s50
      %53 = dma.hbm_to_vmem [thread:$0]  %s4, 16, %s51, [#allocation6]
    $region21: #{autoencoder_forward.4} parent=1 // pred_fallthru
      _
    // Predicated region
    $region22: #{autoencoder_forward.4} parent=1 // pred_check
      _
    $region23: #{autoencoder_forward.4} parent=1 // pred_check_branch
      %55 = sbr.rel (0) target = $region25
    $region24: #{autoencoder_forward.4} parent=1 // pred_region
      %s57 = ssub.s32 4096, 4096
      %58 = vsyncadd [#allocation9], %s57
      %s59 = sshll.u32 [#allocation8], 4
      %s60 = int_to_ptr.vmem [resolvable:$true] %s59
      %65 = dma.hbm_to_vmem [thread:$0]  %s5, 4096, %s60, [#allocation9], 256, 256, 16
    $region25: #{autoencoder_forward.4} parent=1 // pred_fallthru
      _
    // Predicated region
    $region26: #{autoencoder_forward.4} parent=1 // pred_check
      _
    $region27: #{autoencoder_forward.4} parent=1 // pred_check_branch
      %67 = sbr.rel (0) target = $region29
    $region28: #{autoencoder_forward.4} parent=1 // pred_region
      %s69 = ssub.s32 32, 32
      %70 = vsyncadd [#allocation9], %s69
      %s72 = sshll.u32 [#allocation10], 4
      %s73 = int_to_ptr.vmem [resolvable:$true] %s72
      %75 = dma.hbm_to_vmem [thread:$0]  %s6, 32, %s73, [#allocation9]
    $region29: #{autoencoder_forward.4} parent=1 // pred_fallthru
      _
    // Predicated region
    $region30: #{autoencoder_forward.4} parent=1 // pred_check
      _
    $region31: #{autoencoder_forward.4} parent=1 // pred_check_branch
      %77 = sbr.rel (0) target = $region33
    $region32: #{autoencoder_forward.4} parent=1 // pred_region
      %78 = dma.done [#allocation3], 16
    $region33: #{autoencoder_forward.4} parent=1 // pred_fallthru
      _
    // Predicated region
    $region34: #{autoencoder_forward.4} parent=1 // pred_check
      _
    $region35: #{autoencoder_forward.4} parent=1 // pred_check_branch
      %80 = sbr.rel (0) target = $region37
    $region36: #{autoencoder_forward.4} parent=1 // pred_region
      %81 = dma.done [#allocation6], 512
    $region37: #{autoencoder_forward.4} parent=1 // pred_fallthru
      _
    // Predicated region
    $region38: #{autoencoder_forward.4} parent=1 // pred_check
      _
    $region39: #{autoencoder_forward.4} parent=1 // pred_check_branch
      %83 = sbr.rel (0) target = $region41
    $region40: #{autoencoder_forward.4} parent=1 // pred_region
      %84 = dma.done [#allocation6], 16
    $region41: #{autoencoder_forward.4} parent=1 // pred_fallthru
      _
    // Predicated region
    $region42: #{autoencoder_forward.4} parent=1 // pred_check
      _
    $region43: #{autoencoder_forward.4} parent=1 // pred_check_branch
      %86 = sbr.rel (0) target = $region45
    $region44: #{autoencoder_forward.4} parent=1 // pred_region
      %87 = dma.done [#allocation9], 4096
    $region45: #{autoencoder_forward.4} parent=1 // pred_fallthru
      _
    // Predicated region
    $region46: #{autoencoder_forward.4} parent=1 // pred_check
      _
    $region47: #{autoencoder_forward.4} parent=1 // pred_check_branch
      %89 = sbr.rel (0) target = $region49
    $region48: #{autoencoder_forward.4} parent=1 // pred_region
      %90 = dma.done [#allocation9], 32
    $region49: #{autoencoder_forward.4} parent=1 // pred_fallthru
      _
    %v91 = vld [vmem:[%s0] sm:$0xff]
    %v92 = vld [vmem:[%s0 + $0x8] sm:$0xff]
    %v93 = vld [vmem:[%s0 + $0x10] sm:$0xff]
    %v94 = vld [vmem:[%s0 + $0x18] sm:$0xff]
    %v95 = vld [vmem:[%s0 + $0x20] sm:$0xff]
    %v96 = vld [vmem:[%s0 + $0x28] sm:$0xff]
    %v97 = vld [vmem:[%s0 + $0x30] sm:$0xff]
    %v98 = vld [vmem:[%s0 + $0x38] sm:$0xff]
    %v99 = vld [vmem:[%s0 + $0x40] sm:$0xff]
    %v100 = vld [vmem:[%s0 + $0x48] sm:$0xff]
    %v101 = vld [vmem:[%s0 + $0x50] sm:$0xff]
    %v102 = vld [vmem:[%s0 + $0x58] sm:$0xff]
    %v103 = vld [vmem:[%s0 + $0x60] sm:$0xff]
    %v104 = vld [vmem:[%s0 + $0x68] sm:$0xff]
    %v105 = vld [vmem:[%s0 + $0x70] sm:$0xff]
    %v106 = vld [vmem:[%s0 + $0x78] sm:$0xff]
    %v107 = vld [vmem:[%s0 + $0x80] sm:$0xff]
    %v108 = vld [vmem:[%s0 + $0x88] sm:$0xff]
    %v109 = vld [vmem:[%s0 + $0x90] sm:$0xff]
    %v110 = vld [vmem:[%s0 + $0x98] sm:$0xff]
    %v111 = vld [vmem:[%s0 + $0xa0] sm:$0xff]
    %v112 = vld [vmem:[%s0 + $0xa8] sm:$0xff]
    %v113 = vld [vmem:[%s0 + $0xb0] sm:$0xff]
    %v114 = vld [vmem:[%s0 + $0xb8] sm:$0xff]
    %v115 = vld [vmem:[%s0 + $0xc0] sm:$0xff]
    %v116 = vld [vmem:[%s0 + $0xc8] sm:$0xff]
    %v117 = vld [vmem:[%s0 + $0xd0] sm:$0xff]
    %v118 = vld [vmem:[%s0 + $0xd8] sm:$0xff]
    %v119 = vld [vmem:[%s0 + $0xe0] sm:$0xff]
    %v120 = vld [vmem:[%s0 + $0xe8] sm:$0xff]
    %v121 = vld [vmem:[%s0 + $0xf0] sm:$0xff]
    %v122 = vld [vmem:[%s0 + $0xf8] sm:$0xff]
    %vm123 = vcmask 629760
    %v124 = vsel %vm123, %v91, -inf
    %125 = vmax.xlane.f32.xlu0 %v124
    %v126 = vpop.xlane.xlu0 %125
    %v127 = vsel %vm123, %v92, -inf
    %128 = vmax.xlane.f32.xlu0 %v127
    %v129 = vpop.xlane.xlu0 %128
    %v130 = vsel %vm123, %v93, -inf
    %131 = vmax.xlane.f32.xlu0 %v130
    %v132 = vpop.xlane.xlu0 %131
    %v133 = vsel %vm123, %v94, -inf
    %134 = vmax.xlane.f32.xlu0 %v133
    %v135 = vpop.xlane.xlu0 %134
    %v136 = vsel %vm123, %v95, -inf
    %137 = vmax.xlane.f32.xlu0 %v136
    %v138 = vpop.xlane.xlu0 %137
    %v139 = vsel %vm123, %v96, -inf
    %140 = vmax.xlane.f32.xlu0 %v139
    %v141 = vpop.xlane.xlu0 %140
    %v142 = vsel %vm123, %v97, -inf
    %143 = vmax.xlane.f32.xlu0 %v142
    %v144 = vpop.xlane.xlu0 %143
    %v145 = vsel %vm123, %v98, -inf
    %146 = vmax.xlane.f32.xlu0 %v145
    %v147 = vpop.xlane.xlu0 %146
    %v148 = vsel %vm123, %v99, -inf
    %149 = vmax.xlane.f32.xlu0 %v148
    %v150 = vpop.xlane.xlu0 %149
    %v151 = vsel %vm123, %v100, -inf
    %152 = vmax.xlane.f32.xlu0 %v151
    %v153 = vpop.xlane.xlu0 %152
    %v154 = vsel %vm123, %v101, -inf
    %155 = vmax.xlane.f32.xlu0 %v154
    %v156 = vpop.xlane.xlu0 %155
    %v157 = vsel %vm123, %v102, -inf
    %158 = vmax.xlane.f32.xlu0 %v157
    %v159 = vpop.xlane.xlu0 %158
    %v160 = vsel %vm123, %v103, -inf
    %161 = vmax.xlane.f32.xlu0 %v160
    %v162 = vpop.xlane.xlu0 %161
    %v163 = vsel %vm123, %v104, -inf
    %164 = vmax.xlane.f32.xlu0 %v163
    %v165 = vpop.xlane.xlu0 %164
    %v166 = vsel %vm123, %v105, -inf
    %167 = vmax.xlane.f32.xlu0 %v166
    %v168 = vpop.xlane.xlu0 %167
    %v169 = vsel %vm123, %v106, -inf
    %170 = vmax.xlane.f32.xlu0 %v169
    %v171 = vpop.xlane.xlu0 %170
    %v172 = vsel %vm123, %v107, -inf
    %173 = vmax.xlane.f32.xlu0 %v172
    %v174 = vpop.xlane.xlu0 %173
    %v175 = vsel %vm123, %v108, -inf
    %176 = vmax.xlane.f32.xlu0 %v175
    %v177 = vpop.xlane.xlu0 %176
    %v178 = vsel %vm123, %v109, -inf
    %179 = vmax.xlane.f32.xlu0 %v178
    %v180 = vpop.xlane.xlu0 %179
    %v181 = vsel %vm123, %v110, -inf
    %182 = vmax.xlane.f32.xlu0 %v181
    %v183 = vpop.xlane.xlu0 %182
    %v184 = vsel %vm123, %v111, -inf
    %185 = vmax.xlane.f32.xlu0 %v184
    %v186 = vpop.xlane.xlu0 %185
    %v187 = vsel %vm123, %v112, -inf
    %188 = vmax.xlane.f32.xlu0 %v187
    %v189 = vpop.xlane.xlu0 %188
    %v190 = vsel %vm123, %v113, -inf
    %191 = vmax.xlane.f32.xlu0 %v190
    %v192 = vpop.xlane.xlu0 %191
    %v193 = vsel %vm123, %v114, -inf
    %194 = vmax.xlane.f32.xlu0 %v193
    %v195 = vpop.xlane.xlu0 %194
    %v196 = vsel %vm123, %v115, -inf
    %197 = vmax.xlane.f32.xlu0 %v196
    %v198 = vpop.xlane.xlu0 %197
    %v199 = vsel %vm123, %v116, -inf
    %200 = vmax.xlane.f32.xlu0 %v199
    %v201 = vpop.xlane.xlu0 %200
    %v202 = vsel %vm123, %v117, -inf
    %203 = vmax.xlane.f32.xlu0 %v202
    %v204 = vpop.xlane.xlu0 %203
    %v205 = vsel %vm123, %v118, -inf
    %206 = vmax.xlane.f32.xlu0 %v205
    %v207 = vpop.xlane.xlu0 %206
    %v208 = vsel %vm123, %v119, -inf
    %209 = vmax.xlane.f32.xlu0 %v208
    %v210 = vpop.xlane.xlu0 %209
    %v211 = vsel %vm123, %v120, -inf
    %212 = vmax.xlane.f32.xlu0 %v211
    %v213 = vpop.xlane.xlu0 %212
    %v214 = vsel %vm123, %v121, -inf
    %215 = vmax.xlane.f32.xlu0 %v214
    %v216 = vpop.xlane.xlu0 %215
    %v217 = vsel %vm123, %v122, -inf
    %218 = vmax.xlane.f32.xlu0 %v217
    %v219 = vpop.xlane.xlu0 %218
    %v220 = vld [vmem:[%s1] sm:$0xff]
    %v221 = vld [vmem:[%s1 + $0x8] sm:$0xff]
    %v222 = vld [vmem:[%s1 + $0x10] sm:$0xff]
    %v223 = vld [vmem:[%s1 + $0x18] sm:$0xff]
    %v224 = vld [vmem:[%s1 + $0x20] sm:$0xff]
    %v225 = vld [vmem:[%s1 + $0x28] sm:$0xff]
    %v226 = vld [vmem:[%s1 + $0x30] sm:$0xff]
    %v227 = vld [vmem:[%s1 + $0x38] sm:$0xff]
    %v228 = vld [vmem:[%s1 + $0x40] sm:$0xff]
    %v229 = vld [vmem:[%s1 + $0x48] sm:$0xff]
    %v230 = vld [vmem:[%s1 + $0x50] sm:$0xff]
    %v231 = vld [vmem:[%s1 + $0x58] sm:$0xff]
    %v232 = vld [vmem:[%s1 + $0x60] sm:$0xff]
    %v233 = vld [vmem:[%s1 + $0x68] sm:$0xff]
    %v234 = vld [vmem:[%s1 + $0x70] sm:$0xff]
    %v235 = vld [vmem:[%s1 + $0x78] sm:$0xff]
    %v236 = vld [vmem:[#allocation2] sm:$0x1]
    %v238 = vlaneseq
    %v239 = vshrl.u32 %v238, 7
    %v240 = vsub.s32 0, %v239
    %v241 = vrot.slane %v236, %v240
    %v275 = vlaneseq
    %v276 = vand.u32 %v275, 127
    %v277 = vlaneseq
    %v278 = vshrl.u32 %v277, 7
    %v279 = vsub.s32 %v276, %v278
    %v280 = vrot.slane %v126, %v279
    %v281 = vadd.s32 %v276, 4294967288
    %v282 = vlaneseq
    %v283 = vshrl.u32 %v282, 7
    %v284 = vsub.s32 %v281, %v283
    %v285 = vrot.slane %v129, %v284
    %vm286 = vcmask 130112
    %v287 = vsel %vm286, %v285, %v280
    %v288 = vadd.s32 %v276, 4294967280
    %v289 = vlaneseq
    %v290 = vshrl.u32 %v289, 7
    %v291 = vsub.s32 %v288, %v290
    %v292 = vrot.slane %v132, %v291
    %vm293 = vcmask 195712
    %v294 = vsel %vm293, %v292, %v287
    %v295 = vadd.s32 %v276, 4294967272
    %v296 = vlaneseq
    %v297 = vshrl.u32 %v296, 7
    %v298 = vsub.s32 %v295, %v297
    %v299 = vrot.slane %v135, %v298
    %vm300 = vcmask 261312
    %v301 = vsel %vm300, %v299, %v294
    %v302 = vadd.s32 %v276, 4294967264
    %v303 = vlaneseq
    %v304 = vshrl.u32 %v303, 7
    %v305 = vsub.s32 %v302, %v304
    %v306 = vrot.slane %v138, %v305
    %vm307 = vcmask 326912
    %v308 = vsel %vm307, %v306, %v301
    %v309 = vadd.s32 %v276, 4294967256
    %v310 = vlaneseq
    %v311 = vshrl.u32 %v310, 7
    %v312 = vsub.s32 %v309, %v311
    %v313 = vrot.slane %v141, %v312
    %vm314 = vcmask 392512
    %v315 = vsel %vm314, %v313, %v308
    %v316 = vadd.s32 %v276, 4294967248
    %v317 = vlaneseq
    %v318 = vshrl.u32 %v317, 7
    %v319 = vsub.s32 %v316, %v318
    %v320 = vrot.slane %v144, %v319
    %vm321 = vcmask 458112
    %v322 = vsel %vm321, %v320, %v315
    %v323 = vadd.s32 %v276, 4294967240
    %v324 = vlaneseq
    %v325 = vshrl.u32 %v324, 7
    %v326 = vsub.s32 %v323, %v325
    %v327 = vrot.slane %v147, %v326
    %vm328 = vcmask 523712
    %v329 = vsel %vm328, %v327, %v322
    %v330 = vadd.s32 %v276, 4294967232
    %v331 = vlaneseq
    %v332 = vshrl.u32 %v331, 7
    %v333 = vsub.s32 %v330, %v332
    %v334 = vrot.slane %v150, %v333
    %vm335 = vcmask 589312
    %v336 = vsel %vm335, %v334, %v329
    %v337 = vadd.s32 %v276, 4294967224
    %v338 = vlaneseq
    %v339 = vshrl.u32 %v338, 7
    %v340 = vsub.s32 %v337, %v339
    %v341 = vrot.slane %v153, %v340
    %vm342 = vcmask 654912
    %v343 = vsel %vm342, %v341, %v336
    %v344 = vadd.s32 %v276, 4294967216
    %v345 = vlaneseq
    %v346 = vshrl.u32 %v345, 7
    %v347 = vsub.s32 %v344, %v346
    %v348 = vrot.slane %v156, %v347
    %vm349 = vcmask 720512
    %v350 = vsel %vm349, %v348, %v343
    %v351 = vadd.s32 %v276, 4294967208
    %v352 = vlaneseq
    %v353 = vshrl.u32 %v352, 7
    %v354 = vsub.s32 %v351, %v353
    %v355 = vrot.slane %v159, %v354
    %vm356 = vcmask 786112
    %v357 = vsel %vm356, %v355, %v350
    %v358 = vadd.s32 %v276, 4294967200
    %v359 = vlaneseq
    %v360 = vshrl.u32 %v359, 7
    %v361 = vsub.s32 %v358, %v360
    %v362 = vrot.slane %v162, %v361
    %vm363 = vcmask 851712
    %v364 = vsel %vm363, %v362, %v357
    %v365 = vadd.s32 %v276, 4294967192
    %v366 = vlaneseq
    %v367 = vshrl.u32 %v366, 7
    %v368 = vsub.s32 %v365, %v367
    %v369 = vrot.slane %v165, %v368
    %vm370 = vcmask 917312
    %v371 = vsel %vm370, %v369, %v364
    %v372 = vadd.s32 %v276, 4294967184
    %v373 = vlaneseq
    %v374 = vshrl.u32 %v373, 7
    %v375 = vsub.s32 %v372, %v374
    %v376 = vrot.slane %v168, %v375
    %vm377 = vcmask 982912
    %v378 = vsel %vm377, %v376, %v371
    %v379 = vadd.s32 %v276, 4294967176
    %v380 = vlaneseq
    %v381 = vshrl.u32 %v380, 7
    %v382 = vsub.s32 %v379, %v381
    %v383 = vrot.slane %v171, %v382
    %vm384 = vcmask 1048512
    %v385 = vsel %vm384, %v383, %v378
    %v386 = vlaneseq
    %v387 = vshrl.u32 %v386, 7
    %v388 = vsub.s32 %v276, %v387
    %v389 = vrot.slane %v174, %v388
    %v390 = vlaneseq
    %v391 = vshrl.u32 %v390, 7
    %v392 = vsub.s32 %v281, %v391
    %v393 = vrot.slane %v177, %v392
    %v394 = vsel %vm286, %v393, %v389
    %v395 = vlaneseq
    %v396 = vshrl.u32 %v395, 7
    %v397 = vsub.s32 %v288, %v396
    %v398 = vrot.slane %v180, %v397
    %v399 = vsel %vm293, %v398, %v394
    %v400 = vlaneseq
    %v401 = vshrl.u32 %v400, 7
    %v402 = vsub.s32 %v295, %v401
    %v403 = vrot.slane %v183, %v402
    %v404 = vsel %vm300, %v403, %v399
    %v405 = vlaneseq
    %v406 = vshrl.u32 %v405, 7
    %v407 = vsub.s32 %v302, %v406
    %v408 = vrot.slane %v186, %v407
    %v409 = vsel %vm307, %v408, %v404
    %v410 = vlaneseq
    %v411 = vshrl.u32 %v410, 7
    %v412 = vsub.s32 %v309, %v411
    %v413 = vrot.slane %v189, %v412
    %v414 = vsel %vm314, %v413, %v409
    %v415 = vlaneseq
    %v416 = vshrl.u32 %v415, 7
    %v417 = vsub.s32 %v316, %v416
    %v418 = vrot.slane %v192, %v417
    %v419 = vsel %vm321, %v418, %v414
    %v420 = vlaneseq
    %v421 = vshrl.u32 %v420, 7
    %v422 = vsub.s32 %v323, %v421
    %v423 = vrot.slane %v195, %v422
    %v424 = vsel %vm328, %v423, %v419
    %v425 = vlaneseq
    %v426 = vshrl.u32 %v425, 7
    %v427 = vsub.s32 %v330, %v426
    %v428 = vrot.slane %v198, %v427
    %v429 = vsel %vm335, %v428, %v424
    %v430 = vlaneseq
    %v431 = vshrl.u32 %v430, 7
    %v432 = vsub.s32 %v337, %v431
    %v433 = vrot.slane %v201, %v432
    %v434 = vsel %vm342, %v433, %v429
    %v435 = vlaneseq
    %v436 = vshrl.u32 %v435, 7
    %v437 = vsub.s32 %v344, %v436
    %v438 = vrot.slane %v204, %v437
    %v439 = vsel %vm349, %v438, %v434
    %v440 = vlaneseq
    %v441 = vshrl.u32 %v440, 7
    %v442 = vsub.s32 %v351, %v441
    %v443 = vrot.slane %v207, %v442
    %v444 = vsel %vm356, %v443, %v439
    %v445 = vlaneseq
    %v446 = vshrl.u32 %v445, 7
    %v447 = vsub.s32 %v358, %v446
    %v448 = vrot.slane %v210, %v447
    %v449 = vsel %vm363, %v448, %v444
    %v450 = vlaneseq
    %v451 = vshrl.u32 %v450, 7
    %v452 = vsub.s32 %v365, %v451
    %v453 = vrot.slane %v213, %v452
    %v454 = vsel %vm370, %v453, %v449
    %v455 = vlaneseq
    %v456 = vshrl.u32 %v455, 7
    %v457 = vsub.s32 %v372, %v456
    %v458 = vrot.slane %v216, %v457
    %v459 = vsel %vm377, %v458, %v454
    %v460 = vlaneseq
    %v461 = vshrl.u32 %v460, 7
    %v462 = vsub.s32 %v379, %v461
    %v463 = vrot.slane %v219, %v462
    %v464 = vsel %vm384, %v463, %v459
    %vm465 = vcmask 1041409
    %v466 = vsel %vm465, %v464, %v385
    %468 = vmatprep.subr.mxu0 0.0
    %469 = vmatpush1.msra.mxu0 %v235
    %470 = vmatprep.subr.mxu0 0.0
    %471 = vmatpush1.msra.mxu0 %v234
    %472 = vmatprep.subr.mxu0 0.0
    %473 = vmatpush1.msra.mxu0 %v233
    %474 = vmatprep.subr.mxu0 0.0
    %475 = vmatpush1.msra.mxu0 %v232
    %476 = vmatprep.subr.mxu0 0.0
    %477 = vmatpush1.msra.mxu0 %v231
    %478 = vmatprep.subr.mxu0 0.0
    %479 = vmatpush1.msra.mxu0 %v230
    %480 = vmatprep.subr.mxu0 0.0
    %481 = vmatpush1.msra.mxu0 %v229
    %482 = vmatprep.subr.mxu0 0.0
    %483 = vmatpush1.msra.mxu0 %v228
    %484 = vmatprep.subr.mxu0 0.0
    %485 = vmatpush1.msra.mxu0 %v227
    %486 = vmatprep.subr.mxu0 0.0
    %487 = vmatpush1.msra.mxu0 %v226
    %488 = vmatprep.subr.mxu0 0.0
    %489 = vmatpush1.msra.mxu0 %v225
    %490 = vmatprep.subr.mxu0 0.0
    %491 = vmatpush1.msra.mxu0 %v224
    %492 = vmatprep.subr.mxu0 0.0
    %493 = vmatpush1.msra.mxu0 %v223
    %494 = vmatprep.subr.mxu0 0.0
    %495 = vmatpush1.msra.mxu0 %v222
    %496 = vmatprep.subr.mxu0 0.0
    %497 = vmatpush1.msra.mxu0 %v221
    %498 = vmatprep.subr.mxu0 0.0
    %499 = vmatpush1.msra.mxu0 %v220
    %500 = vmatprep.subr.mxu0 0.0
    %501 = vmatpush2.msra.mxu0 0.0
    %502 = vmatprep.subr.mxu0 0.0
    %503 = vmatpush2.msra.mxu0 0.0
    %504 = vmatprep.subr.mxu0 0.0
    %505 = vmatpush2.msra.mxu0 0.0
    %506 = vmatprep.subr.mxu0 0.0
    %507 = vmatpush2.msra.mxu0 0.0
    %508 = vmatprep.subr.mxu0 0.0
    %509 = vmatpush2.msra.mxu0 0.0
    %510 = vmatprep.subr.mxu0 0.0
    %511 = vmatpush2.msra.mxu0 0.0
    %512 = vmatprep.subr.mxu0 0.0
    %513 = vmatpush2.msra.mxu0 0.0
    %514 = vmatprep.subr.mxu0 0.0
    %515 = vmatpush2.msra.mxu0 0.0
    %516 = vmatprep.subr.mxu0 0.0
    %517 = vmatpush2.msra.mxu0 0.0
    %518 = vmatprep.subr.mxu0 0.0
    %519 = vmatpush2.msra.mxu0 0.0
    %520 = vmatprep.subr.mxu0 0.0
    %521 = vmatpush2.msra.mxu0 0.0
    %522 = vmatprep.subr.mxu0 0.0
    %523 = vmatpush2.msra.mxu0 0.0
    %524 = vmatprep.subr.mxu0 0.0
    %525 = vmatpush2.msra.mxu0 0.0
    %526 = vmatprep.subr.mxu0 0.0
    %527 = vmatpush2.msra.mxu0 0.0
    %528 = vmatprep.subr.mxu0 0.0
    %529 = vmatpush2.msra.mxu0 0.0
    %530 = vmatprep.subr.mxu0 0.0
    %531 = vmatpush2.msra.mxu0 0.0
    %532 = vmatprep.mubr.f32.mxu0 0.0
    %533 = vmatmul.mubr.f32.gmra.mxu0 %v466
    %v534 = vpop.f32.mrf.mxu0
    %v535 = vadd.f32 %v241, %v534
    %v536 = vpop.f32.mrf.mxu0
    %537 = vdwg.mxu0
    %v538 = vld [vmem:[#allocation5] sm:$0xff]
    %v539 = vld [vmem:[#allocation5 + $0x8] sm:$0xff]
    %v540 = vld [vmem:[#allocation5 + $0x10] sm:$0xff]
    %v541 = vld [vmem:[#allocation5 + $0x18] sm:$0xff]
    %v542 = vld [vmem:[#allocation7] sm:$0x1]
    %v544 = vlaneseq
    %v545 = vshrl.u32 %v544, 7
    %v546 = vsub.s32 0, %v545
    %v547 = vrot.slane %v542, %v546
    %vm549 = vcmask 261120
    %v551 = vsel %vm549, %v535, 0
    %553 = vmatprep.subr.mxu0 0.0
    %554 = vmatpush1.msra.mxu0 0.0
    %555 = vmatprep.subr.mxu0 0.0
    %556 = vmatpush1.msra.mxu0 0.0
    %557 = vmatprep.subr.mxu0 0.0
    %558 = vmatpush1.msra.mxu0 0.0
    %559 = vmatprep.subr.mxu0 0.0
    %560 = vmatpush1.msra.mxu0 0.0
    %561 = vmatprep.subr.mxu0 0.0
    %562 = vmatpush1.msra.mxu0 0.0
    %563 = vmatprep.subr.mxu0 0.0
    %564 = vmatpush1.msra.mxu0 0.0
    %565 = vmatprep.subr.mxu0 0.0
    %566 = vmatpush1.msra.mxu0 0.0
    %567 = vmatprep.subr.mxu0 0.0
    %568 = vmatpush1.msra.mxu0 0.0
    %569 = vmatprep.subr.mxu0 0.0
    %570 = vmatpush1.msra.mxu0 0.0
    %571 = vmatprep.subr.mxu0 0.0
    %572 = vmatpush1.msra.mxu0 0.0
    %573 = vmatprep.subr.mxu0 0.0
    %574 = vmatpush1.msra.mxu0 0.0
    %575 = vmatprep.subr.mxu0 0.0
    %576 = vmatpush1.msra.mxu0 0.0
    %577 = vmatprep.subr.mxu0 0.0
    %578 = vmatpush1.msra.mxu0 %v541
    %579 = vmatprep.subr.mxu0 0.0
    %580 = vmatpush1.msra.mxu0 %v540
    %581 = vmatprep.subr.mxu0 0.0
    %582 = vmatpush1.msra.mxu0 %v539
    %583 = vmatprep.subr.mxu0 0.0
    %584 = vmatpush1.msra.mxu0 %v538
    %585 = vmatprep.subr.mxu0 0.0
    %586 = vmatpush2.msra.mxu0 0.0
    %587 = vmatprep.subr.mxu0 0.0
    %588 = vmatpush2.msra.mxu0 0.0
    %589 = vmatprep.subr.mxu0 0.0
    %590 = vmatpush2.msra.mxu0 0.0
    %591 = vmatprep.subr.mxu0 0.0
    %592 = vmatpush2.msra.mxu0 0.0
    %593 = vmatprep.subr.mxu0 0.0
    %594 = vmatpush2.msra.mxu0 0.0
    %595 = vmatprep.subr.mxu0 0.0
    %596 = vmatpush2.msra.mxu0 0.0
    %597 = vmatprep.subr.mxu0 0.0
    %598 = vmatpush2.msra.mxu0 0.0
    %599 = vmatprep.subr.mxu0 0.0
    %600 = vmatpush2.msra.mxu0 0.0
    %601 = vmatprep.subr.mxu0 0.0
    %602 = vmatpush2.msra.mxu0 0.0
    %603 = vmatprep.subr.mxu0 0.0
    %604 = vmatpush2.msra.mxu0 0.0
    %605 = vmatprep.subr.mxu0 0.0
    %606 = vmatpush2.msra.mxu0 0.0
    %607 = vmatprep.subr.mxu0 0.0
    %608 = vmatpush2.msra.mxu0 0.0
    %609 = vmatprep.subr.mxu0 0.0
    %610 = vmatpush2.msra.mxu0 0.0
    %611 = vmatprep.subr.mxu0 0.0
    %612 = vmatpush2.msra.mxu0 0.0
    %613 = vmatprep.subr.mxu0 0.0
    %614 = vmatpush2.msra.mxu0 0.0
    %615 = vmatprep.subr.mxu0 0.0
    %616 = vmatpush2.msra.mxu0 0.0
    %617 = vmatprep.mubr.f32.mxu0 0.0
    %618 = vmatmul.mubr.f32.gmra.mxu0 %v551
    %v619 = vpop.f32.mrf.mxu0
    %v620 = vadd.f32 %v547, %v619
    %v621 = vpop.f32.mrf.mxu0
    %622 = vdwg.mxu0
    %v623 = vmax.f32 %v620, 0.0
    %v624 = vld [vmem:[#allocation8] sm:$0xff]
    %v625 = vld [vmem:[#allocation8 + $0x8] sm:$0xff]
    %v626 = vld [vmem:[#allocation8 + $0x10] sm:$0xff]
    %v627 = vld [vmem:[#allocation8 + $0x18] sm:$0xff]
    %v628 = vld [vmem:[#allocation8 + $0x20] sm:$0xff]
    %v629 = vld [vmem:[#allocation8 + $0x28] sm:$0xff]
    %v630 = vld [vmem:[#allocation8 + $0x30] sm:$0xff]
    %v631 = vld [vmem:[#allocation8 + $0x38] sm:$0xff]
    %v632 = vld [vmem:[#allocation8 + $0x40] sm:$0xff]
    %v633 = vld [vmem:[#allocation8 + $0x48] sm:$0xff]
    %v634 = vld [vmem:[#allocation8 + $0x50] sm:$0xff]
    %v635 = vld [vmem:[#allocation8 + $0x58] sm:$0xff]
    %v636 = vld [vmem:[#allocation8 + $0x60] sm:$0xff]
    %v637 = vld [vmem:[#allocation8 + $0x68] sm:$0xff]
    %v638 = vld [vmem:[#allocation8 + $0x70] sm:$0xff]
    %v639 = vld [vmem:[#allocation8 + $0x78] sm:$0xff]
    %v640 = vld [vmem:[#allocation8 + $0x80] sm:$0xff]
    %v641 = vld [vmem:[#allocation8 + $0x88] sm:$0xff]
    %v642 = vld [vmem:[#allocation8 + $0x90] sm:$0xff]
    %v643 = vld [vmem:[#allocation8 + $0x98] sm:$0xff]
    %v644 = vld [vmem:[#allocation8 + $0xa0] sm:$0xff]
    %v645 = vld [vmem:[#allocation8 + $0xa8] sm:$0xff]
    %v646 = vld [vmem:[#allocation8 + $0xb0] sm:$0xff]
    %v647 = vld [vmem:[#allocation8 + $0xb8] sm:$0xff]
    %v648 = vld [vmem:[#allocation8 + $0xc0] sm:$0xff]
    %v649 = vld [vmem:[#allocation8 + $0xc8] sm:$0xff]
    %v650 = vld [vmem:[#allocation8 + $0xd0] sm:$0xff]
    %v651 = vld [vmem:[#allocation8 + $0xd8] sm:$0xff]
    %v652 = vld [vmem:[#allocation8 + $0xe0] sm:$0xff]
    %v653 = vld [vmem:[#allocation8 + $0xe8] sm:$0xff]
    %v654 = vld [vmem:[#allocation8 + $0xf0] sm:$0xff]
    %v655 = vld [vmem:[#allocation8 + $0xf8] sm:$0xff]
    %v656 = vld [vmem:[#allocation10] sm:$0x3]
    %v658 = vlaneseq
    %v659 = vshrl.u32 %v658, 7
    %v660 = vsub.s32 0, %v659
    %v661 = vrot.slane %v656, %v660
    %v662 = vlaneseq
    %v663 = vshrl.u32 %v662, 7
    %v664 = vsub.s32 1, %v663
    %v665 = vrot.slane %v656, %v664
    %668 = vmatprep.subr.mxu0 %v655
    %669 = vmatpush1.msra.mxu0 %v654
    %670 = vmatprep.subr.mxu0 %v653
    %671 = vmatpush1.msra.mxu0 %v652
    %672 = vmatprep.subr.mxu0 %v651
    %673 = vmatpush1.msra.mxu0 %v650
    %674 = vmatprep.subr.mxu0 %v649
    %675 = vmatpush1.msra.mxu0 %v648
    %676 = vmatprep.subr.mxu0 %v647
    %677 = vmatpush1.msra.mxu0 %v646
    %678 = vmatprep.subr.mxu0 %v645
    %679 = vmatpush1.msra.mxu0 %v644
    %680 = vmatprep.subr.mxu0 %v643
    %681 = vmatpush1.msra.mxu0 %v642
    %682 = vmatprep.subr.mxu0 %v641
    %683 = vmatpush1.msra.mxu0 %v640
    %684 = vmatprep.subr.mxu0 %v639
    %685 = vmatpush1.msra.mxu0 %v638
    %686 = vmatprep.subr.mxu0 %v637
    %687 = vmatpush1.msra.mxu0 %v636
    %688 = vmatprep.subr.mxu0 %v635
    %689 = vmatpush1.msra.mxu0 %v634
    %690 = vmatprep.subr.mxu0 %v633
    %691 = vmatpush1.msra.mxu0 %v632
    %692 = vmatprep.subr.mxu0 %v631
    %693 = vmatpush1.msra.mxu0 %v630
    %694 = vmatprep.subr.mxu0 %v629
    %695 = vmatpush1.msra.mxu0 %v628
    %696 = vmatprep.subr.mxu0 %v627
    %697 = vmatpush1.msra.mxu0 %v626
    %698 = vmatprep.subr.mxu0 %v625
    %699 = vmatpush1.msra.mxu0 %v624
    %700 = vmatprep.subr.mxu0 0.0
    %701 = vmatpush2.msra.mxu0 0.0
    %702 = vmatprep.subr.mxu0 0.0
    %703 = vmatpush2.msra.mxu0 0.0
    %704 = vmatprep.subr.mxu0 0.0
    %705 = vmatpush2.msra.mxu0 0.0
    %706 = vmatprep.subr.mxu0 0.0
    %707 = vmatpush2.msra.mxu0 0.0
    %708 = vmatprep.subr.mxu0 0.0
    %709 = vmatpush2.msra.mxu0 0.0
    %710 = vmatprep.subr.mxu0 0.0
    %711 = vmatpush2.msra.mxu0 0.0
    %712 = vmatprep.subr.mxu0 0.0
    %713 = vmatpush2.msra.mxu0 0.0
    %714 = vmatprep.subr.mxu0 0.0
    %715 = vmatpush2.msra.mxu0 0.0
    %716 = vmatprep.subr.mxu0 0.0
    %717 = vmatpush2.msra.mxu0 0.0
    %718 = vmatprep.subr.mxu0 0.0
    %719 = vmatpush2.msra.mxu0 0.0
    %720 = vmatprep.subr.mxu0 0.0
    %721 = vmatpush2.msra.mxu0 0.0
    %722 = vmatprep.subr.mxu0 0.0
    %723 = vmatpush2.msra.mxu0 0.0
    %724 = vmatprep.subr.mxu0 0.0
    %725 = vmatpush2.msra.mxu0 0.0
    %726 = vmatprep.subr.mxu0 0.0
    %727 = vmatpush2.msra.mxu0 0.0
    %728 = vmatprep.subr.mxu0 0.0
    %729 = vmatpush2.msra.mxu0 0.0
    %730 = vmatprep.subr.mxu0 0.0
    %731 = vmatpush2.msra.mxu0 0.0
    %732 = vmatprep.mubr.f32.mxu0 0.0
    %733 = vmatmul.mubr.f32.gmra.mxu0 %v623
    %v734 = vpop.f32.mrf.mxu0
    %v735 = vadd.f32 %v661, %v734
    %v736 = vpop.f32.mrf.mxu0
    %v737 = vadd.f32 %v665, %v736
    %738 = vdwg.mxu0
    %v739 = vmax.f32 %v735, 0.0
    %v740 = vmax.f32 %v737, 0.0
    %vm741 = vcmask 254976
    %742 = vst.msk [vmem:[#allocation11] sm:$0x3] %vm741, %v535
    %v745 = vcombine.low %v739, %v740
    %v747 = vunpack.c.l.s4 1983009808
    %v748 = vunpack.c.0.s8 %v747
    %v749 = vlaneseq
    %v750 = vshrl.u32 %v749, 7
    %v751 = vsub.s32 %v748, %v750
    %v752 = vrot.slane %v745, %v751
    %754 = vst [vmem:[%s8] sm:$0xf] %v752
    // Predicated region
    $region50: #{autoencoder_forward.4} parent=1 // pred_check
      _
    $region51: #{autoencoder_forward.4} parent=1 // pred_check_branch
      %756 = sbr.rel (0) target = $region53
    $region52: #{autoencoder_forward.4} parent=1 // pred_region
      %s758 = ssub.s32 32, 32
      %759 = vsyncadd [#allocation4], %s758
      %s761 = sshll.u32 [#allocation11], 4
      %s762 = int_to_ptr.vmem [resolvable:$true] %s761
      %764 = dma.vmem_to_hbm [thread:$0]  %s762, 32, %s7, [#allocation4]
    $region53: #{autoencoder_forward.4} parent=1 // pred_fallthru
      _
    // Predicated region
    $region54: #{autoencoder_forward.4} parent=1 // pred_check
      _
    $region55: #{autoencoder_forward.4} parent=1 // pred_check_branch
      %766 = sbr.rel (0) target = $region57
    $region56: #{autoencoder_forward.4} parent=1 // pred_region
      _
    $region57: #{autoencoder_forward.4} parent=1 // pred_fallthru
      _
    // Predicated region
    $region58: #{autoencoder_forward.4} parent=1 // pred_check
      _
    $region59: #{autoencoder_forward.4} parent=1 // pred_check_branch
      %768 = sbr.rel (0) target = $region61
    $region60: #{autoencoder_forward.4} parent=1 // pred_region
      %769 = dma.done [#allocation4], 32
    $region61: #{autoencoder_forward.4} parent=1 // pred_fallthru
      _
    // Predicated region
    $region62: #{autoencoder_forward.4} parent=1 // pred_check
      _
    $region63: #{autoencoder_forward.4} parent=1 // pred_check_branch
      %771 = sbr.rel (0) target = $region65
    $region64: #{autoencoder_forward.4} parent=1 // pred_region
      _
    $region65: #{autoencoder_forward.4} parent=1 // pred_fallthru
      _
    %772 = vsyncpa [#allocation3], 1
    %773 = vsyncpa [#allocation6], 1
    %774 = vsyncpa [#allocation9], 1
    %775 = vsyncpa [#allocation4], 1

// kernel: autoencoder_forward.3
$region0: #{autoencoder_forward.3}
  #allocation0 [shape = 'u32[]', space=smem, size = 0x4, offset = 0x4, fixed_abs, tag = 'smem constant byte address 0x4 - core index']
  #allocation1 [shape = 'u32[144,128]{1,0:T(1,128)}', space=vmem, size = 0x12000, scoped, tag = 'internal scratch']
  %s0 = inlined_call_operand.vmem [shape: f32[154,768], index: 0, kind: input, shape index: {}]
  %s1 = inlined_call_operand.hbm [shape: f32[768,256], index: 1, kind: input, shape index: {}]
  %s2 = inlined_call_operand.hbm [shape: f32[1,256], index: 2, kind: input, shape index: {}]
  %s3 = inlined_call_operand.hbm [shape: f32[256,128], index: 3, kind: input, shape index: {}]
  %s4 = inlined_call_operand.hbm [shape: f32[1,128], index: 4, kind: input, shape index: {}]
  %s5 = inlined_call_operand.vmem [shape: f32[154,128], index: 5, kind: output, shape index: {}]
  %s6 = sld [smem:[#allocation0]]
  $region46: #{autoencoder_forward.3} parent=0
    _
  %s8 = ssub.s32 1, %s6
  %s9 = scalar_select 0, %s8, %s6
  $region1: #{autoencoder_forward.3} parent=0
    #allocation2 [shape = 'u8[786432]{0}', space=vmem, size = 0xc0000, scoped, tag = 'input window, operand 1, single buffered']
    #allocation3 [shape = 's32[1]{0}', space=sflag, size = 0x4, scoped, tag = 'scoped memory for autoencoder_forward.3']
    #allocation4 [shape = 'u8[1024]{0}', space=vmem, size = 0x400, scoped, tag = 'input window, operand 2, single buffered']
    #allocation5 [shape = 's32[1]{0}', space=sflag, size = 0x4, scoped, tag = 'scoped memory for autoencoder_forward.3']
    #allocation6 [shape = 'u8[131072]{0}', space=vmem, size = 0x20000, scoped, tag = 'input window, operand 3, single buffered']
    #allocation7 [shape = 'u8[512]{0}', space=vmem, size = 0x400, scoped, tag = 'input window, operand 4, single buffered']
    #allocation8 [shape = 's32[1]{0}', space=sflag, size = 0x4, scoped, tag = 'scoped memory for autoencoder_forward.3']
    %10 = vsyncpa [#allocation3], 0
    %11 = vsyncpa [#allocation5], 0
    %12 = vsyncpa [#allocation8], 0
    // Predicated region
    $region2: #{autoencoder_forward.3} parent=1 // pred_check
      _
    $region3: #{autoencoder_forward.3} parent=1 // pred_check_branch
      %14 = sbr.rel (0) target = $region5
    $region4: #{autoencoder_forward.3} parent=1 // pred_region
      _
    $region5: #{autoencoder_forward.3} parent=1 // pred_fallthru
      _
    // Predicated region
    $region6: #{autoencoder_forward.3} parent=1 // pred_check
      _
    $region7: #{autoencoder_forward.3} parent=1 // pred_check_branch
      %16 = sbr.rel (0) target = $region9
    $region8: #{autoencoder_forward.3} parent=1 // pred_region
      %s18 = ssub.s32 24576, 24576
      %19 = vsyncadd [#allocation3], %s18
      %s20 = sshll.u32 [#allocation2], 4
      %s21 = int_to_ptr.vmem [resolvable:$true] %s20
      %26 = dma.hbm_to_vmem [thread:$0]  %s1, 24576, %s21, [#allocation3], 256, 256, 16
    $region9: #{autoencoder_forward.3} parent=1 // pred_fallthru
      _
    // Predicated region
    $region10: #{autoencoder_forward.3} parent=1 // pred_check
      _
    $region11: #{autoencoder_forward.3} parent=1 // pred_check_branch
      %28 = sbr.rel (0) target = $region13
    $region12: #{autoencoder_forward.3} parent=1 // pred_region
      %s30 = ssub.s32 32, 32
      %31 = vsyncadd [#allocation5], %s30
      %s33 = sshll.u32 [#allocation4], 4
      %s34 = int_to_ptr.vmem [resolvable:$true] %s33
      %36 = dma.hbm_to_vmem [thread:$0]  %s2, 32, %s34, [#allocation5]
    $region13: #{autoencoder_forward.3} parent=1 // pred_fallthru
      _
    // Predicated region
    $region14: #{autoencoder_forward.3} parent=1 // pred_check
      _
    $region15: #{autoencoder_forward.3} parent=1 // pred_check_branch
      %38 = sbr.rel (0) target = $region17
    $region16: #{autoencoder_forward.3} parent=1 // pred_region
      %s40 = ssub.s32 4096, 4096
      %41 = vsyncadd [#allocation5], %s40
      %s42 = sshll.u32 [#allocation6], 4
      %s43 = int_to_ptr.vmem [resolvable:$true] %s42
      %48 = dma.hbm_to_vmem [thread:$0]  %s3, 4096, %s43, [#allocation5], 128, 128, 8
    $region17: #{autoencoder_forward.3} parent=1 // pred_fallthru
      _
    // Predicated region
    $region18: #{autoencoder_forward.3} parent=1 // pred_check
      _
    $region19: #{autoencoder_forward.3} parent=1 // pred_check_branch
      %50 = sbr.rel (0) target = $region21
    $region20: #{autoencoder_forward.3} parent=1 // pred_region
      %s52 = ssub.s32 16, 16
      %53 = vsyncadd [#allocation8], %s52
      %s55 = sshll.u32 [#allocation7], 4
      %s56 = int_to_ptr.vmem [resolvable:$true] %s55
      %58 = dma.hbm_to_vmem [thread:$0]  %s4, 16, %s56, [#allocation8]
    $region21: #{autoencoder_forward.3} parent=1 // pred_fallthru
      _
    // Predicated region
    $region22: #{autoencoder_forward.3} parent=1 // pred_check
      _
    $region23: #{autoencoder_forward.3} parent=1 // pred_check_branch
      %60 = sbr.rel (0) target = $region25
    $region24: #{autoencoder_forward.3} parent=1 // pred_region
      %61 = dma.done [#allocation3], 24576
    $region25: #{autoencoder_forward.3} parent=1 // pred_fallthru
      _
    // Predicated region
    $region26: #{autoencoder_forward.3} parent=1 // pred_check
      _
    $region27: #{autoencoder_forward.3} parent=1 // pred_check_branch
      %63 = sbr.rel (0) target = $region29
    $region28: #{autoencoder_forward.3} parent=1 // pred_region
      %64 = dma.done [#allocation5], 32
    $region29: #{autoencoder_forward.3} parent=1 // pred_fallthru
      _
    // Predicated region
    $region30: #{autoencoder_forward.3} parent=1 // pred_check
      _
    $region31: #{autoencoder_forward.3} parent=1 // pred_check_branch
      %66 = sbr.rel (0) target = $region33
    $region32: #{autoencoder_forward.3} parent=1 // pred_region
      %67 = dma.done [#allocation5], 4096
    $region33: #{autoencoder_forward.3} parent=1 // pred_fallthru
      _
    // Predicated region
    $region34: #{autoencoder_forward.3} parent=1 // pred_check
      _
    $region35: #{autoencoder_forward.3} parent=1 // pred_check_branch
      %69 = sbr.rel (0) target = $region37
    $region36: #{autoencoder_forward.3} parent=1 // pred_region
      %70 = dma.done [#allocation8], 16
    $region37: #{autoencoder_forward.3} parent=1 // pred_fallthru
      _
    %v71 = vld [vmem:[%s0] sm:$0xff]
    %v72 = vld [vmem:[%s0 + $0x8] sm:$0xff]
    %v73 = vld [vmem:[%s0 + $0x10] sm:$0xff]
    %v74 = vld [vmem:[%s0 + $0x18] sm:$0xff]
    %v75 = vld [vmem:[%s0 + $0x20] sm:$0xff]
    %v76 = vld [vmem:[%s0 + $0x28] sm:$0xff]
    %v77 = vld [vmem:[%s0 + $0x30] sm:$0xff]
    %v78 = vld [vmem:[%s0 + $0x38] sm:$0xff]
    %v79 = vld [vmem:[%s0 + $0x40] sm:$0xff]
    %v80 = vld [vmem:[%s0 + $0x48] sm:$0xff]
    %v81 = vld [vmem:[%s0 + $0x50] sm:$0xff]
    %v82 = vld [vmem:[%s0 + $0x58] sm:$0xff]
    %v83 = vld [vmem:[%s0 + $0x60] sm:$0xff]
    %v84 = vld [vmem:[%s0 + $0x68] sm:$0xff]
    %v85 = vld [vmem:[%s0 + $0x70] sm:$0xff]
    %v86 = vld [vmem:[%s0 + $0x78] sm:$0xff]
    %v87 = vld [vmem:[%s0 + $0x80] sm:$0xff]
    %v88 = vld [vmem:[%s0 + $0x88] sm:$0xff]
    %v89 = vld [vmem:[%s0 + $0x90] sm:$0xff]
    %v90 = vld [vmem:[%s0 + $0x98] sm:$0xff]
    %v91 = vld [vmem:[%s0 + $0xa0] sm:$0xff]
    %v92 = vld [vmem:[%s0 + $0xa8] sm:$0xff]
    %v93 = vld [vmem:[%s0 + $0xb0] sm:$0xff]
    %v94 = vld [vmem:[%s0 + $0xb8] sm:$0xff]
    %v95 = vld [vmem:[%s0 + $0xc0] sm:$0xff]
    %v96 = vld [vmem:[%s0 + $0xc8] sm:$0xff]
    %v97 = vld [vmem:[%s0 + $0xd0] sm:$0xff]
    %v98 = vld [vmem:[%s0 + $0xd8] sm:$0xff]
    %v99 = vld [vmem:[%s0 + $0xe0] sm:$0xff]
    %v100 = vld [vmem:[%s0 + $0xe8] sm:$0xff]
    %v101 = vld [vmem:[%s0 + $0xf0] sm:$0xff]
    %v102 = vld [vmem:[%s0 + $0xf8] sm:$0xff]
    %v103 = vld [vmem:[%s0 + $0x100] sm:$0xff]
    %v104 = vld [vmem:[%s0 + $0x108] sm:$0xff]
    %v105 = vld [vmem:[%s0 + $0x110] sm:$0xff]
    %v106 = vld [vmem:[%s0 + $0x118] sm:$0xff]
    %v107 = vld [vmem:[%s0 + $0x120] sm:$0xff]
    %v108 = vld [vmem:[%s0 + $0x128] sm:$0xff]
    %v109 = vld [vmem:[%s0 + $0x130] sm:$0xff]
    %v110 = vld [vmem:[%s0 + $0x138] sm:$0xff]
    %v111 = vld [vmem:[%s0 + $0x140] sm:$0xff]
    %v112 = vld [vmem:[%s0 + $0x148] sm:$0xff]
    %v113 = vld [vmem:[%s0 + $0x150] sm:$0xff]
    %v114 = vld [vmem:[%s0 + $0x158] sm:$0xff]
    %v115 = vld [vmem:[%s0 + $0x160] sm:$0xff]
    %v116 = vld [vmem:[%s0 + $0x168] sm:$0xff]
    %v117 = vld [vmem:[%s0 + $0x170] sm:$0xff]
    %v118 = vld [vmem:[%s0 + $0x178] sm:$0xff]
    %v119 = vld [vmem:[%s0 + $0x180] sm:$0xff]
    %v120 = vld [vmem:[%s0 + $0x188] sm:$0xff]
    %v121 = vld [vmem:[%s0 + $0x190] sm:$0xff]
    %v122 = vld [vmem:[%s0 + $0x198] sm:$0xff]
    %v123 = vld [vmem:[%s0 + $0x1a0] sm:$0xff]
    %v124 = vld [vmem:[%s0 + $0x1a8] sm:$0xff]
    %v125 = vld [vmem:[%s0 + $0x1b0] sm:$0xff]
    %v126 = vld [vmem:[%s0 + $0x1b8] sm:$0xff]
    %v127 = vld [vmem:[%s0 + $0x1c0] sm:$0xff]
    %v128 = vld [vmem:[%s0 + $0x1c8] sm:$0xff]
    %v129 = vld [vmem:[%s0 + $0x1d0] sm:$0xff]
    %v130 = vld [vmem:[%s0 + $0x1d8] sm:$0xff]
    %v131 = vld [vmem:[%s0 + $0x1e0] sm:$0xff]
    %v132 = vld [vmem:[%s0 + $0x1e8] sm:$0xff]
    %v133 = vld [vmem:[%s0 + $0x1f0] sm:$0xff]
    %v134 = vld [vmem:[%s0 + $0x1f8] sm:$0xff]
    %v135 = vld [vmem:[%s0 + $0x200] sm:$0xff]
    %v136 = vld [vmem:[%s0 + $0x208] sm:$0xff]
    %v137 = vld [vmem:[%s0 + $0x210] sm:$0xff]
    %v138 = vld [vmem:[%s0 + $0x218] sm:$0xff]
    %v139 = vld [vmem:[%s0 + $0x220] sm:$0xff]
    %v140 = vld [vmem:[%s0 + $0x228] sm:$0xff]
    %v141 = vld [vmem:[%s0 + $0x230] sm:$0xff]
    %v142 = vld [vmem:[%s0 + $0x238] sm:$0xff]
    %v143 = vld [vmem:[%s0 + $0x240] sm:$0xff]
    %v144 = vld [vmem:[%s0 + $0x248] sm:$0xff]
    %v145 = vld [vmem:[%s0 + $0x250] sm:$0xff]
    %v146 = vld [vmem:[%s0 + $0x258] sm:$0xff]
    %v147 = vld [vmem:[%s0 + $0x260] sm:$0xff]
    %v148 = vld [vmem:[%s0 + $0x268] sm:$0xff]
    %v149 = vld [vmem:[%s0 + $0x270] sm:$0xff]
    %v150 = vld [vmem:[%s0 + $0x278] sm:$0xff]
    %v151 = vld [vmem:[%s0 + $0x280] sm:$0xff]
    %v152 = vld [vmem:[%s0 + $0x288] sm:$0xff]
    %v153 = vld [vmem:[%s0 + $0x290] sm:$0xff]
    %v154 = vld [vmem:[%s0 + $0x298] sm:$0xff]
    %v155 = vld [vmem:[%s0 + $0x2a0] sm:$0xff]
    %v156 = vld [vmem:[%s0 + $0x2a8] sm:$0xff]
    %v157 = vld [vmem:[%s0 + $0x2b0] sm:$0xff]
    %v158 = vld [vmem:[%s0 + $0x2b8] sm:$0xff]
    %v159 = vld [vmem:[%s0 + $0x2c0] sm:$0xff]
    %v160 = vld [vmem:[%s0 + $0x2c8] sm:$0xff]
    %v161 = vld [vmem:[%s0 + $0x2d0] sm:$0xff]
    %v162 = vld [vmem:[%s0 + $0x2d8] sm:$0xff]
    %v163 = vld [vmem:[%s0 + $0x2e0] sm:$0xff]
    %v164 = vld [vmem:[%s0 + $0x2e8] sm:$0xff]
    %v165 = vld [vmem:[%s0 + $0x2f0] sm:$0xff]
    %v166 = vld [vmem:[%s0 + $0x2f8] sm:$0xff]
    %v167 = vld [vmem:[%s0 + $0x300] sm:$0xff]
    %v168 = vld [vmem:[%s0 + $0x308] sm:$0xff]
    %v169 = vld [vmem:[%s0 + $0x310] sm:$0xff]
    %v170 = vld [vmem:[%s0 + $0x318] sm:$0xff]
    %v171 = vld [vmem:[%s0 + $0x320] sm:$0xff]
    %v172 = vld [vmem:[%s0 + $0x328] sm:$0xff]
    %v173 = vld [vmem:[%s0 + $0x330] sm:$0xff]
    %v174 = vld [vmem:[%s0 + $0x338] sm:$0xff]
    %v175 = vld [vmem:[%s0 + $0x340] sm:$0xff]
    %v176 = vld [vmem:[%s0 + $0x348] sm:$0xff]
    %v177 = vld [vmem:[%s0 + $0x350] sm:$0xff]
    %v178 = vld [vmem:[%s0 + $0x358] sm:$0xff]
    %v179 = vld [vmem:[%s0 + $0x360] sm:$0xff]
    %v180 = vld [vmem:[%s0 + $0x368] sm:$0xff]
    %v181 = vld [vmem:[%s0 + $0x370] sm:$0xff]
    %v182 = vld [vmem:[%s0 + $0x378] sm:$0xff]
    %v183 = vld [vmem:[%s0 + $0x380] sm:$0xff]
    %v184 = vld [vmem:[%s0 + $0x388] sm:$0xff]
    %v185 = vld [vmem:[%s0 + $0x390] sm:$0x3]
    %v186 = vld [vmem:[%s0 + $0x398] sm:$0x3]
    %v187 = vld [vmem:[%s0 + $0x3a0] sm:$0x3]
    %v188 = vld [vmem:[%s0 + $0x3a8] sm:$0x3]
    %v189 = vld [vmem:[%s0 + $0x3b0] sm:$0x3]
    %v190 = vld [vmem:[%s0 + $0x3b8] sm:$0x3]
    %v191 = vld [vmem:[#allocation2] sm:$0xff]
    %v192 = vld [vmem:[#allocation2 + $0x8] sm:$0xff]
    %v193 = vld [vmem:[#allocation2 + $0x10] sm:$0xff]
    %v194 = vld [vmem:[#allocation2 + $0x18] sm:$0xff]
    %v195 = vld [vmem:[#allocation2 + $0x20] sm:$0xff]
    %v196 = vld [vmem:[#allocation2 + $0x28] sm:$0xff]
    %v197 = vld [vmem:[#allocation2 + $0x30] sm:$0xff]
    %v198 = vld [vmem:[#allocation2 + $0x38] sm:$0xff]
    %v199 = vld [vmem:[#allocation2 + $0x40] sm:$0xff]
    %v200 = vld [vmem:[#allocation2 + $0x48] sm:$0xff]
    %v201 = vld [vmem:[#allocation2 + $0x50] sm:$0xff]
    %v202 = vld [vmem:[#allocation2 + $0x58] sm:$0xff]
    %v203 = vld [vmem:[#allocation2 + $0x60] sm:$0xff]
    %v204 = vld [vmem:[#allocation2 + $0x68] sm:$0xff]
    %v205 = vld [vmem:[#allocation2 + $0x70] sm:$0xff]
    %v206 = vld [vmem:[#allocation2 + $0x78] sm:$0xff]
    %v207 = vld [vmem:[#allocation2 + $0x80] sm:$0xff]
    %v208 = vld [vmem:[#allocation2 + $0x88] sm:$0xff]
    %v209 = vld [vmem:[#allocation2 + $0x90] sm:$0xff]
    %v210 = vld [vmem:[#allocation2 + $0x98] sm:$0xff]
    %v211 = vld [vmem:[#allocation2 + $0xa0] sm:$0xff]
    %v212 = vld [vmem:[#allocation2 + $0xa8] sm:$0xff]
    %v213 = vld [vmem:[#allocation2 + $0xb0] sm:$0xff]
    %v214 = vld [vmem:[#allocation2 + $0xb8] sm:$0xff]
    %v215 = vld [vmem:[#allocation2 + $0xc0] sm:$0xff]
    %v216 = vld [vmem:[#allocation2 + $0xc8] sm:$0xff]
    %v217 = vld [vmem:[#allocation2 + $0xd0] sm:$0xff]
    %v218 = vld [vmem:[#allocation2 + $0xd8] sm:$0xff]
    %v219 = vld [vmem:[#allocation2 + $0xe0] sm:$0xff]
    %v220 = vld [vmem:[#allocation2 + $0xe8] sm:$0xff]
    %v221 = vld [vmem:[#allocation2 + $0xf0] sm:$0xff]
    %v222 = vld [vmem:[#allocation2 + $0xf8] sm:$0xff]
    %v223 = vld [vmem:[#allocation2 + $0x100] sm:$0xff]
    %v224 = vld [vmem:[#allocation2 + $0x108] sm:$0xff]
    %v225 = vld [vmem:[#allocation2 + $0x110] sm:$0xff]
    %v226 = vld [vmem:[#allocation2 + $0x118] sm:$0xff]
    %v227 = vld [vmem:[#allocation2 + $0x120] sm:$0xff]
    %v228 = vld [vmem:[#allocation2 + $0x128] sm:$0xff]
    %v229 = vld [vmem:[#allocation2 + $0x130] sm:$0xff]
    %v230 = vld [vmem:[#allocation2 + $0x138] sm:$0xff]
    %v231 = vld [vmem:[#allocation2 + $0x140] sm:$0xff]
    %v232 = vld [vmem:[#allocation2 + $0x148] sm:$0xff]
    %v233 = vld [vmem:[#allocation2 + $0x150] sm:$0xff]
    %v234 = vld [vmem:[#allocation2 + $0x158] sm:$0xff]
    %v235 = vld [vmem:[#allocation2 + $0x160] sm:$0xff]
    %v236 = vld [vmem:[#allocation2 + $0x168] sm:$0xff]
    %v237 = vld [vmem:[#allocation2 + $0x170] sm:$0xff]
    %v238 = vld [vmem:[#allocation2 + $0x178] sm:$0xff]
    %v239 = vld [vmem:[#allocation2 + $0x180] sm:$0xff]
    %v240 = vld [vmem:[#allocation2 + $0x188] sm:$0xff]
    %v241 = vld [vmem:[#allocation2 + $0x190] sm:$0xff]
    %v242 = vld [vmem:[#allocation2 + $0x198] sm:$0xff]
    %v243 = vld [vmem:[#allocation2 + $0x1a0] sm:$0xff]
    %v244 = vld [vmem:[#allocation2 + $0x1a8] sm:$0xff]
    %v245 = vld [vmem:[#allocation2 + $0x1b0] sm:$0xff]
    %v246 = vld [vmem:[#allocation2 + $0x1b8] sm:$0xff]
    %v247 = vld [vmem:[#allocation2 + $0x1c0] sm:$0xff]
    %v248 = vld [vmem:[#allocation2 + $0x1c8] sm:$0xff]
    %v249 = vld [vmem:[#allocation2 + $0x1d0] sm:$0xff]
    %v250 = vld [vmem:[#allocation2 + $0x1d8] sm:$0xff]
    %v251 = vld [vmem:[#allocation2 + $0x1e0] sm:$0xff]
    %v252 = vld [vmem:[#allocation2 + $0x1e8] sm:$0xff]
    %v253 = vld [vmem:[#allocation2 + $0x1f0] sm:$0xff]
    %v254 = vld [vmem:[#allocation2 + $0x1f8] sm:$0xff]
    %v255 = vld [vmem:[#allocation2 + $0x200] sm:$0xff]
    %v256 = vld [vmem:[#allocation2 + $0x208] sm:$0xff]
    %v257 = vld [vmem:[#allocation2 + $0x210] sm:$0xff]
    %v258 = vld [vmem:[#allocation2 + $0x218] sm:$0xff]
    %v259 = vld [vmem:[#allocation2 + $0x220] sm:$0xff]
    %v260 = vld [vmem:[#allocation2 + $0x228] sm:$0xff]
    %v261 = vld [vmem:[#allocation2 + $0x230] sm:$0xff]
    %v262 = vld [vmem:[#allocation2 + $0x238] sm:$0xff]
    %v263 = vld [vmem:[#allocation2 + $0x240] sm:$0xff]
    %v264 = vld [vmem:[#allocation2 + $0x248] sm:$0xff]
    %v265 = vld [vmem:[#allocation2 + $0x250] sm:$0xff]
    %v266 = vld [vmem:[#allocation2 + $0x258] sm:$0xff]
    %v267 = vld [vmem:[#allocation2 + $0x260] sm:$0xff]
    %v268 = vld [vmem:[#allocation2 + $0x268] sm:$0xff]
    %v269 = vld [vmem:[#allocation2 + $0x270] sm:$0xff]
    %v270 = vld [vmem:[#allocation2 + $0x278] sm:$0xff]
    %v271 = vld [vmem:[#allocation2 + $0x280] sm:$0xff]
    %v272 = vld [vmem:[#allocation2 + $0x288] sm:$0xff]
    %v273 = vld [vmem:[#allocation2 + $0x290] sm:$0xff]
    %v274 = vld [vmem:[#allocation2 + $0x298] sm:$0xff]
    %v275 = vld [vmem:[#allocation2 + $0x2a0] sm:$0xff]
    %v276 = vld [vmem:[#allocation2 + $0x2a8] sm:$0xff]
    %v277 = vld [vmem:[#allocation2 + $0x2b0] sm:$0xff]
    %v278 = vld [vmem:[#allocation2 + $0x2b8] sm:$0xff]
    %v279 = vld [vmem:[#allocation2 + $0x2c0] sm:$0xff]
    %v280 = vld [vmem:[#allocation2 + $0x2c8] sm:$0xff]
    %v281 = vld [vmem:[#allocation2 + $0x2d0] sm:$0xff]
    %v282 = vld [vmem:[#allocation2 + $0x2d8] sm:$0xff]
    %v283 = vld [vmem:[#allocation2 + $0x2e0] sm:$0xff]
    %v284 = vld [vmem:[#allocation2 + $0x2e8] sm:$0xff]
    %v285 = vld [vmem:[#allocation2 + $0x2f0] sm:$0xff]
    %v286 = vld [vmem:[#allocation2 + $0x2f8] sm:$0xff]
    %v287 = vld [vmem:[#allocation2 + $0x300] sm:$0xff]
    %v288 = vld [vmem:[#allocation2 + $0x308] sm:$0xff]
    %v289 = vld [vmem:[#allocation2 + $0x310] sm:$0xff]
    %v290 = vld [vmem:[#allocation2 + $0x318] sm:$0xff]
    %v291 = vld [vmem:[#allocation2 + $0x320] sm:$0xff]
    %v292 = vld [vmem:[#allocation2 + $0x328] sm:$0xff]
    %v293 = vld [vmem:[#allocation2 + $0x330] sm:$0xff]
    %v294 = vld [vmem:[#allocation2 + $0x338] sm:$0xff]
    %v295 = vld [vmem:[#allocation2 + $0x340] sm:$0xff]
    %v296 = vld [vmem:[#allocation2 + $0x348] sm:$0xff]
    %v297 = vld [vmem:[#allocation2 + $0x350] sm:$0xff]
    %v298 = vld [vmem:[#allocation2 + $0x358] sm:$0xff]
    %v299 = vld [vmem:[#allocation2 + $0x360] sm:$0xff]
    %v300 = vld [vmem:[#allocation2 + $0x368] sm:$0xff]
    %v301 = vld [vmem:[#allocation2 + $0x370] sm:$0xff]
    %v302 = vld [vmem:[#allocation2 + $0x378] sm:$0xff]
    %v303 = vld [vmem:[#allocation2 + $0x380] sm:$0xff]
    %v304 = vld [vmem:[#allocation2 + $0x388] sm:$0xff]
    %v305 = vld [vmem:[#allocation2 + $0x390] sm:$0xff]
    %v306 = vld [vmem:[#allocation2 + $0x398] sm:$0xff]
    %v307 = vld [vmem:[#allocation2 + $0x3a0] sm:$0xff]
    %v308 = vld [vmem:[#allocation2 + $0x3a8] sm:$0xff]
    %v309 = vld [vmem:[#allocation2 + $0x3b0] sm:$0xff]
    %v310 = vld [vmem:[#allocation2 + $0x3b8] sm:$0xff]
    %v311 = vld [vmem:[#allocation2 + $0x3c0] sm:$0xff]
    %v312 = vld [vmem:[#allocation2 + $0x3c8] sm:$0xff]
    %v313 = vld [vmem:[#allocation2 + $0x3d0] sm:$0xff]
    %v314 = vld [vmem:[#allocation2 + $0x3d8] sm:$0xff]
    %v315 = vld [vmem:[#allocation2 + $0x3e0] sm:$0xff]
    %v316 = vld [vmem:[#allocation2 + $0x3e8] sm:$0xff]
    %v317 = vld [vmem:[#allocation2 + $0x3f0] sm:$0xff]
    %v318 = vld [vmem:[#allocation2 + $0x3f8] sm:$0xff]
    %v319 = vld [vmem:[#allocation2 + $0x400] sm:$0xff]
    %v320 = vld [vmem:[#allocation2 + $0x408] sm:$0xff]
    %v321 = vld [vmem:[#allocation2 + $0x410] sm:$0xff]
    %v322 = vld [vmem:[#allocation2 + $0x418] sm:$0xff]
    %v323 = vld [vmem:[#allocation2 + $0x420] sm:$0xff]
    %v324 = vld [vmem:[#allocation2 + $0x428] sm:$0xff]
    %v325 = vld [vmem:[#allocation2 + $0x430] sm:$0xff]
    %v326 = vld [vmem:[#allocation2 + $0x438] sm:$0xff]
    %v327 = vld [vmem:[#allocation2 + $0x440] sm:$0xff]
    %v328 = vld [vmem:[#allocation2 + $0x448] sm:$0xff]
    %v329 = vld [vmem:[#allocation2 + $0x450] sm:$0xff]
    %v330 = vld [vmem:[#allocation2 + $0x458] sm:$0xff]
    %v331 = vld [vmem:[#allocation2 + $0x460] sm:$0xff]
    %v332 = vld [vmem:[#allocation2 + $0x468] sm:$0xff]
    %v333 = vld [vmem:[#allocation2 + $0x470] sm:$0xff]
    %v334 = vld [vmem:[#allocation2 + $0x478] sm:$0xff]
    %v335 = vld [vmem:[#allocation2 + $0x480] sm:$0xff]
    %v336 = vld [vmem:[#allocation2 + $0x488] sm:$0xff]
    %v337 = vld [vmem:[#allocation2 + $0x490] sm:$0xff]
    %v338 = vld [vmem:[#allocation2 + $0x498] sm:$0xff]
    %v339 = vld [vmem:[#allocation2 + $0x4a0] sm:$0xff]
    %v340 = vld [vmem:[#allocation2 + $0x4a8] sm:$0xff]
    %v341 = vld [vmem:[#allocation2 + $0x4b0] sm:$0xff]
    %v342 = vld [vmem:[#allocation2 + $0x4b8] sm:$0xff]
    %v343 = vld [vmem:[#allocation2 + $0x4c0] sm:$0xff]
    %v344 = vld [vmem:[#allocation2 + $0x4c8] sm:$0xff]
    %v345 = vld [vmem:[#allocation2 + $0x4d0] sm:$0xff]
    %v346 = vld [vmem:[#allocation2 + $0x4d8] sm:$0xff]
    %v347 = vld [vmem:[#allocation2 + $0x4e0] sm:$0xff]
    %v348 = vld [vmem:[#allocation2 + $0x4e8] sm:$0xff]
    %v349 = vld [vmem:[#allocation2 + $0x4f0] sm:$0xff]
    %v350 = vld [vmem:[#allocation2 + $0x4f8] sm:$0xff]
    %v351 = vld [vmem:[#allocation2 + $0x500] sm:$0xff]
    %v352 = vld [vmem:[#allocation2 + $0x508] sm:$0xff]
    %v353 = vld [vmem:[#allocation2 + $0x510] sm:$0xff]
    %v354 = vld [vmem:[#allocation2 + $0x518] sm:$0xff]
    %v355 = vld [vmem:[#allocation2 + $0x520] sm:$0xff]
    %v356 = vld [vmem:[#allocation2 + $0x528] sm:$0xff]
    %v357 = vld [vmem:[#allocation2 + $0x530] sm:$0xff]
    %v358 = vld [vmem:[#allocation2 + $0x538] sm:$0xff]
    %v359 = vld [vmem:[#allocation2 + $0x540] sm:$0xff]
    %v360 = vld [vmem:[#allocation2 + $0x548] sm:$0xff]
    %v361 = vld [vmem:[#allocation2 + $0x550] sm:$0xff]
    %v362 = vld [vmem:[#allocation2 + $0x558] sm:$0xff]
    %v363 = vld [vmem:[#allocation2 + $0x560] sm:$0xff]
    %v364 = vld [vmem:[#allocation2 + $0x568] sm:$0xff]
    %v365 = vld [vmem:[#allocation2 + $0x570] sm:$0xff]
    %v366 = vld [vmem:[#allocation2 + $0x578] sm:$0xff]
    %v367 = vld [vmem:[#allocation2 + $0x580] sm:$0xff]
    %v368 = vld [vmem:[#allocation2 + $0x588] sm:$0xff]
    %v369 = vld [vmem:[#allocation2 + $0x590] sm:$0xff]
    %v370 = vld [vmem:[#allocation2 + $0x598] sm:$0xff]
    %v371 = vld [vmem:[#allocation2 + $0x5a0] sm:$0xff]
    %v372 = vld [vmem:[#allocation2 + $0x5a8] sm:$0xff]
    %v373 = vld [vmem:[#allocation2 + $0x5b0] sm:$0xff]
    %v374 = vld [vmem:[#allocation2 + $0x5b8] sm:$0xff]
    %v375 = vld [vmem:[#allocation2 + $0x5c0] sm:$0xff]
    %v376 = vld [vmem:[#allocation2 + $0x5c8] sm:$0xff]
    %v377 = vld [vmem:[#allocation2 + $0x5d0] sm:$0xff]
    %v378 = vld [vmem:[#allocation2 + $0x5d8] sm:$0xff]
    %v379 = vld [vmem:[#allocation2 + $0x5e0] sm:$0xff]
    %v380 = vld [vmem:[#allocation2 + $0x5e8] sm:$0xff]
    %v381 = vld [vmem:[#allocation2 + $0x5f0] sm:$0xff]
    %v382 = vld [vmem:[#allocation2 + $0x5f8] sm:$0xff]
    %v383 = vld [vmem:[#allocation4] sm:$0x3]
    %v385 = vlaneseq
    %v386 = vshrl.u32 %v385, 7
    %v387 = vsub.s32 0, %v386
    %v388 = vrot.slane %v383, %v387
    %v389 = vlaneseq
    %v390 = vshrl.u32 %v389, 7
    %v391 = vsub.s32 1, %v390
    %v392 = vrot.slane %v383, %v391
    %395 = vmatprep.subr.mxu0 %v222
    %396 = vmatpush1.msra.mxu0 %v221
    %397 = vmatprep.subr.mxu0 %v220
    %398 = vmatpush1.msra.mxu0 %v219
    %399 = vmatprep.subr.mxu0 %v218
    %400 = vmatpush1.msra.mxu0 %v217
    %401 = vmatprep.subr.mxu0 %v216
    %402 = vmatpush1.msra.mxu0 %v215
    %403 = vmatprep.subr.mxu0 %v214
    %404 = vmatpush1.msra.mxu0 %v213
    %405 = vmatprep.subr.mxu0 %v212
    %406 = vmatpush1.msra.mxu0 %v211
    %407 = vmatprep.subr.mxu0 %v210
    %408 = vmatpush1.msra.mxu0 %v209
    %409 = vmatprep.subr.mxu0 %v208
    %410 = vmatpush1.msra.mxu0 %v207
    %411 = vmatprep.subr.mxu0 %v206
    %412 = vmatpush1.msra.mxu0 %v205
    %413 = vmatprep.subr.mxu0 %v204
    %414 = vmatpush1.msra.mxu0 %v203
    %415 = vmatprep.subr.mxu0 %v202
    %416 = vmatpush1.msra.mxu0 %v201
    %417 = vmatprep.subr.mxu0 %v200
    %418 = vmatpush1.msra.mxu0 %v199
    %419 = vmatprep.subr.mxu0 %v198
    %420 = vmatpush1.msra.mxu0 %v197
    %421 = vmatprep.subr.mxu0 %v196
    %422 = vmatpush1.msra.mxu0 %v195
    %423 = vmatprep.subr.mxu0 %v194
    %424 = vmatpush1.msra.mxu0 %v193
    %425 = vmatprep.subr.mxu0 %v192
    %426 = vmatpush1.msra.mxu0 %v191
    %427 = vmatprep.subr.mxu0 %v254
    %428 = vmatpush2.msra.mxu0 %v253
    %429 = vmatprep.subr.mxu0 %v252
    %430 = vmatpush2.msra.mxu0 %v251
    %431 = vmatprep.subr.mxu0 %v250
    %432 = vmatpush2.msra.mxu0 %v249
    %433 = vmatprep.subr.mxu0 %v248
    %434 = vmatpush2.msra.mxu0 %v247
    %435 = vmatprep.subr.mxu0 %v246
    %436 = vmatpush2.msra.mxu0 %v245
    %437 = vmatprep.subr.mxu0 %v244
    %438 = vmatpush2.msra.mxu0 %v243
    %439 = vmatprep.subr.mxu0 %v242
    %440 = vmatpush2.msra.mxu0 %v241
    %441 = vmatprep.subr.mxu0 %v240
    %442 = vmatpush2.msra.mxu0 %v239
    %443 = vmatprep.subr.mxu0 %v238
    %444 = vmatpush2.msra.mxu0 %v237
    %445 = vmatprep.subr.mxu0 %v236
    %446 = vmatpush2.msra.mxu0 %v235
    %447 = vmatprep.subr.mxu0 %v234
    %448 = vmatpush2.msra.mxu0 %v233
    %449 = vmatprep.subr.mxu0 %v232
    %450 = vmatpush2.msra.mxu0 %v231
    %451 = vmatprep.subr.mxu0 %v230
    %452 = vmatpush2.msra.mxu0 %v229
    %453 = vmatprep.subr.mxu0 %v228
    %454 = vmatpush2.msra.mxu0 %v227
    %455 = vmatprep.subr.mxu0 %v226
    %456 = vmatpush2.msra.mxu0 %v225
    %457 = vmatprep.subr.mxu0 %v224
    %458 = vmatpush2.msra.mxu0 %v223
    %459 = vmatprep.mubr.f32.mxu0 %v72
    %460 = vmatmul.mubr.f32.gmra.mxu0 %v71
    %v461 = vpop.f32.mrf.mxu0
    %v462 = vadd.f32 %v388, %v461
    %v463 = vpop.f32.mrf.mxu0
    %v464 = vadd.f32 %v392, %v463
    %465 = vmatprep.mubr.f32.mxu0 %v78
    %466 = vmatmul.mubr.f32.gmra.mxu0 %v77
    %v467 = vpop.f32.mrf.mxu0
    %v468 = vadd.f32 %v388, %v467
    %v469 = vpop.f32.mrf.mxu0
    %v470 = vadd.f32 %v392, %v469
    %471 = vmatprep.mubr.f32.mxu0 %v84
    %472 = vmatmul.mubr.f32.gmra.mxu0 %v83
    %v473 = vpop.f32.mrf.mxu0
    %v474 = vadd.f32 %v388, %v473
    %v475 = vpop.f32.mrf.mxu0
    %v476 = vadd.f32 %v392, %v475
    %477 = vmatprep.mubr.f32.mxu0 %v90
    %478 = vmatmul.mubr.f32.gmra.mxu0 %v89
    %v479 = vpop.f32.mrf.mxu0
    %v480 = vadd.f32 %v388, %v479
    %v481 = vpop.f32.mrf.mxu0
    %v482 = vadd.f32 %v392, %v481
    %483 = vmatprep.mubr.f32.mxu0 %v96
    %484 = vmatmul.mubr.f32.gmra.mxu0 %v95
    %v485 = vpop.f32.mrf.mxu0
    %v486 = vadd.f32 %v388, %v485
    %v487 = vpop.f32.mrf.mxu0
    %v488 = vadd.f32 %v392, %v487
    %489 = vmatprep.mubr.f32.mxu0 %v102
    %490 = vmatmul.mubr.f32.gmra.mxu0 %v101
    %v491 = vpop.f32.mrf.mxu0
    %v492 = vadd.f32 %v388, %v491
    %v493 = vpop.f32.mrf.mxu0
    %v494 = vadd.f32 %v392, %v493
    %495 = vmatprep.mubr.f32.mxu0 %v108
    %496 = vmatmul.mubr.f32.gmra.mxu0 %v107
    %v497 = vpop.f32.mrf.mxu0
    %v498 = vadd.f32 %v388, %v497
    %v499 = vpop.f32.mrf.mxu0
    %v500 = vadd.f32 %v392, %v499
    %501 = vmatprep.mubr.f32.mxu0 %v114
    %502 = vmatmul.mubr.f32.gmra.mxu0 %v113
    %v503 = vpop.f32.mrf.mxu0
    %v504 = vadd.f32 %v388, %v503
    %v505 = vpop.f32.mrf.mxu0
    %v506 = vadd.f32 %v392, %v505
    %507 = vmatprep.mubr.f32.mxu0 %v120
    %508 = vmatmul.mubr.f32.gmra.mxu0 %v119
    %v509 = vpop.f32.mrf.mxu0
    %v510 = vadd.f32 %v388, %v509
    %v511 = vpop.f32.mrf.mxu0
    %v512 = vadd.f32 %v392, %v511
    %513 = vmatprep.mubr.f32.mxu0 %v126
    %514 = vmatmul.mubr.f32.gmra.mxu0 %v125
    %v515 = vpop.f32.mrf.mxu0
    %v516 = vadd.f32 %v388, %v515
    %v517 = vpop.f32.mrf.mxu0
    %v518 = vadd.f32 %v392, %v517
    %519 = vmatprep.mubr.f32.mxu0 %v132
    %520 = vmatmul.mubr.f32.gmra.mxu0 %v131
    %v521 = vpop.f32.mrf.mxu0
    %v522 = vadd.f32 %v388, %v521
    %v523 = vpop.f32.mrf.mxu0
    %v524 = vadd.f32 %v392, %v523
    %525 = vmatprep.mubr.f32.mxu0 %v138
    %526 = vmatmul.mubr.f32.gmra.mxu0 %v137
    %v527 = vpop.f32.mrf.mxu0
    %v528 = vadd.f32 %v388, %v527
    %v529 = vpop.f32.mrf.mxu0
    %v530 = vadd.f32 %v392, %v529
    %531 = vmatprep.mubr.f32.mxu0 %v144
    %532 = vmatmul.mubr.f32.gmra.mxu0 %v143
    %v533 = vpop.f32.mrf.mxu0
    %v534 = vadd.f32 %v388, %v533
    %v535 = vpop.f32.mrf.mxu0
    %v536 = vadd.f32 %v392, %v535
    %537 = vmatprep.mubr.f32.mxu0 %v150
    %538 = vmatmul.mubr.f32.gmra.mxu0 %v149
    %v539 = vpop.f32.mrf.mxu0
    %v540 = vadd.f32 %v388, %v539
    %v541 = vpop.f32.mrf.mxu0
    %v542 = vadd.f32 %v392, %v541
    %543 = vmatprep.mubr.f32.mxu0 %v156
    %544 = vmatmul.mubr.f32.gmra.mxu0 %v155
    %v545 = vpop.f32.mrf.mxu0
    %v546 = vadd.f32 %v388, %v545
    %v547 = vpop.f32.mrf.mxu0
    %v548 = vadd.f32 %v392, %v547
    %549 = vmatprep.mubr.f32.mxu0 %v162
    %550 = vmatmul.mubr.f32.gmra.mxu0 %v161
    %v551 = vpop.f32.mrf.mxu0
    %v552 = vadd.f32 %v388, %v551
    %v553 = vpop.f32.mrf.mxu0
    %v554 = vadd.f32 %v392, %v553
    %555 = vmatprep.mubr.f32.mxu0 %v168
    %556 = vmatmul.mubr.f32.gmra.mxu0 %v167
    %v557 = vpop.f32.mrf.mxu0
    %v558 = vadd.f32 %v388, %v557
    %v559 = vpop.f32.mrf.mxu0
    %v560 = vadd.f32 %v392, %v559
    %561 = vmatprep.mubr.f32.mxu0 %v174
    %562 = vmatmul.mubr.f32.gmra.mxu0 %v173
    %v563 = vpop.f32.mrf.mxu0
    %v564 = vadd.f32 %v388, %v563
    %v565 = vpop.f32.mrf.mxu0
    %v566 = vadd.f32 %v392, %v565
    %567 = vmatprep.mubr.f32.mxu0 %v180
    %568 = vmatmul.mubr.f32.gmra.mxu0 %v179
    %v569 = vpop.f32.mrf.mxu0
    %v570 = vadd.f32 %v388, %v569
    %v571 = vpop.f32.mrf.mxu0
    %v572 = vadd.f32 %v392, %v571
    %573 = vmatprep.mubr.f32.mxu0 %v186
    %574 = vmatmul.mubr.f32.gmra.mxu0 %v185
    %v575 = vpop.f32.mrf.mxu0
    %v576 = vadd.f32 %v388, %v575
    %v577 = vpop.f32.mrf.mxu0
    %v578 = vadd.f32 %v392, %v577
    %579 = vdwg.mxu0
    %580 = vmatprep.subr.mxu0 %v286
    %581 = vmatpush1.msra.mxu0 %v285
    %582 = vmatprep.subr.mxu0 %v284
    %583 = vmatpush1.msra.mxu0 %v283
    %584 = vmatprep.subr.mxu0 %v282
    %585 = vmatpush1.msra.mxu0 %v281
    %586 = vmatprep.subr.mxu0 %v280
    %587 = vmatpush1.msra.mxu0 %v279
    %588 = vmatprep.subr.mxu0 %v278
    %589 = vmatpush1.msra.mxu0 %v277
    %590 = vmatprep.subr.mxu0 %v276
    %591 = vmatpush1.msra.mxu0 %v275
    %592 = vmatprep.subr.mxu0 %v274
    %593 = vmatpush1.msra.mxu0 %v273
    %594 = vmatprep.subr.mxu0 %v272
    %595 = vmatpush1.msra.mxu0 %v271
    %596 = vmatprep.subr.mxu0 %v270
    %597 = vmatpush1.msra.mxu0 %v269
    %598 = vmatprep.subr.mxu0 %v268
    %599 = vmatpush1.msra.mxu0 %v267
    %600 = vmatprep.subr.mxu0 %v266
    %601 = vmatpush1.msra.mxu0 %v265
    %602 = vmatprep.subr.mxu0 %v264
    %603 = vmatpush1.msra.mxu0 %v263
    %604 = vmatprep.subr.mxu0 %v262
    %605 = vmatpush1.msra.mxu0 %v261
    %606 = vmatprep.subr.mxu0 %v260
    %607 = vmatpush1.msra.mxu0 %v259
    %608 = vmatprep.subr.mxu0 %v258
    %609 = vmatpush1.msra.mxu0 %v257
    %610 = vmatprep.subr.mxu0 %v256
    %611 = vmatpush1.msra.mxu0 %v255
    %612 = vmatprep.subr.mxu0 %v318
    %613 = vmatpush2.msra.mxu0 %v317
    %614 = vmatprep.subr.mxu0 %v316
    %615 = vmatpush2.msra.mxu0 %v315
    %616 = vmatprep.subr.mxu0 %v314
    %617 = vmatpush2.msra.mxu0 %v313
    %618 = vmatprep.subr.mxu0 %v312
    %619 = vmatpush2.msra.mxu0 %v311
    %620 = vmatprep.subr.mxu0 %v310
    %621 = vmatpush2.msra.mxu0 %v309
    %622 = vmatprep.subr.mxu0 %v308
    %623 = vmatpush2.msra.mxu0 %v307
    %624 = vmatprep.subr.mxu0 %v306
    %625 = vmatpush2.msra.mxu0 %v305
    %626 = vmatprep.subr.mxu0 %v304
    %627 = vmatpush2.msra.mxu0 %v303
    %628 = vmatprep.subr.mxu0 %v302
    %629 = vmatpush2.msra.mxu0 %v301
    %630 = vmatprep.subr.mxu0 %v300
    %631 = vmatpush2.msra.mxu0 %v299
    %632 = vmatprep.subr.mxu0 %v298
    %633 = vmatpush2.msra.mxu0 %v297
    %634 = vmatprep.subr.mxu0 %v296
    %635 = vmatpush2.msra.mxu0 %v295
    %636 = vmatprep.subr.mxu0 %v294
    %637 = vmatpush2.msra.mxu0 %v293
    %638 = vmatprep.subr.mxu0 %v292
    %639 = vmatpush2.msra.mxu0 %v291
    %640 = vmatprep.subr.mxu0 %v290
    %641 = vmatpush2.msra.mxu0 %v289
    %642 = vmatprep.subr.mxu0 %v288
    %643 = vmatpush2.msra.mxu0 %v287
    %644 = vmatprep.mubr.f32.mxu0 %v74
    %645 = vmatmul.mubr.f32.gmra.mxu0 %v73
    %v646 = vpop.f32.mrf.mxu0
    %v647 = vadd.f32 %v462, %v646
    %v648 = vpop.f32.mrf.mxu0
    %v649 = vadd.f32 %v464, %v648
    %650 = vmatprep.mubr.f32.mxu0 %v80
    %651 = vmatmul.mubr.f32.gmra.mxu0 %v79
    %v652 = vpop.f32.mrf.mxu0
    %v653 = vadd.f32 %v468, %v652
    %v654 = vpop.f32.mrf.mxu0
    %v655 = vadd.f32 %v470, %v654
    %656 = vmatprep.mubr.f32.mxu0 %v86
    %657 = vmatmul.mubr.f32.gmra.mxu0 %v85
    %v658 = vpop.f32.mrf.mxu0
    %v659 = vadd.f32 %v474, %v658
    %v660 = vpop.f32.mrf.mxu0
    %v661 = vadd.f32 %v476, %v660
    %662 = vmatprep.mubr.f32.mxu0 %v92
    %663 = vmatmul.mubr.f32.gmra.mxu0 %v91
    %v664 = vpop.f32.mrf.mxu0
    %v665 = vadd.f32 %v480, %v664
    %v666 = vpop.f32.mrf.mxu0
    %v667 = vadd.f32 %v482, %v666
    %668 = vmatprep.mubr.f32.mxu0 %v98
    %669 = vmatmul.mubr.f32.gmra.mxu0 %v97
    %v670 = vpop.f32.mrf.mxu0
    %v671 = vadd.f32 %v486, %v670
    %v672 = vpop.f32.mrf.mxu0
    %v673 = vadd.f32 %v488, %v672
    %674 = vmatprep.mubr.f32.mxu0 %v104
    %675 = vmatmul.mubr.f32.gmra.mxu0 %v103
    %v676 = vpop.f32.mrf.mxu0
    %v677 = vadd.f32 %v492, %v676
    %v678 = vpop.f32.mrf.mxu0
    %v679 = vadd.f32 %v494, %v678
    %680 = vmatprep.mubr.f32.mxu0 %v110
    %681 = vmatmul.mubr.f32.gmra.mxu0 %v109
    %v682 = vpop.f32.mrf.mxu0
    %v683 = vadd.f32 %v498, %v682
    %v684 = vpop.f32.mrf.mxu0
    %v685 = vadd.f32 %v500, %v684
    %686 = vmatprep.mubr.f32.mxu0 %v116
    %687 = vmatmul.mubr.f32.gmra.mxu0 %v115
    %v688 = vpop.f32.mrf.mxu0
    %v689 = vadd.f32 %v504, %v688
    %v690 = vpop.f32.mrf.mxu0
    %v691 = vadd.f32 %v506, %v690
    %692 = vmatprep.mubr.f32.mxu0 %v122
    %693 = vmatmul.mubr.f32.gmra.mxu0 %v121
    %v694 = vpop.f32.mrf.mxu0
    %v695 = vadd.f32 %v510, %v694
    %v696 = vpop.f32.mrf.mxu0
    %v697 = vadd.f32 %v512, %v696
    %698 = vmatprep.mubr.f32.mxu0 %v128
    %699 = vmatmul.mubr.f32.gmra.mxu0 %v127
    %v700 = vpop.f32.mrf.mxu0
    %v701 = vadd.f32 %v516, %v700
    %v702 = vpop.f32.mrf.mxu0
    %v703 = vadd.f32 %v518, %v702
    %704 = vmatprep.mubr.f32.mxu0 %v134
    %705 = vmatmul.mubr.f32.gmra.mxu0 %v133
    %v706 = vpop.f32.mrf.mxu0
    %v707 = vadd.f32 %v522, %v706
    %v708 = vpop.f32.mrf.mxu0
    %v709 = vadd.f32 %v524, %v708
    %710 = vmatprep.mubr.f32.mxu0 %v140
    %711 = vmatmul.mubr.f32.gmra.mxu0 %v139
    %v712 = vpop.f32.mrf.mxu0
    %v713 = vadd.f32 %v528, %v712
    %v714 = vpop.f32.mrf.mxu0
    %v715 = vadd.f32 %v530, %v714
    %716 = vmatprep.mubr.f32.mxu0 %v146
    %717 = vmatmul.mubr.f32.gmra.mxu0 %v145
    %v718 = vpop.f32.mrf.mxu0
    %v719 = vadd.f32 %v534, %v718
    %v720 = vpop.f32.mrf.mxu0
    %v721 = vadd.f32 %v536, %v720
    %722 = vmatprep.mubr.f32.mxu0 %v152
    %723 = vmatmul.mubr.f32.gmra.mxu0 %v151
    %v724 = vpop.f32.mrf.mxu0
    %v725 = vadd.f32 %v540, %v724
    %v726 = vpop.f32.mrf.mxu0
    %v727 = vadd.f32 %v542, %v726
    %728 = vmatprep.mubr.f32.mxu0 %v158
    %729 = vmatmul.mubr.f32.gmra.mxu0 %v157
    %v730 = vpop.f32.mrf.mxu0
    %v731 = vadd.f32 %v546, %v730
    %v732 = vpop.f32.mrf.mxu0
    %v733 = vadd.f32 %v548, %v732
    %734 = vmatprep.mubr.f32.mxu0 %v164
    %735 = vmatmul.mubr.f32.gmra.mxu0 %v163
    %v736 = vpop.f32.mrf.mxu0
    %v737 = vadd.f32 %v552, %v736
    %v738 = vpop.f32.mrf.mxu0
    %v739 = vadd.f32 %v554, %v738
    %740 = vmatprep.mubr.f32.mxu0 %v170
    %741 = vmatmul.mubr.f32.gmra.mxu0 %v169
    %v742 = vpop.f32.mrf.mxu0
    %v743 = vadd.f32 %v558, %v742
    %v744 = vpop.f32.mrf.mxu0
    %v745 = vadd.f32 %v560, %v744
    %746 = vmatprep.mubr.f32.mxu0 %v176
    %747 = vmatmul.mubr.f32.gmra.mxu0 %v175
    %v748 = vpop.f32.mrf.mxu0
    %v749 = vadd.f32 %v564, %v748
    %v750 = vpop.f32.mrf.mxu0
    %v751 = vadd.f32 %v566, %v750
    %752 = vmatprep.mubr.f32.mxu0 %v182
    %753 = vmatmul.mubr.f32.gmra.mxu0 %v181
    %v754 = vpop.f32.mrf.mxu0
    %v755 = vadd.f32 %v570, %v754
    %v756 = vpop.f32.mrf.mxu0
    %v757 = vadd.f32 %v572, %v756
    %758 = vmatprep.mubr.f32.mxu0 %v188
    %759 = vmatmul.mubr.f32.gmra.mxu0 %v187
    %v760 = vpop.f32.mrf.mxu0
    %v761 = vadd.f32 %v576, %v760
    %v762 = vpop.f32.mrf.mxu0
    %v763 = vadd.f32 %v578, %v762
    %764 = vdwg.mxu0
    %765 = vmatprep.subr.mxu0 %v350
    %766 = vmatpush1.msra.mxu0 %v349
    %767 = vmatprep.subr.mxu0 %v348
    %768 = vmatpush1.msra.mxu0 %v347
    %769 = vmatprep.subr.mxu0 %v346
    %770 = vmatpush1.msra.mxu0 %v345
    %771 = vmatprep.subr.mxu0 %v344
    %772 = vmatpush1.msra.mxu0 %v343
    %773 = vmatprep.subr.mxu0 %v342
    %774 = vmatpush1.msra.mxu0 %v341
    %775 = vmatprep.subr.mxu0 %v340
    %776 = vmatpush1.msra.mxu0 %v339
    %777 = vmatprep.subr.mxu0 %v338
    %778 = vmatpush1.msra.mxu0 %v337
    %779 = vmatprep.subr.mxu0 %v336
    %780 = vmatpush1.msra.mxu0 %v335
    %781 = vmatprep.subr.mxu0 %v334
    %782 = vmatpush1.msra.mxu0 %v333
    %783 = vmatprep.subr.mxu0 %v332
    %784 = vmatpush1.msra.mxu0 %v331
    %785 = vmatprep.subr.mxu0 %v330
    %786 = vmatpush1.msra.mxu0 %v329
    %787 = vmatprep.subr.mxu0 %v328
    %788 = vmatpush1.msra.mxu0 %v327
    %789 = vmatprep.subr.mxu0 %v326
    %790 = vmatpush1.msra.mxu0 %v325
    %791 = vmatprep.subr.mxu0 %v324
    %792 = vmatpush1.msra.mxu0 %v323
    %793 = vmatprep.subr.mxu0 %v322
    %794 = vmatpush1.msra.mxu0 %v321
    %795 = vmatprep.subr.mxu0 %v320
    %796 = vmatpush1.msra.mxu0 %v319
    %797 = vmatprep.subr.mxu0 %v382
    %798 = vmatpush2.msra.mxu0 %v381
    %799 = vmatprep.subr.mxu0 %v380
    %800 = vmatpush2.msra.mxu0 %v379
    %801 = vmatprep.subr.mxu0 %v378
    %802 = vmatpush2.msra.mxu0 %v377
    %803 = vmatprep.subr.mxu0 %v376
    %804 = vmatpush2.msra.mxu0 %v375
    %805 = vmatprep.subr.mxu0 %v374
    %806 = vmatpush2.msra.mxu0 %v373
    %807 = vmatprep.subr.mxu0 %v372
    %808 = vmatpush2.msra.mxu0 %v371
    %809 = vmatprep.subr.mxu0 %v370
    %810 = vmatpush2.msra.mxu0 %v369
    %811 = vmatprep.subr.mxu0 %v368
    %812 = vmatpush2.msra.mxu0 %v367
    %813 = vmatprep.subr.mxu0 %v366
    %814 = vmatpush2.msra.mxu0 %v365
    %815 = vmatprep.subr.mxu0 %v364
    %816 = vmatpush2.msra.mxu0 %v363
    %817 = vmatprep.subr.mxu0 %v362
    %818 = vmatpush2.msra.mxu0 %v361
    %819 = vmatprep.subr.mxu0 %v360
    %820 = vmatpush2.msra.mxu0 %v359
    %821 = vmatprep.subr.mxu0 %v358
    %822 = vmatpush2.msra.mxu0 %v357
    %823 = vmatprep.subr.mxu0 %v356
    %824 = vmatpush2.msra.mxu0 %v355
    %825 = vmatprep.subr.mxu0 %v354
    %826 = vmatpush2.msra.mxu0 %v353
    %827 = vmatprep.subr.mxu0 %v352
    %828 = vmatpush2.msra.mxu0 %v351
    %829 = vmatprep.mubr.f32.mxu0 %v76
    %830 = vmatmul.mubr.f32.gmra.mxu0 %v75
    %v831 = vpop.f32.mrf.mxu0
    %v832 = vadd.f32 %v647, %v831
    %v833 = vpop.f32.mrf.mxu0
    %v834 = vadd.f32 %v649, %v833
    %835 = vmatprep.mubr.f32.mxu0 %v82
    %836 = vmatmul.mubr.f32.gmra.mxu0 %v81
    %v837 = vpop.f32.mrf.mxu0
    %v838 = vadd.f32 %v653, %v837
    %v839 = vpop.f32.mrf.mxu0
    %v840 = vadd.f32 %v655, %v839
    %841 = vmatprep.mubr.f32.mxu0 %v88
    %842 = vmatmul.mubr.f32.gmra.mxu0 %v87
    %v843 = vpop.f32.mrf.mxu0
    %v844 = vadd.f32 %v659, %v843
    %v845 = vpop.f32.mrf.mxu0
    %v846 = vadd.f32 %v661, %v845
    %847 = vmatprep.mubr.f32.mxu0 %v94
    %848 = vmatmul.mubr.f32.gmra.mxu0 %v93
    %v849 = vpop.f32.mrf.mxu0
    %v850 = vadd.f32 %v665, %v849
    %v851 = vpop.f32.mrf.mxu0
    %v852 = vadd.f32 %v667, %v851
    %853 = vmatprep.mubr.f32.mxu0 %v100
    %854 = vmatmul.mubr.f32.gmra.mxu0 %v99
    %v855 = vpop.f32.mrf.mxu0
    %v856 = vadd.f32 %v671, %v855
    %v857 = vpop.f32.mrf.mxu0
    %v858 = vadd.f32 %v673, %v857
    %859 = vmatprep.mubr.f32.mxu0 %v106
    %860 = vmatmul.mubr.f32.gmra.mxu0 %v105
    %v861 = vpop.f32.mrf.mxu0
    %v862 = vadd.f32 %v677, %v861
    %v863 = vpop.f32.mrf.mxu0
    %v864 = vadd.f32 %v679, %v863
    %865 = vmatprep.mubr.f32.mxu0 %v112
    %866 = vmatmul.mubr.f32.gmra.mxu0 %v111
    %v867 = vpop.f32.mrf.mxu0
    %v868 = vadd.f32 %v683, %v867
    %v869 = vpop.f32.mrf.mxu0
    %v870 = vadd.f32 %v685, %v869
    %871 = vmatprep.mubr.f32.mxu0 %v118
    %872 = vmatmul.mubr.f32.gmra.mxu0 %v117
    %v873 = vpop.f32.mrf.mxu0
    %v874 = vadd.f32 %v689, %v873
    %v875 = vpop.f32.mrf.mxu0
    %v876 = vadd.f32 %v691, %v875
    %877 = vmatprep.mubr.f32.mxu0 %v124
    %878 = vmatmul.mubr.f32.gmra.mxu0 %v123
    %v879 = vpop.f32.mrf.mxu0
    %v880 = vadd.f32 %v695, %v879
    %v881 = vpop.f32.mrf.mxu0
    %v882 = vadd.f32 %v697, %v881
    %883 = vmatprep.mubr.f32.mxu0 %v130
    %884 = vmatmul.mubr.f32.gmra.mxu0 %v129
    %v885 = vpop.f32.mrf.mxu0
    %v886 = vadd.f32 %v701, %v885
    %v887 = vpop.f32.mrf.mxu0
    %v888 = vadd.f32 %v703, %v887
    %889 = vmatprep.mubr.f32.mxu0 %v136
    %890 = vmatmul.mubr.f32.gmra.mxu0 %v135
    %v891 = vpop.f32.mrf.mxu0
    %v892 = vadd.f32 %v707, %v891
    %v893 = vpop.f32.mrf.mxu0
    %v894 = vadd.f32 %v709, %v893
    %895 = vmatprep.mubr.f32.mxu0 %v142
    %896 = vmatmul.mubr.f32.gmra.mxu0 %v141
    %v897 = vpop.f32.mrf.mxu0
    %v898 = vadd.f32 %v713, %v897
    %v899 = vpop.f32.mrf.mxu0
    %v900 = vadd.f32 %v715, %v899
    %901 = vmatprep.mubr.f32.mxu0 %v148
    %902 = vmatmul.mubr.f32.gmra.mxu0 %v147
    %v903 = vpop.f32.mrf.mxu0
    %v904 = vadd.f32 %v719, %v903
    %v905 = vpop.f32.mrf.mxu0
    %v906 = vadd.f32 %v721, %v905
    %907 = vmatprep.mubr.f32.mxu0 %v154
    %908 = vmatmul.mubr.f32.gmra.mxu0 %v153
    %v909 = vpop.f32.mrf.mxu0
    %v910 = vadd.f32 %v725, %v909
    %v911 = vpop.f32.mrf.mxu0
    %v912 = vadd.f32 %v727, %v911
    %913 = vmatprep.mubr.f32.mxu0 %v160
    %914 = vmatmul.mubr.f32.gmra.mxu0 %v159
    %v915 = vpop.f32.mrf.mxu0
    %v916 = vadd.f32 %v731, %v915
    %v917 = vpop.f32.mrf.mxu0
    %v918 = vadd.f32 %v733, %v917
    %919 = vmatprep.mubr.f32.mxu0 %v166
    %920 = vmatmul.mubr.f32.gmra.mxu0 %v165
    %v921 = vpop.f32.mrf.mxu0
    %v922 = vadd.f32 %v737, %v921
    %v923 = vpop.f32.mrf.mxu0
    %v924 = vadd.f32 %v739, %v923
    %925 = vmatprep.mubr.f32.mxu0 %v172
    %926 = vmatmul.mubr.f32.gmra.mxu0 %v171
    %v927 = vpop.f32.mrf.mxu0
    %v928 = vadd.f32 %v743, %v927
    %v929 = vpop.f32.mrf.mxu0
    %v930 = vadd.f32 %v745, %v929
    %931 = vmatprep.mubr.f32.mxu0 %v178
    %932 = vmatmul.mubr.f32.gmra.mxu0 %v177
    %v933 = vpop.f32.mrf.mxu0
    %v934 = vadd.f32 %v749, %v933
    %v935 = vpop.f32.mrf.mxu0
    %v936 = vadd.f32 %v751, %v935
    %937 = vmatprep.mubr.f32.mxu0 %v184
    %938 = vmatmul.mubr.f32.gmra.mxu0 %v183
    %v939 = vpop.f32.mrf.mxu0
    %v940 = vadd.f32 %v755, %v939
    %v941 = vpop.f32.mrf.mxu0
    %v942 = vadd.f32 %v757, %v941
    %943 = vmatprep.mubr.f32.mxu0 %v190
    %944 = vmatmul.mubr.f32.gmra.mxu0 %v189
    %v945 = vpop.f32.mrf.mxu0
    %v946 = vadd.f32 %v761, %v945
    %v947 = vpop.f32.mrf.mxu0
    %v948 = vadd.f32 %v763, %v947
    %949 = vdwg.mxu0
    %v950 = vmax.f32 %v832, 0.0
    %v951 = vmax.f32 %v834, 0.0
    %v952 = vmax.f32 %v838, 0.0
    %v953 = vmax.f32 %v840, 0.0
    %v954 = vmax.f32 %v844, 0.0
    %v955 = vmax.f32 %v846, 0.0
    %v956 = vmax.f32 %v850, 0.0
    %v957 = vmax.f32 %v852, 0.0
    %v958 = vmax.f32 %v856, 0.0
    %v959 = vmax.f32 %v858, 0.0
    %v960 = vmax.f32 %v862, 0.0
    %v961 = vmax.f32 %v864, 0.0
    %v962 = vmax.f32 %v868, 0.0
    %v963 = vmax.f32 %v870, 0.0
    %v964 = vmax.f32 %v874, 0.0
    %v965 = vmax.f32 %v876, 0.0
    %v966 = vmax.f32 %v880, 0.0
    %v967 = vmax.f32 %v882, 0.0
    %v968 = vmax.f32 %v886, 0.0
    %v969 = vmax.f32 %v888, 0.0
    %v970 = vmax.f32 %v892, 0.0
    %v971 = vmax.f32 %v894, 0.0
    %v972 = vmax.f32 %v898, 0.0
    %v973 = vmax.f32 %v900, 0.0
    %v974 = vmax.f32 %v904, 0.0
    %v975 = vmax.f32 %v906, 0.0
    %v976 = vmax.f32 %v910, 0.0
    %v977 = vmax.f32 %v912, 0.0
    %v978 = vmax.f32 %v916, 0.0
    %v979 = vmax.f32 %v918, 0.0
    %v980 = vmax.f32 %v922, 0.0
    %v981 = vmax.f32 %v924, 0.0
    %v982 = vmax.f32 %v928, 0.0
    %v983 = vmax.f32 %v930, 0.0
    %v984 = vmax.f32 %v934, 0.0
    %v985 = vmax.f32 %v936, 0.0
    %v986 = vmax.f32 %v940, 0.0
    %v987 = vmax.f32 %v942, 0.0
    %v988 = vmax.f32 %v946, 0.0
    %v989 = vmax.f32 %v948, 0.0
    %v990 = vld [vmem:[#allocation6] sm:$0xff]
    %v991 = vld [vmem:[#allocation6 + $0x8] sm:$0xff]
    %v992 = vld [vmem:[#allocation6 + $0x10] sm:$0xff]
    %v993 = vld [vmem:[#allocation6 + $0x18] sm:$0xff]
    %v994 = vld [vmem:[#allocation6 + $0x20] sm:$0xff]
    %v995 = vld [vmem:[#allocation6 + $0x28] sm:$0xff]
    %v996 = vld [vmem:[#allocation6 + $0x30] sm:$0xff]
    %v997 = vld [vmem:[#allocation6 + $0x38] sm:$0xff]
    %v998 = vld [vmem:[#allocation6 + $0x40] sm:$0xff]
    %v999 = vld [vmem:[#allocation6 + $0x48] sm:$0xff]
    %v1000 = vld [vmem:[#allocation6 + $0x50] sm:$0xff]
    %v1001 = vld [vmem:[#allocation6 + $0x58] sm:$0xff]
    %v1002 = vld [vmem:[#allocation6 + $0x60] sm:$0xff]
    %v1003 = vld [vmem:[#allocation6 + $0x68] sm:$0xff]
    %v1004 = vld [vmem:[#allocation6 + $0x70] sm:$0xff]
    %v1005 = vld [vmem:[#allocation6 + $0x78] sm:$0xff]
    %v1006 = vld [vmem:[#allocation6 + $0x80] sm:$0xff]
    %v1007 = vld [vmem:[#allocation6 + $0x88] sm:$0xff]
    %v1008 = vld [vmem:[#allocation6 + $0x90] sm:$0xff]
    %v1009 = vld [vmem:[#allocation6 + $0x98] sm:$0xff]
    %v1010 = vld [vmem:[#allocation6 + $0xa0] sm:$0xff]
    %v1011 = vld [vmem:[#allocation6 + $0xa8] sm:$0xff]
    %v1012 = vld [vmem:[#allocation6 + $0xb0] sm:$0xff]
    %v1013 = vld [vmem:[#allocation6 + $0xb8] sm:$0xff]
    %v1014 = vld [vmem:[#allocation6 + $0xc0] sm:$0xff]
    %v1015 = vld [vmem:[#allocation6 + $0xc8] sm:$0xff]
    %v1016 = vld [vmem:[#allocation6 + $0xd0] sm:$0xff]
    %v1017 = vld [vmem:[#allocation6 + $0xd8] sm:$0xff]
    %v1018 = vld [vmem:[#allocation6 + $0xe0] sm:$0xff]
    %v1019 = vld [vmem:[#allocation6 + $0xe8] sm:$0xff]
    %v1020 = vld [vmem:[#allocation6 + $0xf0] sm:$0xff]
    %v1021 = vld [vmem:[#allocation6 + $0xf8] sm:$0xff]
    %v1022 = vld [vmem:[#allocation7] sm:$0x1]
    %v1024 = vlaneseq
    %v1025 = vshrl.u32 %v1024, 7
    %v1026 = vsub.s32 0, %v1025
    %v1027 = vrot.slane %v1022, %v1026
    %1029 = vmatprep.subr.mxu0 0.0
    %1030 = vmatpush1.msra.mxu0 %v1005
    %1031 = vmatprep.subr.mxu0 0.0
    %1032 = vmatpush1.msra.mxu0 %v1004
    %1033 = vmatprep.subr.mxu0 0.0
    %1034 = vmatpush1.msra.mxu0 %v1003
    %1035 = vmatprep.subr.mxu0 0.0
    %1036 = vmatpush1.msra.mxu0 %v1002
    %1037 = vmatprep.subr.mxu0 0.0
    %1038 = vmatpush1.msra.mxu0 %v1001
    %1039 = vmatprep.subr.mxu0 0.0
    %1040 = vmatpush1.msra.mxu0 %v1000
    %1041 = vmatprep.subr.mxu0 0.0
    %1042 = vmatpush1.msra.mxu0 %v999
    %1043 = vmatprep.subr.mxu0 0.0
    %1044 = vmatpush1.msra.mxu0 %v998
    %1045 = vmatprep.subr.mxu0 0.0
    %1046 = vmatpush1.msra.mxu0 %v997
    %1047 = vmatprep.subr.mxu0 0.0
    %1048 = vmatpush1.msra.mxu0 %v996
    %1049 = vmatprep.subr.mxu0 0.0
    %1050 = vmatpush1.msra.mxu0 %v995
    %1051 = vmatprep.subr.mxu0 0.0
    %1052 = vmatpush1.msra.mxu0 %v994
    %1053 = vmatprep.subr.mxu0 0.0
    %1054 = vmatpush1.msra.mxu0 %v993
    %1055 = vmatprep.subr.mxu0 0.0
    %1056 = vmatpush1.msra.mxu0 %v992
    %1057 = vmatprep.subr.mxu0 0.0
    %1058 = vmatpush1.msra.mxu0 %v991
    %1059 = vmatprep.subr.mxu0 0.0
    %1060 = vmatpush1.msra.mxu0 %v990
    %1061 = vmatprep.subr.mxu0 0.0
    %1062 = vmatpush2.msra.mxu0 %v1021
    %1063 = vmatprep.subr.mxu0 0.0
    %1064 = vmatpush2.msra.mxu0 %v1020
    %1065 = vmatprep.subr.mxu0 0.0
    %1066 = vmatpush2.msra.mxu0 %v1019
    %1067 = vmatprep.subr.mxu0 0.0
    %1068 = vmatpush2.msra.mxu0 %v1018
    %1069 = vmatprep.subr.mxu0 0.0
    %1070 = vmatpush2.msra.mxu0 %v1017
    %1071 = vmatprep.subr.mxu0 0.0
    %1072 = vmatpush2.msra.mxu0 %v1016
    %1073 = vmatprep.subr.mxu0 0.0
    %1074 = vmatpush2.msra.mxu0 %v1015
    %1075 = vmatprep.subr.mxu0 0.0
    %1076 = vmatpush2.msra.mxu0 %v1014
    %1077 = vmatprep.subr.mxu0 0.0
    %1078 = vmatpush2.msra.mxu0 %v1013
    %1079 = vmatprep.subr.mxu0 0.0
    %1080 = vmatpush2.msra.mxu0 %v1012
    %1081 = vmatprep.subr.mxu0 0.0
    %1082 = vmatpush2.msra.mxu0 %v1011
    %1083 = vmatprep.subr.mxu0 0.0
    %1084 = vmatpush2.msra.mxu0 %v1010
    %1085 = vmatprep.subr.mxu0 0.0
    %1086 = vmatpush2.msra.mxu0 %v1009
    %1087 = vmatprep.subr.mxu0 0.0
    %1088 = vmatpush2.msra.mxu0 %v1008
    %1089 = vmatprep.subr.mxu0 0.0
    %1090 = vmatpush2.msra.mxu0 %v1007
    %1091 = vmatprep.subr.mxu0 0.0
    %1092 = vmatpush2.msra.mxu0 %v1006
    %1093 = vmatprep.mubr.f32.mxu0 %v951
    %1094 = vmatmul.mubr.f32.gmra.mxu0 %v950
    %v1095 = vpop.f32.mrf.mxu0
    %v1096 = vadd.f32 %v1027, %v1095
    %v1097 = vpop.f32.mrf.mxu0
    %1098 = vmatprep.mubr.f32.mxu0 %v953
    %1099 = vmatmul.mubr.f32.gmra.mxu0 %v952
    %v1100 = vpop.f32.mrf.mxu0
    %v1101 = vadd.f32 %v1027, %v1100
    %v1102 = vpop.f32.mrf.mxu0
    %1103 = vmatprep.mubr.f32.mxu0 %v955
    %1104 = vmatmul.mubr.f32.gmra.mxu0 %v954
    %v1105 = vpop.f32.mrf.mxu0
    %v1106 = vadd.f32 %v1027, %v1105
    %v1107 = vpop.f32.mrf.mxu0
    %1108 = vmatprep.mubr.f32.mxu0 %v957
    %1109 = vmatmul.mubr.f32.gmra.mxu0 %v956
    %v1110 = vpop.f32.mrf.mxu0
    %v1111 = vadd.f32 %v1027, %v1110
    %v1112 = vpop.f32.mrf.mxu0
    %1113 = vmatprep.mubr.f32.mxu0 %v959
    %1114 = vmatmul.mubr.f32.gmra.mxu0 %v958
    %v1115 = vpop.f32.mrf.mxu0
    %v1116 = vadd.f32 %v1027, %v1115
    %v1117 = vpop.f32.mrf.mxu0
    %1118 = vmatprep.mubr.f32.mxu0 %v961
    %1119 = vmatmul.mubr.f32.gmra.mxu0 %v960
    %v1120 = vpop.f32.mrf.mxu0
    %v1121 = vadd.f32 %v1027, %v1120
    %v1122 = vpop.f32.mrf.mxu0
    %1123 = vmatprep.mubr.f32.mxu0 %v963
    %1124 = vmatmul.mubr.f32.gmra.mxu0 %v962
    %v1125 = vpop.f32.mrf.mxu0
    %v1126 = vadd.f32 %v1027, %v1125
    %v1127 = vpop.f32.mrf.mxu0
    %1128 = vmatprep.mubr.f32.mxu0 %v965
    %1129 = vmatmul.mubr.f32.gmra.mxu0 %v964
    %v1130 = vpop.f32.mrf.mxu0
    %v1131 = vadd.f32 %v1027, %v1130
    %v1132 = vpop.f32.mrf.mxu0
    %1133 = vmatprep.mubr.f32.mxu0 %v967
    %1134 = vmatmul.mubr.f32.gmra.mxu0 %v966
    %v1135 = vpop.f32.mrf.mxu0
    %v1136 = vadd.f32 %v1027, %v1135
    %v1137 = vpop.f32.mrf.mxu0
    %1138 = vmatprep.mubr.f32.mxu0 %v969
    %1139 = vmatmul.mubr.f32.gmra.mxu0 %v968
    %v1140 = vpop.f32.mrf.mxu0
    %v1141 = vadd.f32 %v1027, %v1140
    %v1142 = vpop.f32.mrf.mxu0
    %1143 = vmatprep.mubr.f32.mxu0 %v971
    %1144 = vmatmul.mubr.f32.gmra.mxu0 %v970
    %v1145 = vpop.f32.mrf.mxu0
    %v1146 = vadd.f32 %v1027, %v1145
    %v1147 = vpop.f32.mrf.mxu0
    %1148 = vmatprep.mubr.f32.mxu0 %v973
    %1149 = vmatmul.mubr.f32.gmra.mxu0 %v972
    %v1150 = vpop.f32.mrf.mxu0
    %v1151 = vadd.f32 %v1027, %v1150
    %v1152 = vpop.f32.mrf.mxu0
    %1153 = vmatprep.mubr.f32.mxu0 %v975
    %1154 = vmatmul.mubr.f32.gmra.mxu0 %v974
    %v1155 = vpop.f32.mrf.mxu0
    %v1156 = vadd.f32 %v1027, %v1155
    %v1157 = vpop.f32.mrf.mxu0
    %1158 = vmatprep.mubr.f32.mxu0 %v977
    %1159 = vmatmul.mubr.f32.gmra.mxu0 %v976
    %v1160 = vpop.f32.mrf.mxu0
    %v1161 = vadd.f32 %v1027, %v1160
    %v1162 = vpop.f32.mrf.mxu0
    %1163 = vmatprep.mubr.f32.mxu0 %v979
    %1164 = vmatmul.mubr.f32.gmra.mxu0 %v978
    %v1165 = vpop.f32.mrf.mxu0
    %v1166 = vadd.f32 %v1027, %v1165
    %v1167 = vpop.f32.mrf.mxu0
    %1168 = vmatprep.mubr.f32.mxu0 %v981
    %1169 = vmatmul.mubr.f32.gmra.mxu0 %v980
    %v1170 = vpop.f32.mrf.mxu0
    %v1171 = vadd.f32 %v1027, %v1170
    %v1172 = vpop.f32.mrf.mxu0
    %1173 = vmatprep.mubr.f32.mxu0 %v983
    %1174 = vmatmul.mubr.f32.gmra.mxu0 %v982
    %v1175 = vpop.f32.mrf.mxu0
    %v1176 = vadd.f32 %v1027, %v1175
    %v1177 = vpop.f32.mrf.mxu0
    %1178 = vmatprep.mubr.f32.mxu0 %v985
    %1179 = vmatmul.mubr.f32.gmra.mxu0 %v984
    %v1180 = vpop.f32.mrf.mxu0
    %v1181 = vadd.f32 %v1027, %v1180
    %v1182 = vpop.f32.mrf.mxu0
    %1183 = vmatprep.mubr.f32.mxu0 %v987
    %1184 = vmatmul.mubr.f32.gmra.mxu0 %v986
    %v1185 = vpop.f32.mrf.mxu0
    %v1186 = vadd.f32 %v1027, %v1185
    %v1187 = vpop.f32.mrf.mxu0
    %1188 = vmatprep.mubr.f32.mxu0 %v989
    %1189 = vmatmul.mubr.f32.gmra.mxu0 %v988
    %v1190 = vpop.f32.mrf.mxu0
    %v1191 = vadd.f32 %v1027, %v1190
    %v1192 = vpop.f32.mrf.mxu0
    %1193 = vdwg.mxu0
    %v1194 = vmax.f32 %v1096, 0.0
    %v1195 = vmax.f32 %v1101, 0.0
    %v1196 = vmax.f32 %v1106, 0.0
    %v1197 = vmax.f32 %v1111, 0.0
    %v1198 = vmax.f32 %v1116, 0.0
    %v1199 = vmax.f32 %v1121, 0.0
    %v1200 = vmax.f32 %v1126, 0.0
    %v1201 = vmax.f32 %v1131, 0.0
    %v1202 = vmax.f32 %v1136, 0.0
    %v1203 = vmax.f32 %v1141, 0.0
    %v1204 = vmax.f32 %v1146, 0.0
    %v1205 = vmax.f32 %v1151, 0.0
    %v1206 = vmax.f32 %v1156, 0.0
    %v1207 = vmax.f32 %v1161, 0.0
    %v1208 = vmax.f32 %v1166, 0.0
    %v1209 = vmax.f32 %v1171, 0.0
    %v1210 = vmax.f32 %v1176, 0.0
    %v1211 = vmax.f32 %v1181, 0.0
    %v1212 = vmax.f32 %v1186, 0.0
    %v1213 = vmax.f32 %v1191, 0.0
    %1214 = vst [vmem:[%s5] sm:$0xff] %v1194
    %1215 = vst [vmem:[%s5 + $0x8] sm:$0xff] %v1195
    %1216 = vst [vmem:[%s5 + $0x10] sm:$0xff] %v1196
    %1217 = vst [vmem:[%s5 + $0x18] sm:$0xff] %v1197
    %1218 = vst [vmem:[%s5 + $0x20] sm:$0xff] %v1198
    %1219 = vst [vmem:[%s5 + $0x28] sm:$0xff] %v1199
    %1220 = vst [vmem:[%s5 + $0x30] sm:$0xff] %v1200
    %1221 = vst [vmem:[%s5 + $0x38] sm:$0xff] %v1201
    %1222 = vst [vmem:[%s5 + $0x40] sm:$0xff] %v1202
    %1223 = vst [vmem:[%s5 + $0x48] sm:$0xff] %v1203
    %1224 = vst [vmem:[%s5 + $0x50] sm:$0xff] %v1204
    %1225 = vst [vmem:[%s5 + $0x58] sm:$0xff] %v1205
    %1226 = vst [vmem:[%s5 + $0x60] sm:$0xff] %v1206
    %1227 = vst [vmem:[%s5 + $0x68] sm:$0xff] %v1207
    %1228 = vst [vmem:[%s5 + $0x70] sm:$0xff] %v1208
    %1229 = vst [vmem:[%s5 + $0x78] sm:$0xff] %v1209
    %1230 = vst [vmem:[%s5 + $0x80] sm:$0xff] %v1210
    %1231 = vst [vmem:[%s5 + $0x88] sm:$0xff] %v1211
    %1232 = vst [vmem:[%s5 + $0x90] sm:$0xff] %v1212
    %1233 = vst [vmem:[%s5 + $0x98] sm:$0x3] %v1213
    // Predicated region
    $region38: #{autoencoder_forward.3} parent=1 // pred_check
      _
    $region39: #{autoencoder_forward.3} parent=1 // pred_check_branch
      %1235 = sbr.rel (0) target = $region41
    $region40: #{autoencoder_forward.3} parent=1 // pred_region
      _
    $region41: #{autoencoder_forward.3} parent=1 // pred_fallthru
      _
    // Predicated region
    $region42: #{autoencoder_forward.3} parent=1 // pred_check
      _
    $region43: #{autoencoder_forward.3} parent=1 // pred_check_branch
      %1237 = sbr.rel (0) target = $region45
    $region44: #{autoencoder_forward.3} parent=1 // pred_region
      _
    $region45: #{autoencoder_forward.3} parent=1 // pred_fallthru
      _
    %1238 = vsyncpa [#allocation3], 1
    %1239 = vsyncpa [#allocation5], 1
    %1240 = vsyncpa [#allocation8], 1

// kernel: autoencoder_forward.5
$region0: #{autoencoder_forward.5}
  #allocation0 [shape = 'u32[]', space=smem, size = 0x4, offset = 0x4, fixed_abs, tag = 'smem constant byte address 0x4 - core index']
  #allocation1 [shape = 'u32[144,128]{1,0:T(1,128)}', space=vmem, size = 0x12000, scoped, tag = 'internal scratch']
  %s0 = inlined_call_operand.vmem [shape: f32[2,256], index: 0, kind: input, shape index: {}]
  %s1 = inlined_call_operand.hbm [shape: bf16[256,59136], index: 1, kind: input, shape index: {}]
  %s2 = inlined_call_operand.hbm [shape: f32[1,59136], index: 2, kind: input, shape index: {}]
  %s3 = inlined_call_operand.hbm [shape: f32[2,59136], index: 3, kind: output, shape index: {}]
  %s4 = sld [smem:[#allocation0]]
  $region53: #{autoencoder_forward.5} parent=0
    _
  %s6 = ssub.s32 1, %s4
  %s7 = scalar_select 0, %s6, %s4
  $region1: #{autoencoder_forward.5} parent=0
    #allocation2 [shape = 'u8[4325376]{0}', space=vmem, size = 0x420000, scoped, tag = 'input window, operand 1']
    #allocation3 [shape = 's32[2]{0}', space=sflag, size = 0x8, scoped, tag = 'scoped memory for autoencoder_forward.5']
    #allocation4 [shape = 's32[2]{0}', space=sflag, size = 0x8, scoped, tag = 'scoped memory for autoencoder_forward.5']
    #allocation5 [shape = 'u8[33792]{0}', space=vmem, size = 0x8400, scoped, tag = 'input window, operand 2']
    #allocation6 [shape = 's32[2]{0}', space=sflag, size = 0x8, scoped, tag = 'scoped memory for autoencoder_forward.5']
    #allocation7 [shape = 'u8[67584]{0}', space=vmem, size = 0x10800, scoped, tag = 'output window, operand 0']
    %8 = vsyncpa [#allocation3], 0
    %s9 = scalar_lea.sflag [#allocation3], 1
    %10 = vsyncpa %s9, 0
    %11 = vsyncpa [#allocation6], 0
    %s12 = scalar_lea.sflag [#allocation6], 1
    %13 = vsyncpa %s12, 0
    %14 = vsyncpa [#allocation4], 0
    %s15 = scalar_lea.sflag [#allocation4], 1
    %16 = vsyncpa %s15, 0
    loop: start=0, step=1, limit=16
    $region2: #{autoencoder_forward.5} parent=1 // loop_pre_header
      _
    $region3: #{autoencoder_forward.5} parent=1 // loop_header
      %s18 = sphi 0, %s22
      %p19 = scmp.ge.s32.totalorder %s18, 16
      %s26 = sphi 0, %s26
      %s28 = sphi 0, %s26
      %s29 = sphi 0, %s28
      %s43 = sphi 0, %s29
      %s49 = sphi 0, %s51
      %s52 = sphi 0, %s49
      %s53 = sphi 0, %s52
      %s69 = sphi 0, %s53
      %s75 = sphi 0, %s77
      %s78 = sphi 0, %s75
      %s79 = sphi 0, %s78
      %s95 = sphi 0, %s79
      %s101 = sphi 0, %s103
      %s104 = sphi 0, %s101
      %s105 = sphi 0, %s104
      %s121 = sphi 0, %s105
    $region4: #{autoencoder_forward.5} parent=1 // loop_header_branch
      %21 = sbr.rel (%p19) target = $region8
    $region5: #{autoencoder_forward.5} parent=1 // loop_body
      %s23 = ssub.s32 %s18, 1
      %s24 = ssub.s32 %s18, 2
      %s25 = sadd.s32 %s18, 1
      %s27 = sadd.s32 %s26, 1
      %p30 = scmp.eq.s32.totalorder %s18, 13
      %p31 = scmp.ne.s32.totalorder %s26, %s28
      %p32 = scmp.eq.s32.totalorder %s18, 0
      %p33 = por %p31, %p32
      %p34 = scmp.ne.s32.totalorder %s26, %s28
      %p35 = scmp.eq.s32.totalorder %s23, 13
      %p36 = por %p34, %p35
      %p37 = scmp.ne.s32.totalorder %s28, %s29
      %p38 = scmp.eq.s32.totalorder %s23, 0
      %p39 = por %p37, %p38
      %p40 = scmp.ne.s32.totalorder %s28, %s29
      %p41 = scmp.eq.s32.totalorder %s24, 13
      %p42 = por %p40, %p41
      %p44 = scmp.ne.s32.totalorder %s29, %s43
      %p45 = scmp.eq.s32.totalorder %s24, 0
      %p46 = por %p44, %p45
      %s47 = ssub.s32 %s18, %s25
      %p48 = scmp.eq.s32.totalorder %s47, 0
      %s50 = sadd.s32 %s49, 1
      %s51 = scalar_select %p48, %s49, %s50
      %p54 = pneg %p48
      %p55 = scmp.eq.s32.totalorder %s18, 13
      %p56 = por %p54, %p55
      %p57 = scmp.ne.s32.totalorder %s49, %s52
      %p58 = scmp.eq.s32.totalorder %s18, 0
      %p59 = por %p57, %p58
      %p60 = scmp.ne.s32.totalorder %s49, %s52
      %p61 = scmp.eq.s32.totalorder %s23, 13
      %p62 = por %p60, %p61
      %p63 = scmp.ne.s32.totalorder %s52, %s53
      %p64 = scmp.eq.s32.totalorder %s23, 0
      %p65 = por %p63, %p64
      %p66 = scmp.ne.s32.totalorder %s52, %s53
      %p67 = scmp.eq.s32.totalorder %s24, 13
      %p68 = por %p66, %p67
      %p70 = scmp.ne.s32.totalorder %s53, %s69
      %p71 = scmp.eq.s32.totalorder %s24, 0
      %p72 = por %p70, %p71
      %s73 = ssub.s32 %s18, %s25
      %p74 = scmp.eq.s32.totalorder %s73, 0
      %s76 = sadd.s32 %s75, 1
      %s77 = scalar_select %p74, %s75, %s76
      %p80 = pneg %p74
      %p81 = scmp.eq.s32.totalorder %s18, 13
      %p82 = por %p80, %p81
      %p83 = scmp.ne.s32.totalorder %s75, %s78
      %p84 = scmp.eq.s32.totalorder %s18, 0
      %p85 = por %p83, %p84
      %p86 = scmp.ne.s32.totalorder %s75, %s78
      %p87 = scmp.eq.s32.totalorder %s23, 13
      %p88 = por %p86, %p87
      %p89 = scmp.ne.s32.totalorder %s78, %s79
      %p90 = scmp.eq.s32.totalorder %s23, 0
      %p91 = por %p89, %p90
      %p92 = scmp.ne.s32.totalorder %s78, %s79
      %p93 = scmp.eq.s32.totalorder %s24, 13
      %p94 = por %p92, %p93
      %p96 = scmp.ne.s32.totalorder %s79, %s95
      %p97 = scmp.eq.s32.totalorder %s24, 0
      %p98 = por %p96, %p97
      %s99 = ssub.s32 %s18, %s25
      %p100 = scmp.eq.s32.totalorder %s99, 0
      %s102 = sadd.s32 %s101, 1
      %s103 = scalar_select %p100, %s101, %s102
      %p106 = pneg %p100
      %p107 = scmp.eq.s32.totalorder %s18, 13
      %p108 = por %p106, %p107
      %p109 = scmp.ne.s32.totalorder %s101, %s104
      %p110 = scmp.eq.s32.totalorder %s18, 0
      %p111 = por %p109, %p110
      %p112 = scmp.ne.s32.totalorder %s101, %s104
      %p113 = scmp.eq.s32.totalorder %s23, 13
      %p114 = por %p112, %p113
      %p115 = scmp.ne.s32.totalorder %s104, %s105
      %p116 = scmp.eq.s32.totalorder %s23, 0
      %p117 = por %p115, %p116
      %p118 = scmp.ne.s32.totalorder %s104, %s105
      %p119 = scmp.eq.s32.totalorder %s24, 13
      %p120 = por %p118, %p119
      %p122 = scmp.ne.s32.totalorder %s105, %s121
      %p123 = scmp.eq.s32.totalorder %s24, 0
      %p124 = por %p122, %p123
      %p125 = scmp.le.s32.totalorder 1, %s18
      %p126 = scmp.lt.s32.totalorder %s18, 15
      %p127 = pnand %p125, %p126
      %p128 = pneg %p127
      // Predicated region
      $region9: #{autoencoder_forward.5} parent=5 // pred_check
        _
      $region10: #{autoencoder_forward.5} parent=5 // pred_check_branch
        %130 = sbr.rel (%p127) target = $region12
      $region11: #{autoencoder_forward.5} parent=5 // pred_region
        %s131 = ssub.s32 %s18, 1
        // Predicated region
        $region13: #{autoencoder_forward.5} parent=11 // pred_check
          %p132 = pneg %p39
        $region14: #{autoencoder_forward.5} parent=11 // pred_check_branch
          %134 = sbr.rel (%p132) target = $region16
        $region15: #{autoencoder_forward.5} parent=11 // pred_region
          _
        $region16: #{autoencoder_forward.5} parent=11 // pred_fallthru
          _
      $region12: #{autoencoder_forward.5} parent=5 // pred_fallthru
        _
      %p135 = scmp.lt.s32.totalorder %s18, 14
      // Predicated region
      $region17: #{autoencoder_forward.5} parent=5 // pred_check
        %p136 = pneg %p135
      $region18: #{autoencoder_forward.5} parent=5 // pred_check_branch
        %138 = sbr.rel (%p136) target = $region20
      $region19: #{autoencoder_forward.5} parent=5 // pred_region
        // Predicated region
        $region21: #{autoencoder_forward.5} parent=19 // pred_check
          %p139 = pneg %p59
        $region22: #{autoencoder_forward.5} parent=19 // pred_check_branch
          %141 = sbr.rel (%p139) target = $region24
        $region23: #{autoencoder_forward.5} parent=19 // pred_region
          %s142 = sand.u32 %s49, 1
          %s143 = scalar_lea.sflag [#allocation3], %s142
          %s144 = sand.u32 %s49, 1
          %s145 = smul.addr %s144, 4224
          %s146 = scalar_lea.vmem [#allocation2], %s145
          %s147 = smul.u32 33, %s18
          %s149 = ssub.s32 67584, 67584
          %150 = vsyncadd %s143, %s149
          %s151 = smul.addr %s147, 64
          %s152 = scalar_lea.hbm %s1, %s151
          %s153 = sshll.u32 %s146, 4
          %s154 = int_to_ptr.vmem [resolvable:$true] %s153
          %159 = dma.hbm_to_vmem [thread:$0]  %s152, 67584, %s154, %s143, 29568, 2112, 132
        $region24: #{autoencoder_forward.5} parent=19 // pred_fallthru
          _
        // Predicated region
        $region25: #{autoencoder_forward.5} parent=19 // pred_check
          %p160 = pneg %p85
        $region26: #{autoencoder_forward.5} parent=19 // pred_check_branch
          %162 = sbr.rel (%p160) target = $region28
        $region27: #{autoencoder_forward.5} parent=19 // pred_region
          %s163 = sand.u32 %s75, 1
          %s164 = scalar_lea.sflag [#allocation6], %s163
          %s165 = sand.u32 %s75, 1
          %s166 = smul.addr %s165, 33
          %s167 = scalar_lea.vmem [#allocation5], %s166
          %s168 = smul.u32 33, %s18
          %s170 = ssub.s32 528, 528
          %171 = vsyncadd %s164, %s170
          %s172 = smul.addr %s168, 16
          %s173 = scalar_lea.hbm %s2, %s172
          %s175 = sshll.u32 %s167, 4
          %s176 = int_to_ptr.vmem [resolvable:$true] %s175
          %178 = dma.hbm_to_vmem [thread:$0]  %s173, 528, %s176, %s164
        $region28: #{autoencoder_forward.5} parent=19 // pred_fallthru
          _
      $region20: #{autoencoder_forward.5} parent=5 // pred_fallthru
        _
      %p179 = scmp.le.s32.totalorder 1, %s18
      %p180 = scmp.lt.s32.totalorder %s18, 15
      %p181 = pnand %p179, %p180
      %p182 = pneg %p181
      // Predicated region
      $region29: #{autoencoder_forward.5} parent=5 // pred_check
        _
      $region30: #{autoencoder_forward.5} parent=5 // pred_check_branch
        %184 = sbr.rel (%p181) target = $region32
      $region31: #{autoencoder_forward.5} parent=5 // pred_region
        %s185 = ssub.s32 %s18, 1
        %s186 = sand.u32 %s52, 1
        %s187 = scalar_lea.sflag [#allocation3], %s186
        %s188 = sand.u32 %s52, 1
        %s189 = smul.addr %s188, 4224
        %s190 = scalar_lea.vmem [#allocation2], %s189
        // Predicated region
        $region33: #{autoencoder_forward.5} parent=31 // pred_check
          %p191 = pneg %p65
        $region34: #{autoencoder_forward.5} parent=31 // pred_check_branch
          %193 = sbr.rel (%p191) target = $region36
        $region35: #{autoencoder_forward.5} parent=31 // pred_region
          %194 = dma.done %s187, 67584
        $region36: #{autoencoder_forward.5} parent=31 // pred_fallthru
          _
        %s195 = sand.u32 %s78, 1
        %s196 = scalar_lea.sflag [#allocation6], %s195
        %s197 = sand.u32 %s78, 1
        %s198 = smul.addr %s197, 33
        %s199 = scalar_lea.vmem [#allocation5], %s198
        // Predicated region
        $region37: #{autoencoder_forward.5} parent=31 // pred_check
          %p200 = pneg %p91
        $region38: #{autoencoder_forward.5} parent=31 // pred_check_branch
          %202 = sbr.rel (%p200) target = $region40
        $region39: #{autoencoder_forward.5} parent=31 // pred_region
          %203 = dma.done %s196, 528
        $region40: #{autoencoder_forward.5} parent=31 // pred_fallthru
          _
        %p204 = pneg %p39
        %p205 = pneg %p36
        %s206 = sand.u32 %s52, 1
        %s207 = scalar_lea.sflag [#allocation3], %s206
        %s208 = sand.u32 %s52, 1
        %s209 = smul.addr %s208, 4224
        %s210 = scalar_lea.vmem [#allocation2], %s209
        %p211 = pneg %p65
        %p212 = pneg %p62
        %s213 = sand.u32 %s78, 1
        %s214 = scalar_lea.sflag [#allocation6], %s213
        %s215 = sand.u32 %s78, 1
        %s216 = smul.addr %s215, 33
        %s217 = scalar_lea.vmem [#allocation5], %s216
        %p218 = pneg %p91
        %p219 = pneg %p88
        %p220 = pneg %p117
        %p221 = pneg %p114
        %s222 = sand.u32 %s104, 1
        %s223 = scalar_lea.sflag [#allocation4], %s222
        %s224 = sand.u32 %s104, 1
        %s225 = smul.addr %s224, 66
        %s226 = scalar_lea.vmem [#allocation7], %s225
        %s227 = smul.u32 33, %s23
        %s228 = smul.u32 33, %s23
        %s229 = smul.u32 33, %s23
        %v231 = vld [vmem:[%s0] sm:$0xf]
        %v234 = vunpack.c.l.s4 1983009808
        %v235 = vunpack.c.0.s8 %v234
        %v236 = vlaneseq
        %v237 = vshrl.u32 %v236, 7
        %v238 = vsub.s32 %v235, %v237
        %v239 = vrot.slane %v231, %v238
        %v240 = vcombine.high %v239, %v239
        %v243 = vpack.c.bf16 %v239, %v239
        %v244 = vpack.c.bf16 %v240, %v240
        %v245 = vld [vmem:[%s190] sm:$0xff]
        %v246 = vld [vmem:[%s190 + $0x8] sm:$0xff]
        %v247 = vld [vmem:[%s190 + $0x10] sm:$0xff]
        %v248 = vld [vmem:[%s190 + $0x18] sm:$0xff]
        %v249 = vld [vmem:[%s190 + $0x20] sm:$0xff]
        %v250 = vld [vmem:[%s190 + $0x28] sm:$0xff]
        %v251 = vld [vmem:[%s190 + $0x30] sm:$0xff]
        %v252 = vld [vmem:[%s190 + $0x38] sm:$0xff]
        %v253 = vld [vmem:[%s190 + $0x40] sm:$0xff]
        %v254 = vld [vmem:[%s190 + $0x48] sm:$0xff]
        %v255 = vld [vmem:[%s190 + $0x50] sm:$0xff]
        %v256 = vld [vmem:[%s190 + $0x58] sm:$0xff]
        %v257 = vld [vmem:[%s190 + $0x60] sm:$0xff]
        %v258 = vld [vmem:[%s190 + $0x68] sm:$0xff]
        %v259 = vld [vmem:[%s190 + $0x70] sm:$0xff]
        %v260 = vld [vmem:[%s190 + $0x78] sm:$0xff]
        %v261 = vld [vmem:[%s190 + $0x80] sm:$0xf]
        %v262 = vld [vmem:[%s190 + $0x84] sm:$0xff]
        %v263 = vld [vmem:[%s190 + $0x8c] sm:$0xff]
        %v264 = vld [vmem:[%s190 + $0x94] sm:$0xff]
        %v265 = vld [vmem:[%s190 + $0x9c] sm:$0xff]
        %v266 = vld [vmem:[%s190 + $0xa4] sm:$0xff]
        %v267 = vld [vmem:[%s190 + $0xac] sm:$0xff]
        %v268 = vld [vmem:[%s190 + $0xb4] sm:$0xff]
        %v269 = vld [vmem:[%s190 + $0xbc] sm:$0xff]
        %v270 = vld [vmem:[%s190 + $0xc4] sm:$0xff]
        %v271 = vld [vmem:[%s190 + $0xcc] sm:$0xff]
        %v272 = vld [vmem:[%s190 + $0xd4] sm:$0xff]
        %v273 = vld [vmem:[%s190 + $0xdc] sm:$0xff]
        %v274 = vld [vmem:[%s190 + $0xe4] sm:$0xff]
        %v275 = vld [vmem:[%s190 + $0xec] sm:$0xff]
        %v276 = vld [vmem:[%s190 + $0xf4] sm:$0xff]
        %v277 = vld [vmem:[%s190 + $0xfc] sm:$0xff]
        %v278 = vld [vmem:[%s190 + $0x104] sm:$0xf]
        %v279 = vld [vmem:[%s190 + $0x108] sm:$0xff]
        %v280 = vld [vmem:[%s190 + $0x110] sm:$0xff]
        %v281 = vld [vmem:[%s190 + $0x118] sm:$0xff]
        %v282 = vld [vmem:[%s190 + $0x120] sm:$0xff]
        %v283 = vld [vmem:[%s190 + $0x128] sm:$0xff]
        %v284 = vld [vmem:[%s190 + $0x130] sm:$0xff]
        %v285 = vld [vmem:[%s190 + $0x138] sm:$0xff]
        %v286 = vld [vmem:[%s190 + $0x140] sm:$0xff]
        %v287 = vld [vmem:[%s190 + $0x148] sm:$0xff]
        %v288 = vld [vmem:[%s190 + $0x150] sm:$0xff]
        %v289 = vld [vmem:[%s190 + $0x158] sm:$0xff]
        %v290 = vld [vmem:[%s190 + $0x160] sm:$0xff]
        %v291 = vld [vmem:[%s190 + $0x168] sm:$0xff]
        %v292 = vld [vmem:[%s190 + $0x170] sm:$0xff]
        %v293 = vld [vmem:[%s190 + $0x178] sm:$0xff]
        %v294 = vld [vmem:[%s190 + $0x180] sm:$0xff]
        %v295 = vld [vmem:[%s190 + $0x188] sm:$0xf]
        %v296 = vld [vmem:[%s190 + $0x18c] sm:$0xff]
        %v297 = vld [vmem:[%s190 + $0x194] sm:$0xff]
        %v298 = vld [vmem:[%s190 + $0x19c] sm:$0xff]
        %v299 = vld [vmem:[%s190 + $0x1a4] sm:$0xff]
        %v300 = vld [vmem:[%s190 + $0x1ac] sm:$0xff]
        %v301 = vld [vmem:[%s190 + $0x1b4] sm:$0xff]
        %v302 = vld [vmem:[%s190 + $0x1bc] sm:$0xff]
        %v303 = vld [vmem:[%s190 + $0x1c4] sm:$0xff]
        %v304 = vld [vmem:[%s190 + $0x1cc] sm:$0xff]
        %v305 = vld [vmem:[%s190 + $0x1d4] sm:$0xff]
        %v306 = vld [vmem:[%s190 + $0x1dc] sm:$0xff]
        %v307 = vld [vmem:[%s190 + $0x1e4] sm:$0xff]
        %v308 = vld [vmem:[%s190 + $0x1ec] sm:$0xff]
        %v309 = vld [vmem:[%s190 + $0x1f4] sm:$0xff]
        %v310 = vld [vmem:[%s190 + $0x1fc] sm:$0xff]
        %v311 = vld [vmem:[%s190 + $0x204] sm:$0xff]
        %v312 = vld [vmem:[%s190 + $0x20c] sm:$0xf]
        %v313 = vld [vmem:[%s190 + $0x210] sm:$0xff]
        %v314 = vld [vmem:[%s190 + $0x218] sm:$0xff]
        %v315 = vld [vmem:[%s190 + $0x220] sm:$0xff]
        %v316 = vld [vmem:[%s190 + $0x228] sm:$0xff]
        %v317 = vld [vmem:[%s190 + $0x230] sm:$0xff]
        %v318 = vld [vmem:[%s190 + $0x238] sm:$0xff]
        %v319 = vld [vmem:[%s190 + $0x240] sm:$0xff]
        %v320 = vld [vmem:[%s190 + $0x248] sm:$0xff]
        %v321 = vld [vmem:[%s190 + $0x250] sm:$0xff]
        %v322 = vld [vmem:[%s190 + $0x258] sm:$0xff]
        %v323 = vld [vmem:[%s190 + $0x260] sm:$0xff]
        %v324 = vld [vmem:[%s190 + $0x268] sm:$0xff]
        %v325 = vld [vmem:[%s190 + $0x270] sm:$0xff]
        %v326 = vld [vmem:[%s190 + $0x278] sm:$0xff]
        %v327 = vld [vmem:[%s190 + $0x280] sm:$0xff]
        %v328 = vld [vmem:[%s190 + $0x288] sm:$0xff]
        %v329 = vld [vmem:[%s190 + $0x290] sm:$0xf]
        %v330 = vld [vmem:[%s190 + $0x294] sm:$0xff]
        %v331 = vld [vmem:[%s190 + $0x29c] sm:$0xff]
        %v332 = vld [vmem:[%s190 + $0x2a4] sm:$0xff]
        %v333 = vld [vmem:[%s190 + $0x2ac] sm:$0xff]
        %v334 = vld [vmem:[%s190 + $0x2b4] sm:$0xff]
        %v335 = vld [vmem:[%s190 + $0x2bc] sm:$0xff]
        %v336 = vld [vmem:[%s190 + $0x2c4] sm:$0xff]
        %v337 = vld [vmem:[%s190 + $0x2cc] sm:$0xff]
        %v338 = vld [vmem:[%s190 + $0x2d4] sm:$0xff]
        %v339 = vld [vmem:[%s190 + $0x2dc] sm:$0xff]
        %v340 = vld [vmem:[%s190 + $0x2e4] sm:$0xff]
        %v341 = vld [vmem:[%s190 + $0x2ec] sm:$0xff]
        %v342 = vld [vmem:[%s190 + $0x2f4] sm:$0xff]
        %v343 = vld [vmem:[%s190 + $0x2fc] sm:$0xff]
        %v344 = vld [vmem:[%s190 + $0x304] sm:$0xff]
        %v345 = vld [vmem:[%s190 + $0x30c] sm:$0xff]
        %v346 = vld [vmem:[%s190 + $0x314] sm:$0xf]
        %v347 = vld [vmem:[%s190 + $0x318] sm:$0xff]
        %v348 = vld [vmem:[%s190 + $0x320] sm:$0xff]
        %v349 = vld [vmem:[%s190 + $0x328] sm:$0xff]
        %v350 = vld [vmem:[%s190 + $0x330] sm:$0xff]
        %v351 = vld [vmem:[%s190 + $0x338] sm:$0xff]
        %v352 = vld [vmem:[%s190 + $0x340] sm:$0xff]
        %v353 = vld [vmem:[%s190 + $0x348] sm:$0xff]
        %v354 = vld [vmem:[%s190 + $0x350] sm:$0xff]
        %v355 = vld [vmem:[%s190 + $0x358] sm:$0xff]
        %v356 = vld [vmem:[%s190 + $0x360] sm:$0xff]
        %v357 = vld [vmem:[%s190 + $0x368] sm:$0xff]
        %v358 = vld [vmem:[%s190 + $0x370] sm:$0xff]
        %v359 = vld [vmem:[%s190 + $0x378] sm:$0xff]
        %v360 = vld [vmem:[%s190 + $0x380] sm:$0xff]
        %v361 = vld [vmem:[%s190 + $0x388] sm:$0xff]
        %v362 = vld [vmem:[%s190 + $0x390] sm:$0xff]
        %v363 = vld [vmem:[%s190 + $0x398] sm:$0xf]
        %v364 = vld [vmem:[%s190 + $0x39c] sm:$0xff]
        %v365 = vld [vmem:[%s190 + $0x3a4] sm:$0xff]
        %v366 = vld [vmem:[%s190 + $0x3ac] sm:$0xff]
        %v367 = vld [vmem:[%s190 + $0x3b4] sm:$0xff]
        %v368 = vld [vmem:[%s190 + $0x3bc] sm:$0xff]
        %v369 = vld [vmem:[%s190 + $0x3c4] sm:$0xff]
        %v370 = vld [vmem:[%s190 + $0x3cc] sm:$0xff]
        %v371 = vld [vmem:[%s190 + $0x3d4] sm:$0xff]
        %v372 = vld [vmem:[%s190 + $0x3dc] sm:$0xff]
        %v373 = vld [vmem:[%s190 + $0x3e4] sm:$0xff]
        %v374 = vld [vmem:[%s190 + $0x3ec] sm:$0xff]
        %v375 = vld [vmem:[%s190 + $0x3f4] sm:$0xff]
        %v376 = vld [vmem:[%s190 + $0x3fc] sm:$0xff]
        %v377 = vld [vmem:[%s190 + $0x404] sm:$0xff]
        %v378 = vld [vmem:[%s190 + $0x40c] sm:$0xff]
        %v379 = vld [vmem:[%s190 + $0x414] sm:$0xff]
        %v380 = vld [vmem:[%s190 + $0x41c] sm:$0xf]
        %v381 = vld [vmem:[%s190 + $0x420] sm:$0xff]
        %v382 = vld [vmem:[%s190 + $0x428] sm:$0xff]
        %v383 = vld [vmem:[%s190 + $0x430] sm:$0xff]
        %v384 = vld [vmem:[%s190 + $0x438] sm:$0xff]
        %v385 = vld [vmem:[%s190 + $0x440] sm:$0xff]
        %v386 = vld [vmem:[%s190 + $0x448] sm:$0xff]
        %v387 = vld [vmem:[%s190 + $0x450] sm:$0xff]
        %v388 = vld [vmem:[%s190 + $0x458] sm:$0xff]
        %v389 = vld [vmem:[%s190 + $0x460] sm:$0xff]
        %v390 = vld [vmem:[%s190 + $0x468] sm:$0xff]
        %v391 = vld [vmem:[%s190 + $0x470] sm:$0xff]
        %v392 = vld [vmem:[%s190 + $0x478] sm:$0xff]
        %v393 = vld [vmem:[%s190 + $0x480] sm:$0xff]
        %v394 = vld [vmem:[%s190 + $0x488] sm:$0xff]
        %v395 = vld [vmem:[%s190 + $0x490] sm:$0xff]
        %v396 = vld [vmem:[%s190 + $0x498] sm:$0xff]
        %v397 = vld [vmem:[%s190 + $0x4a0] sm:$0xf]
        %v398 = vld [vmem:[%s190 + $0x4a4] sm:$0xff]
        %v399 = vld [vmem:[%s190 + $0x4ac] sm:$0xff]
        %v400 = vld [vmem:[%s190 + $0x4b4] sm:$0xff]
        %v401 = vld [vmem:[%s190 + $0x4bc] sm:$0xff]
        %v402 = vld [vmem:[%s190 + $0x4c4] sm:$0xff]
        %v403 = vld [vmem:[%s190 + $0x4cc] sm:$0xff]
        %v404 = vld [vmem:[%s190 + $0x4d4] sm:$0xff]
        %v405 = vld [vmem:[%s190 + $0x4dc] sm:$0xff]
        %v406 = vld [vmem:[%s190 + $0x4e4] sm:$0xff]
        %v407 = vld [vmem:[%s190 + $0x4ec] sm:$0xff]
        %v408 = vld [vmem:[%s190 + $0x4f4] sm:$0xff]
        %v409 = vld [vmem:[%s190 + $0x4fc] sm:$0xff]
        %v410 = vld [vmem:[%s190 + $0x504] sm:$0xff]
        %v411 = vld [vmem:[%s190 + $0x50c] sm:$0xff]
        %v412 = vld [vmem:[%s190 + $0x514] sm:$0xff]
        %v413 = vld [vmem:[%s190 + $0x51c] sm:$0xff]
        %v414 = vld [vmem:[%s190 + $0x524] sm:$0xf]
        %v415 = vld [vmem:[%s190 + $0x528] sm:$0xff]
        %v416 = vld [vmem:[%s190 + $0x530] sm:$0xff]
        %v417 = vld [vmem:[%s190 + $0x538] sm:$0xff]
        %v418 = vld [vmem:[%s190 + $0x540] sm:$0xff]
        %v419 = vld [vmem:[%s190 + $0x548] sm:$0xff]
        %v420 = vld [vmem:[%s190 + $0x550] sm:$0xff]
        %v421 = vld [vmem:[%s190 + $0x558] sm:$0xff]
        %v422 = vld [vmem:[%s190 + $0x560] sm:$0xff]
        %v423 = vld [vmem:[%s190 + $0x568] sm:$0xff]
        %v424 = vld [vmem:[%s190 + $0x570] sm:$0xff]
        %v425 = vld [vmem:[%s190 + $0x578] sm:$0xff]
        %v426 = vld [vmem:[%s190 + $0x580] sm:$0xff]
        %v427 = vld [vmem:[%s190 + $0x588] sm:$0xff]
        %v428 = vld [vmem:[%s190 + $0x590] sm:$0xff]
        %v429 = vld [vmem:[%s190 + $0x598] sm:$0xff]
        %v430 = vld [vmem:[%s190 + $0x5a0] sm:$0xff]
        %v431 = vld [vmem:[%s190 + $0x5a8] sm:$0xf]
        %v432 = vld [vmem:[%s190 + $0x5ac] sm:$0xff]
        %v433 = vld [vmem:[%s190 + $0x5b4] sm:$0xff]
        %v434 = vld [vmem:[%s190 + $0x5bc] sm:$0xff]
        %v435 = vld [vmem:[%s190 + $0x5c4] sm:$0xff]
        %v436 = vld [vmem:[%s190 + $0x5cc] sm:$0xff]
        %v437 = vld [vmem:[%s190 + $0x5d4] sm:$0xff]
        %v438 = vld [vmem:[%s190 + $0x5dc] sm:$0xff]
        %v439 = vld [vmem:[%s190 + $0x5e4] sm:$0xff]
        %v440 = vld [vmem:[%s190 + $0x5ec] sm:$0xff]
        %v441 = vld [vmem:[%s190 + $0x5f4] sm:$0xff]
        %v442 = vld [vmem:[%s190 + $0x5fc] sm:$0xff]
        %v443 = vld [vmem:[%s190 + $0x604] sm:$0xff]
        %v444 = vld [vmem:[%s190 + $0x60c] sm:$0xff]
        %v445 = vld [vmem:[%s190 + $0x614] sm:$0xff]
        %v446 = vld [vmem:[%s190 + $0x61c] sm:$0xff]
        %v447 = vld [vmem:[%s190 + $0x624] sm:$0xff]
        %v448 = vld [vmem:[%s190 + $0x62c] sm:$0xf]
        %v449 = vld [vmem:[%s190 + $0x630] sm:$0xff]
        %v450 = vld [vmem:[%s190 + $0x638] sm:$0xff]
        %v451 = vld [vmem:[%s190 + $0x640] sm:$0xff]
        %v452 = vld [vmem:[%s190 + $0x648] sm:$0xff]
        %v453 = vld [vmem:[%s190 + $0x650] sm:$0xff]
        %v454 = vld [vmem:[%s190 + $0x658] sm:$0xff]
        %v455 = vld [vmem:[%s190 + $0x660] sm:$0xff]
        %v456 = vld [vmem:[%s190 + $0x668] sm:$0xff]
        %v457 = vld [vmem:[%s190 + $0x670] sm:$0xff]
        %v458 = vld [vmem:[%s190 + $0x678] sm:$0xff]
        %v459 = vld [vmem:[%s190 + $0x680] sm:$0xff]
        %v460 = vld [vmem:[%s190 + $0x688] sm:$0xff]
        %v461 = vld [vmem:[%s190 + $0x690] sm:$0xff]
        %v462 = vld [vmem:[%s190 + $0x698] sm:$0xff]
        %v463 = vld [vmem:[%s190 + $0x6a0] sm:$0xff]
        %v464 = vld [vmem:[%s190 + $0x6a8] sm:$0xff]
        %v465 = vld [vmem:[%s190 + $0x6b0] sm:$0xf]
        %v466 = vld [vmem:[%s190 + $0x6b4] sm:$0xff]
        %v467 = vld [vmem:[%s190 + $0x6bc] sm:$0xff]
        %v468 = vld [vmem:[%s190 + $0x6c4] sm:$0xff]
        %v469 = vld [vmem:[%s190 + $0x6cc] sm:$0xff]
        %v470 = vld [vmem:[%s190 + $0x6d4] sm:$0xff]
        %v471 = vld [vmem:[%s190 + $0x6dc] sm:$0xff]
        %v472 = vld [vmem:[%s190 + $0x6e4] sm:$0xff]
        %v473 = vld [vmem:[%s190 + $0x6ec] sm:$0xff]
        %v474 = vld [vmem:[%s190 + $0x6f4] sm:$0xff]
        %v475 = vld [vmem:[%s190 + $0x6fc] sm:$0xff]
        %v476 = vld [vmem:[%s190 + $0x704] sm:$0xff]
        %v477 = vld [vmem:[%s190 + $0x70c] sm:$0xff]
        %v478 = vld [vmem:[%s190 + $0x714] sm:$0xff]
        %v479 = vld [vmem:[%s190 + $0x71c] sm:$0xff]
        %v480 = vld [vmem:[%s190 + $0x724] sm:$0xff]
        %v481 = vld [vmem:[%s190 + $0x72c] sm:$0xff]
        %v482 = vld [vmem:[%s190 + $0x734] sm:$0xf]
        %v483 = vld [vmem:[%s190 + $0x738] sm:$0xff]
        %v484 = vld [vmem:[%s190 + $0x740] sm:$0xff]
        %v485 = vld [vmem:[%s190 + $0x748] sm:$0xff]
        %v486 = vld [vmem:[%s190 + $0x750] sm:$0xff]
        %v487 = vld [vmem:[%s190 + $0x758] sm:$0xff]
        %v488 = vld [vmem:[%s190 + $0x760] sm:$0xff]
        %v489 = vld [vmem:[%s190 + $0x768] sm:$0xff]
        %v490 = vld [vmem:[%s190 + $0x770] sm:$0xff]
        %v491 = vld [vmem:[%s190 + $0x778] sm:$0xff]
        %v492 = vld [vmem:[%s190 + $0x780] sm:$0xff]
        %v493 = vld [vmem:[%s190 + $0x788] sm:$0xff]
        %v494 = vld [vmem:[%s190 + $0x790] sm:$0xff]
        %v495 = vld [vmem:[%s190 + $0x798] sm:$0xff]
        %v496 = vld [vmem:[%s190 + $0x7a0] sm:$0xff]
        %v497 = vld [vmem:[%s190 + $0x7a8] sm:$0xff]
        %v498 = vld [vmem:[%s190 + $0x7b0] sm:$0xff]
        %v499 = vld [vmem:[%s190 + $0x7b8] sm:$0xf]
        %v500 = vld [vmem:[%s190 + $0x7bc] sm:$0xff]
        %v501 = vld [vmem:[%s190 + $0x7c4] sm:$0xff]
        %v502 = vld [vmem:[%s190 + $0x7cc] sm:$0xff]
        %v503 = vld [vmem:[%s190 + $0x7d4] sm:$0xff]
        %v504 = vld [vmem:[%s190 + $0x7dc] sm:$0xff]
        %v505 = vld [vmem:[%s190 + $0x7e4] sm:$0xff]
        %v506 = vld [vmem:[%s190 + $0x7ec] sm:$0xff]
        %v507 = vld [vmem:[%s190 + $0x7f4] sm:$0xff]
        %v508 = vld [vmem:[%s190 + $0x7fc] sm:$0xff]
        %v509 = vld [vmem:[%s190 + $0x804] sm:$0xff]
        %v510 = vld [vmem:[%s190 + $0x80c] sm:$0xff]
        %v511 = vld [vmem:[%s190 + $0x814] sm:$0xff]
        %v512 = vld [vmem:[%s190 + $0x81c] sm:$0xff]
        %v513 = vld [vmem:[%s190 + $0x824] sm:$0xff]
        %v514 = vld [vmem:[%s190 + $0x82c] sm:$0xff]
        %v515 = vld [vmem:[%s190 + $0x834] sm:$0xff]
        %v516 = vld [vmem:[%s190 + $0x83c] sm:$0xf]
        %v517 = vld [vmem:[%s190 + $0x840] sm:$0xff]
        %v518 = vld [vmem:[%s190 + $0x848] sm:$0xff]
        %v519 = vld [vmem:[%s190 + $0x850] sm:$0xff]
        %v520 = vld [vmem:[%s190 + $0x858] sm:$0xff]
        %v521 = vld [vmem:[%s190 + $0x860] sm:$0xff]
        %v522 = vld [vmem:[%s190 + $0x868] sm:$0xff]
        %v523 = vld [vmem:[%s190 + $0x870] sm:$0xff]
        %v524 = vld [vmem:[%s190 + $0x878] sm:$0xff]
        %v525 = vld [vmem:[%s190 + $0x880] sm:$0xff]
        %v526 = vld [vmem:[%s190 + $0x888] sm:$0xff]
        %v527 = vld [vmem:[%s190 + $0x890] sm:$0xff]
        %v528 = vld [vmem:[%s190 + $0x898] sm:$0xff]
        %v529 = vld [vmem:[%s190 + $0x8a0] sm:$0xff]
        %v530 = vld [vmem:[%s190 + $0x8a8] sm:$0xff]
        %v531 = vld [vmem:[%s190 + $0x8b0] sm:$0xff]
        %v532 = vld [vmem:[%s190 + $0x8b8] sm:$0xff]
        %v533 = vld [vmem:[%s190 + $0x8c0] sm:$0xf]
        %v534 = vld [vmem:[%s190 + $0x8c4] sm:$0xff]
        %v535 = vld [vmem:[%s190 + $0x8cc] sm:$0xff]
        %v536 = vld [vmem:[%s190 + $0x8d4] sm:$0xff]
        %v537 = vld [vmem:[%s190 + $0x8dc] sm:$0xff]
        %v538 = vld [vmem:[%s190 + $0x8e4] sm:$0xff]
        %v539 = vld [vmem:[%s190 + $0x8ec] sm:$0xff]
        %v540 = vld [vmem:[%s190 + $0x8f4] sm:$0xff]
        %v541 = vld [vmem:[%s190 + $0x8fc] sm:$0xff]
        %v542 = vld [vmem:[%s190 + $0x904] sm:$0xff]
        %v543 = vld [vmem:[%s190 + $0x90c] sm:$0xff]
        %v544 = vld [vmem:[%s190 + $0x914] sm:$0xff]
        %v545 = vld [vmem:[%s190 + $0x91c] sm:$0xff]
        %v546 = vld [vmem:[%s190 + $0x924] sm:$0xff]
        %v547 = vld [vmem:[%s190 + $0x92c] sm:$0xff]
        %v548 = vld [vmem:[%s190 + $0x934] sm:$0xff]
        %v549 = vld [vmem:[%s190 + $0x93c] sm:$0xff]
        %v550 = vld [vmem:[%s190 + $0x944] sm:$0xf]
        %v551 = vld [vmem:[%s190 + $0x948] sm:$0xff]
        %v552 = vld [vmem:[%s190 + $0x950] sm:$0xff]
        %v553 = vld [vmem:[%s190 + $0x958] sm:$0xff]
        %v554 = vld [vmem:[%s190 + $0x960] sm:$0xff]
        %v555 = vld [vmem:[%s190 + $0x968] sm:$0xff]
        %v556 = vld [vmem:[%s190 + $0x970] sm:$0xff]
        %v557 = vld [vmem:[%s190 + $0x978] sm:$0xff]
        %v558 = vld [vmem:[%s190 + $0x980] sm:$0xff]
        %v559 = vld [vmem:[%s190 + $0x988] sm:$0xff]
        %v560 = vld [vmem:[%s190 + $0x990] sm:$0xff]
        %v561 = vld [vmem:[%s190 + $0x998] sm:$0xff]
        %v562 = vld [vmem:[%s190 + $0x9a0] sm:$0xff]
        %v563 = vld [vmem:[%s190 + $0x9a8] sm:$0xff]
        %v564 = vld [vmem:[%s190 + $0x9b0] sm:$0xff]
        %v565 = vld [vmem:[%s190 + $0x9b8] sm:$0xff]
        %v566 = vld [vmem:[%s190 + $0x9c0] sm:$0xff]
        %v567 = vld [vmem:[%s190 + $0x9c8] sm:$0xf]
        %v568 = vld [vmem:[%s190 + $0x9cc] sm:$0xff]
        %v569 = vld [vmem:[%s190 + $0x9d4] sm:$0xff]
        %v570 = vld [vmem:[%s190 + $0x9dc] sm:$0xff]
        %v571 = vld [vmem:[%s190 + $0x9e4] sm:$0xff]
        %v572 = vld [vmem:[%s190 + $0x9ec] sm:$0xff]
        %v573 = vld [vmem:[%s190 + $0x9f4] sm:$0xff]
        %v574 = vld [vmem:[%s190 + $0x9fc] sm:$0xff]
        %v575 = vld [vmem:[%s190 + $0xa04] sm:$0xff]
        %v576 = vld [vmem:[%s190 + $0xa0c] sm:$0xff]
        %v577 = vld [vmem:[%s190 + $0xa14] sm:$0xff]
        %v578 = vld [vmem:[%s190 + $0xa1c] sm:$0xff]
        %v579 = vld [vmem:[%s190 + $0xa24] sm:$0xff]
        %v580 = vld [vmem:[%s190 + $0xa2c] sm:$0xff]
        %v581 = vld [vmem:[%s190 + $0xa34] sm:$0xff]
        %v582 = vld [vmem:[%s190 + $0xa3c] sm:$0xff]
        %v583 = vld [vmem:[%s190 + $0xa44] sm:$0xff]
        %v584 = vld [vmem:[%s190 + $0xa4c] sm:$0xf]
        %v585 = vld [vmem:[%s190 + $0xa50] sm:$0xff]
        %v586 = vld [vmem:[%s190 + $0xa58] sm:$0xff]
        %v587 = vld [vmem:[%s190 + $0xa60] sm:$0xff]
        %v588 = vld [vmem:[%s190 + $0xa68] sm:$0xff]
        %v589 = vld [vmem:[%s190 + $0xa70] sm:$0xff]
        %v590 = vld [vmem:[%s190 + $0xa78] sm:$0xff]
        %v591 = vld [vmem:[%s190 + $0xa80] sm:$0xff]
        %v592 = vld [vmem:[%s190 + $0xa88] sm:$0xff]
        %v593 = vld [vmem:[%s190 + $0xa90] sm:$0xff]
        %v594 = vld [vmem:[%s190 + $0xa98] sm:$0xff]
        %v595 = vld [vmem:[%s190 + $0xaa0] sm:$0xff]
        %v596 = vld [vmem:[%s190 + $0xaa8] sm:$0xff]
        %v597 = vld [vmem:[%s190 + $0xab0] sm:$0xff]
        %v598 = vld [vmem:[%s190 + $0xab8] sm:$0xff]
        %v599 = vld [vmem:[%s190 + $0xac0] sm:$0xff]
        %v600 = vld [vmem:[%s190 + $0xac8] sm:$0xff]
        %v601 = vld [vmem:[%s190 + $0xad0] sm:$0xf]
        %v602 = vld [vmem:[%s190 + $0xad4] sm:$0xff]
        %v603 = vld [vmem:[%s190 + $0xadc] sm:$0xff]
        %v604 = vld [vmem:[%s190 + $0xae4] sm:$0xff]
        %v605 = vld [vmem:[%s190 + $0xaec] sm:$0xff]
        %v606 = vld [vmem:[%s190 + $0xaf4] sm:$0xff]
        %v607 = vld [vmem:[%s190 + $0xafc] sm:$0xff]
        %v608 = vld [vmem:[%s190 + $0xb04] sm:$0xff]
        %v609 = vld [vmem:[%s190 + $0xb0c] sm:$0xff]
        %v610 = vld [vmem:[%s190 + $0xb14] sm:$0xff]
        %v611 = vld [vmem:[%s190 + $0xb1c] sm:$0xff]
        %v612 = vld [vmem:[%s190 + $0xb24] sm:$0xff]
        %v613 = vld [vmem:[%s190 + $0xb2c] sm:$0xff]
        %v614 = vld [vmem:[%s190 + $0xb34] sm:$0xff]
        %v615 = vld [vmem:[%s190 + $0xb3c] sm:$0xff]
        %v616 = vld [vmem:[%s190 + $0xb44] sm:$0xff]
        %v617 = vld [vmem:[%s190 + $0xb4c] sm:$0xff]
        %v618 = vld [vmem:[%s190 + $0xb54] sm:$0xf]
        %v619 = vld [vmem:[%s190 + $0xb58] sm:$0xff]
        %v620 = vld [vmem:[%s190 + $0xb60] sm:$0xff]
        %v621 = vld [vmem:[%s190 + $0xb68] sm:$0xff]
        %v622 = vld [vmem:[%s190 + $0xb70] sm:$0xff]
        %v623 = vld [vmem:[%s190 + $0xb78] sm:$0xff]
        %v624 = vld [vmem:[%s190 + $0xb80] sm:$0xff]
        %v625 = vld [vmem:[%s190 + $0xb88] sm:$0xff]
        %v626 = vld [vmem:[%s190 + $0xb90] sm:$0xff]
        %v627 = vld [vmem:[%s190 + $0xb98] sm:$0xff]
        %v628 = vld [vmem:[%s190 + $0xba0] sm:$0xff]
        %v629 = vld [vmem:[%s190 + $0xba8] sm:$0xff]
        %v630 = vld [vmem:[%s190 + $0xbb0] sm:$0xff]
        %v631 = vld [vmem:[%s190 + $0xbb8] sm:$0xff]
        %v632 = vld [vmem:[%s190 + $0xbc0] sm:$0xff]
        %v633 = vld [vmem:[%s190 + $0xbc8] sm:$0xff]
        %v634 = vld [vmem:[%s190 + $0xbd0] sm:$0xff]
        %v635 = vld [vmem:[%s190 + $0xbd8] sm:$0xf]
        %v636 = vld [vmem:[%s190 + $0xbdc] sm:$0xff]
        %v637 = vld [vmem:[%s190 + $0xbe4] sm:$0xff]
        %v638 = vld [vmem:[%s190 + $0xbec] sm:$0xff]
        %v639 = vld [vmem:[%s190 + $0xbf4] sm:$0xff]
        %v640 = vld [vmem:[%s190 + $0xbfc] sm:$0xff]
        %v641 = vld [vmem:[%s190 + $0xc04] sm:$0xff]
        %v642 = vld [vmem:[%s190 + $0xc0c] sm:$0xff]
        %v643 = vld [vmem:[%s190 + $0xc14] sm:$0xff]
        %v644 = vld [vmem:[%s190 + $0xc1c] sm:$0xff]
        %v645 = vld [vmem:[%s190 + $0xc24] sm:$0xff]
        %v646 = vld [vmem:[%s190 + $0xc2c] sm:$0xff]
        %v647 = vld [vmem:[%s190 + $0xc34] sm:$0xff]
        %v648 = vld [vmem:[%s190 + $0xc3c] sm:$0xff]
        %v649 = vld [vmem:[%s190 + $0xc44] sm:$0xff]
        %v650 = vld [vmem:[%s190 + $0xc4c] sm:$0xff]
        %v651 = vld [vmem:[%s190 + $0xc54] sm:$0xff]
        %v652 = vld [vmem:[%s190 + $0xc5c] sm:$0xf]
        %v653 = vld [vmem:[%s190 + $0xc60] sm:$0xff]
        %v654 = vld [vmem:[%s190 + $0xc68] sm:$0xff]
        %v655 = vld [vmem:[%s190 + $0xc70] sm:$0xff]
        %v656 = vld [vmem:[%s190 + $0xc78] sm:$0xff]
        %v657 = vld [vmem:[%s190 + $0xc80] sm:$0xff]
        %v658 = vld [vmem:[%s190 + $0xc88] sm:$0xff]
        %v659 = vld [vmem:[%s190 + $0xc90] sm:$0xff]
        %v660 = vld [vmem:[%s190 + $0xc98] sm:$0xff]
        %v661 = vld [vmem:[%s190 + $0xca0] sm:$0xff]
        %v662 = vld [vmem:[%s190 + $0xca8] sm:$0xff]
        %v663 = vld [vmem:[%s190 + $0xcb0] sm:$0xff]
        %v664 = vld [vmem:[%s190 + $0xcb8] sm:$0xff]
        %v665 = vld [vmem:[%s190 + $0xcc0] sm:$0xff]
        %v666 = vld [vmem:[%s190 + $0xcc8] sm:$0xff]
        %v667 = vld [vmem:[%s190 + $0xcd0] sm:$0xff]
        %v668 = vld [vmem:[%s190 + $0xcd8] sm:$0xff]
        %v669 = vld [vmem:[%s190 + $0xce0] sm:$0xf]
        %v670 = vld [vmem:[%s190 + $0xce4] sm:$0xff]
        %v671 = vld [vmem:[%s190 + $0xcec] sm:$0xff]
        %v672 = vld [vmem:[%s190 + $0xcf4] sm:$0xff]
        %v673 = vld [vmem:[%s190 + $0xcfc] sm:$0xff]
        %v674 = vld [vmem:[%s190 + $0xd04] sm:$0xff]
        %v675 = vld [vmem:[%s190 + $0xd0c] sm:$0xff]
        %v676 = vld [vmem:[%s190 + $0xd14] sm:$0xff]
        %v677 = vld [vmem:[%s190 + $0xd1c] sm:$0xff]
        %v678 = vld [vmem:[%s190 + $0xd24] sm:$0xff]
        %v679 = vld [vmem:[%s190 + $0xd2c] sm:$0xff]
        %v680 = vld [vmem:[%s190 + $0xd34] sm:$0xff]
        %v681 = vld [vmem:[%s190 + $0xd3c] sm:$0xff]
        %v682 = vld [vmem:[%s190 + $0xd44] sm:$0xff]
        %v683 = vld [vmem:[%s190 + $0xd4c] sm:$0xff]
        %v684 = vld [vmem:[%s190 + $0xd54] sm:$0xff]
        %v685 = vld [vmem:[%s190 + $0xd5c] sm:$0xff]
        %v686 = vld [vmem:[%s190 + $0xd64] sm:$0xf]
        %v687 = vld [vmem:[%s190 + $0xd68] sm:$0xff]
        %v688 = vld [vmem:[%s190 + $0xd70] sm:$0xff]
        %v689 = vld [vmem:[%s190 + $0xd78] sm:$0xff]
        %v690 = vld [vmem:[%s190 + $0xd80] sm:$0xff]
        %v691 = vld [vmem:[%s190 + $0xd88] sm:$0xff]
        %v692 = vld [vmem:[%s190 + $0xd90] sm:$0xff]
        %v693 = vld [vmem:[%s190 + $0xd98] sm:$0xff]
        %v694 = vld [vmem:[%s190 + $0xda0] sm:$0xff]
        %v695 = vld [vmem:[%s190 + $0xda8] sm:$0xff]
        %v696 = vld [vmem:[%s190 + $0xdb0] sm:$0xff]
        %v697 = vld [vmem:[%s190 + $0xdb8] sm:$0xff]
        %v698 = vld [vmem:[%s190 + $0xdc0] sm:$0xff]
        %v699 = vld [vmem:[%s190 + $0xdc8] sm:$0xff]
        %v700 = vld [vmem:[%s190 + $0xdd0] sm:$0xff]
        %v701 = vld [vmem:[%s190 + $0xdd8] sm:$0xff]
        %v702 = vld [vmem:[%s190 + $0xde0] sm:$0xff]
        %v703 = vld [vmem:[%s190 + $0xde8] sm:$0xf]
        %v704 = vld [vmem:[%s190 + $0xdec] sm:$0xff]
        %v705 = vld [vmem:[%s190 + $0xdf4] sm:$0xff]
        %v706 = vld [vmem:[%s190 + $0xdfc] sm:$0xff]
        %v707 = vld [vmem:[%s190 + $0xe04] sm:$0xff]
        %v708 = vld [vmem:[%s190 + $0xe0c] sm:$0xff]
        %v709 = vld [vmem:[%s190 + $0xe14] sm:$0xff]
        %v710 = vld [vmem:[%s190 + $0xe1c] sm:$0xff]
        %v711 = vld [vmem:[%s190 + $0xe24] sm:$0xff]
        %v712 = vld [vmem:[%s190 + $0xe2c] sm:$0xff]
        %v713 = vld [vmem:[%s190 + $0xe34] sm:$0xff]
        %v714 = vld [vmem:[%s190 + $0xe3c] sm:$0xff]
        %v715 = vld [vmem:[%s190 + $0xe44] sm:$0xff]
        %v716 = vld [vmem:[%s190 + $0xe4c] sm:$0xff]
        %v717 = vld [vmem:[%s190 + $0xe54] sm:$0xff]
        %v718 = vld [vmem:[%s190 + $0xe5c] sm:$0xff]
        %v719 = vld [vmem:[%s190 + $0xe64] sm:$0xff]
        %v720 = vld [vmem:[%s190 + $0xe6c] sm:$0xf]
        %v721 = vld [vmem:[%s190 + $0xe70] sm:$0xff]
        %v722 = vld [vmem:[%s190 + $0xe78] sm:$0xff]
        %v723 = vld [vmem:[%s190 + $0xe80] sm:$0xff]
        %v724 = vld [vmem:[%s190 + $0xe88] sm:$0xff]
        %v725 = vld [vmem:[%s190 + $0xe90] sm:$0xff]
        %v726 = vld [vmem:[%s190 + $0xe98] sm:$0xff]
        %v727 = vld [vmem:[%s190 + $0xea0] sm:$0xff]
        %v728 = vld [vmem:[%s190 + $0xea8] sm:$0xff]
        %v729 = vld [vmem:[%s190 + $0xeb0] sm:$0xff]
        %v730 = vld [vmem:[%s190 + $0xeb8] sm:$0xff]
        %v731 = vld [vmem:[%s190 + $0xec0] sm:$0xff]
        %v732 = vld [vmem:[%s190 + $0xec8] sm:$0xff]
        %v733 = vld [vmem:[%s190 + $0xed0] sm:$0xff]
        %v734 = vld [vmem:[%s190 + $0xed8] sm:$0xff]
        %v735 = vld [vmem:[%s190 + $0xee0] sm:$0xff]
        %v736 = vld [vmem:[%s190 + $0xee8] sm:$0xff]
        %v737 = vld [vmem:[%s190 + $0xef0] sm:$0xf]
        %v738 = vld [vmem:[%s190 + $0xef4] sm:$0xff]
        %v739 = vld [vmem:[%s190 + $0xefc] sm:$0xff]
        %v740 = vld [vmem:[%s190 + $0xf04] sm:$0xff]
        %v741 = vld [vmem:[%s190 + $0xf0c] sm:$0xff]
        %v742 = vld [vmem:[%s190 + $0xf14] sm:$0xff]
        %v743 = vld [vmem:[%s190 + $0xf1c] sm:$0xff]
        %v744 = vld [vmem:[%s190 + $0xf24] sm:$0xff]
        %v745 = vld [vmem:[%s190 + $0xf2c] sm:$0xff]
        %v746 = vld [vmem:[%s190 + $0xf34] sm:$0xff]
        %v747 = vld [vmem:[%s190 + $0xf3c] sm:$0xff]
        %v748 = vld [vmem:[%s190 + $0xf44] sm:$0xff]
        %v749 = vld [vmem:[%s190 + $0xf4c] sm:$0xff]
        %v750 = vld [vmem:[%s190 + $0xf54] sm:$0xff]
        %v751 = vld [vmem:[%s190 + $0xf5c] sm:$0xff]
        %v752 = vld [vmem:[%s190 + $0xf64] sm:$0xff]
        %v753 = vld [vmem:[%s190 + $0xf6c] sm:$0xff]
        %v754 = vld [vmem:[%s190 + $0xf74] sm:$0xf]
        %v755 = vld [vmem:[%s190 + $0xf78] sm:$0xff]
        %v756 = vld [vmem:[%s190 + $0xf80] sm:$0xff]
        %v757 = vld [vmem:[%s190 + $0xf88] sm:$0xff]
        %v758 = vld [vmem:[%s190 + $0xf90] sm:$0xff]
        %v759 = vld [vmem:[%s190 + $0xf98] sm:$0xff]
        %v760 = vld [vmem:[%s190 + $0xfa0] sm:$0xff]
        %v761 = vld [vmem:[%s190 + $0xfa8] sm:$0xff]
        %v762 = vld [vmem:[%s190 + $0xfb0] sm:$0xff]
        %v763 = vld [vmem:[%s190 + $0xfb8] sm:$0xff]
        %v764 = vld [vmem:[%s190 + $0xfc0] sm:$0xff]
        %v765 = vld [vmem:[%s190 + $0xfc8] sm:$0xff]
        %v766 = vld [vmem:[%s190 + $0xfd0] sm:$0xff]
        %v767 = vld [vmem:[%s190 + $0xfd8] sm:$0xff]
        %v768 = vld [vmem:[%s190 + $0xfe0] sm:$0xff]
        %v769 = vld [vmem:[%s190 + $0xfe8] sm:$0xff]
        %v770 = vld [vmem:[%s190 + $0xff0] sm:$0xff]
        %v771 = vld [vmem:[%s190 + $0xff8] sm:$0xf]
        %v772 = vld [vmem:[%s190 + $0xffc] sm:$0xff]
        %v773 = vld [vmem:[%s190 + $0x1004] sm:$0xff]
        %v774 = vld [vmem:[%s190 + $0x100c] sm:$0xff]
        %v775 = vld [vmem:[%s190 + $0x1014] sm:$0xff]
        %v776 = vld [vmem:[%s190 + $0x101c] sm:$0xff]
        %v777 = vld [vmem:[%s190 + $0x1024] sm:$0xff]
        %v778 = vld [vmem:[%s190 + $0x102c] sm:$0xff]
        %v779 = vld [vmem:[%s190 + $0x1034] sm:$0xff]
        %v780 = vld [vmem:[%s190 + $0x103c] sm:$0xff]
        %v781 = vld [vmem:[%s190 + $0x1044] sm:$0xff]
        %v782 = vld [vmem:[%s190 + $0x104c] sm:$0xff]
        %v783 = vld [vmem:[%s190 + $0x1054] sm:$0xff]
        %v784 = vld [vmem:[%s190 + $0x105c] sm:$0xff]
        %v785 = vld [vmem:[%s190 + $0x1064] sm:$0xff]
        %v786 = vld [vmem:[%s190 + $0x106c] sm:$0xff]
        %v787 = vld [vmem:[%s190 + $0x1074] sm:$0xff]
        %v788 = vld [vmem:[%s190 + $0x107c] sm:$0xf]
        %v789 = vld [vmem:[%s199] sm:$0xff]
        %v790 = vld [vmem:[%s199 + $0x8] sm:$0xff]
        %v791 = vld [vmem:[%s199 + $0x10] sm:$0xff]
        %v792 = vld [vmem:[%s199 + $0x18] sm:$0xff]
        %v793 = vld [vmem:[%s199 + $0x20] sm:$0x1]
        %v799 = vlaneseq
        %v800 = vshrl.u32 %v799, 7
        %v801 = vsub.s32 0, %v800
        %v802 = vrot.slane %v789, %v801
        %v803 = vlaneseq
        %v804 = vshrl.u32 %v803, 7
        %v805 = vsub.s32 1, %v804
        %v806 = vrot.slane %v789, %v805
        %v807 = vlaneseq
        %v808 = vshrl.u32 %v807, 7
        %v809 = vsub.s32 2, %v808
        %v810 = vrot.slane %v789, %v809
        %v811 = vlaneseq
        %v812 = vshrl.u32 %v811, 7
        %v813 = vsub.s32 3, %v812
        %v814 = vrot.slane %v789, %v813
        %v815 = vlaneseq
        %v816 = vshrl.u32 %v815, 7
        %v817 = vsub.s32 4, %v816
        %v818 = vrot.slane %v789, %v817
        %v819 = vlaneseq
        %v820 = vshrl.u32 %v819, 7
        %v821 = vsub.s32 5, %v820
        %v822 = vrot.slane %v789, %v821
        %v823 = vlaneseq
        %v824 = vshrl.u32 %v823, 7
        %v825 = vsub.s32 6, %v824
        %v826 = vrot.slane %v789, %v825
        %v827 = vlaneseq
        %v828 = vshrl.u32 %v827, 7
        %v829 = vsub.s32 7, %v828
        %v830 = vrot.slane %v789, %v829
        %v831 = vlaneseq
        %v832 = vshrl.u32 %v831, 7
        %v833 = vsub.s32 0, %v832
        %v834 = vrot.slane %v790, %v833
        %v835 = vlaneseq
        %v836 = vshrl.u32 %v835, 7
        %v837 = vsub.s32 1, %v836
        %v838 = vrot.slane %v790, %v837
        %v839 = vlaneseq
        %v840 = vshrl.u32 %v839, 7
        %v841 = vsub.s32 2, %v840
        %v842 = vrot.slane %v790, %v841
        %v843 = vlaneseq
        %v844 = vshrl.u32 %v843, 7
        %v845 = vsub.s32 3, %v844
        %v846 = vrot.slane %v790, %v845
        %v847 = vlaneseq
        %v848 = vshrl.u32 %v847, 7
        %v849 = vsub.s32 4, %v848
        %v850 = vrot.slane %v790, %v849
        %v851 = vlaneseq
        %v852 = vshrl.u32 %v851, 7
        %v853 = vsub.s32 5, %v852
        %v854 = vrot.slane %v790, %v853
        %v855 = vlaneseq
        %v856 = vshrl.u32 %v855, 7
        %v857 = vsub.s32 6, %v856
        %v858 = vrot.slane %v790, %v857
        %v859 = vlaneseq
        %v860 = vshrl.u32 %v859, 7
        %v861 = vsub.s32 7, %v860
        %v862 = vrot.slane %v790, %v861
        %v863 = vlaneseq
        %v864 = vshrl.u32 %v863, 7
        %v865 = vsub.s32 0, %v864
        %v866 = vrot.slane %v791, %v865
        %v867 = vlaneseq
        %v868 = vshrl.u32 %v867, 7
        %v869 = vsub.s32 1, %v868
        %v870 = vrot.slane %v791, %v869
        %v871 = vlaneseq
        %v872 = vshrl.u32 %v871, 7
        %v873 = vsub.s32 2, %v872
        %v874 = vrot.slane %v791, %v873
        %v875 = vlaneseq
        %v876 = vshrl.u32 %v875, 7
        %v877 = vsub.s32 3, %v876
        %v878 = vrot.slane %v791, %v877
        %v879 = vlaneseq
        %v880 = vshrl.u32 %v879, 7
        %v881 = vsub.s32 4, %v880
        %v882 = vrot.slane %v791, %v881
        %v883 = vlaneseq
        %v884 = vshrl.u32 %v883, 7
        %v885 = vsub.s32 5, %v884
        %v886 = vrot.slane %v791, %v885
        %v887 = vlaneseq
        %v888 = vshrl.u32 %v887, 7
        %v889 = vsub.s32 6, %v888
        %v890 = vrot.slane %v791, %v889
        %v891 = vlaneseq
        %v892 = vshrl.u32 %v891, 7
        %v893 = vsub.s32 7, %v892
        %v894 = vrot.slane %v791, %v893
        %v895 = vlaneseq
        %v896 = vshrl.u32 %v895, 7
        %v897 = vsub.s32 0, %v896
        %v898 = vrot.slane %v792, %v897
        %v899 = vlaneseq
        %v900 = vshrl.u32 %v899, 7
        %v901 = vsub.s32 1, %v900
        %v902 = vrot.slane %v792, %v901
        %v903 = vlaneseq
        %v904 = vshrl.u32 %v903, 7
        %v905 = vsub.s32 2, %v904
        %v906 = vrot.slane %v792, %v905
        %v907 = vlaneseq
        %v908 = vshrl.u32 %v907, 7
        %v909 = vsub.s32 3, %v908
        %v910 = vrot.slane %v792, %v909
        %v911 = vlaneseq
        %v912 = vshrl.u32 %v911, 7
        %v913 = vsub.s32 4, %v912
        %v914 = vrot.slane %v792, %v913
        %v915 = vlaneseq
        %v916 = vshrl.u32 %v915, 7
        %v917 = vsub.s32 5, %v916
        %v918 = vrot.slane %v792, %v917
        %v919 = vlaneseq
        %v920 = vshrl.u32 %v919, 7
        %v921 = vsub.s32 6, %v920
        %v922 = vrot.slane %v792, %v921
        %v923 = vlaneseq
        %v924 = vshrl.u32 %v923, 7
        %v925 = vsub.s32 7, %v924
        %v926 = vrot.slane %v792, %v925
        %v927 = vlaneseq
        %v928 = vshrl.u32 %v927, 7
        %v929 = vsub.s32 0, %v928
        %v930 = vrot.slane %v793, %v929
        %v1508 = vunpack.c.l.b16 %v245
        %v1509 = vunpack.c.h.b16 %v245
        %v1510 = vunpack.c.l.b16 %v246
        %v1511 = vunpack.c.h.b16 %v246
        %v1512 = vunpack.c.l.b16 %v247
        %v1513 = vunpack.c.h.b16 %v247
        %v1514 = vunpack.c.l.b16 %v248
        %v1515 = vunpack.c.h.b16 %v248
        %v1516 = vunpack.c.l.b16 %v249
        %v1517 = vunpack.c.h.b16 %v249
        %v1518 = vunpack.c.l.b16 %v250
        %v1519 = vunpack.c.h.b16 %v250
        %v1520 = vunpack.c.l.b16 %v251
        %v1521 = vunpack.c.h.b16 %v251
        %v1522 = vunpack.c.l.b16 %v252
        %v1523 = vunpack.c.h.b16 %v252
        %v1524 = vunpack.c.l.b16 %v253
        %v1525 = vunpack.c.h.b16 %v253
        %v1526 = vunpack.c.l.b16 %v254
        %v1527 = vunpack.c.h.b16 %v254
        %v1528 = vunpack.c.l.b16 %v255
        %v1529 = vunpack.c.h.b16 %v255
        %v1530 = vunpack.c.l.b16 %v256
        %v1531 = vunpack.c.h.b16 %v256
        %v1532 = vunpack.c.l.b16 %v257
        %v1533 = vunpack.c.h.b16 %v257
        %v1534 = vunpack.c.l.b16 %v258
        %v1535 = vunpack.c.h.b16 %v258
        %v1536 = vunpack.c.l.b16 %v259
        %v1537 = vunpack.c.h.b16 %v259
        %v1538 = vunpack.c.l.b16 %v260
        %v1539 = vunpack.c.h.b16 %v260
        %v1540 = vunpack.c.l.b16 %v261
        %v1541 = vunpack.c.l.b16 %v262
        %v1542 = vunpack.c.h.b16 %v262
        %v1543 = vunpack.c.l.b16 %v263
        %v1544 = vunpack.c.h.b16 %v263
        %v1545 = vunpack.c.l.b16 %v264
        %v1546 = vunpack.c.h.b16 %v264
        %v1547 = vunpack.c.l.b16 %v265
        %v1548 = vunpack.c.h.b16 %v265
        %v1549 = vunpack.c.l.b16 %v266
        %v1550 = vunpack.c.h.b16 %v266
        %v1551 = vunpack.c.l.b16 %v267
        %v1552 = vunpack.c.h.b16 %v267
        %v1553 = vunpack.c.l.b16 %v268
        %v1554 = vunpack.c.h.b16 %v268
        %v1555 = vunpack.c.l.b16 %v269
        %v1556 = vunpack.c.h.b16 %v269
        %v1557 = vunpack.c.l.b16 %v270
        %v1558 = vunpack.c.h.b16 %v270
        %v1559 = vunpack.c.l.b16 %v271
        %v1560 = vunpack.c.h.b16 %v271
        %v1561 = vunpack.c.l.b16 %v272
        %v1562 = vunpack.c.h.b16 %v272
        %v1563 = vunpack.c.l.b16 %v273
        %v1564 = vunpack.c.h.b16 %v273
        %v1565 = vunpack.c.l.b16 %v274
        %v1566 = vunpack.c.h.b16 %v274
        %v1567 = vunpack.c.l.b16 %v275
        %v1568 = vunpack.c.h.b16 %v275
        %v1569 = vunpack.c.l.b16 %v276
        %v1570 = vunpack.c.h.b16 %v276
        %v1571 = vunpack.c.l.b16 %v277
        %v1572 = vunpack.c.h.b16 %v277
        %v1573 = vunpack.c.l.b16 %v278
        %v1574 = vunpack.c.l.b16 %v279
        %v1575 = vunpack.c.h.b16 %v279
        %v1576 = vunpack.c.l.b16 %v280
        %v1577 = vunpack.c.h.b16 %v280
        %v1578 = vunpack.c.l.b16 %v281
        %v1579 = vunpack.c.h.b16 %v281
        %v1580 = vunpack.c.l.b16 %v282
        %v1581 = vunpack.c.h.b16 %v282
        %v1582 = vunpack.c.l.b16 %v283
        %v1583 = vunpack.c.h.b16 %v283
        %v1584 = vunpack.c.l.b16 %v284
        %v1585 = vunpack.c.h.b16 %v284
        %v1586 = vunpack.c.l.b16 %v285
        %v1587 = vunpack.c.h.b16 %v285
        %v1588 = vunpack.c.l.b16 %v286
        %v1589 = vunpack.c.h.b16 %v286
        %v1590 = vunpack.c.l.b16 %v287
        %v1591 = vunpack.c.h.b16 %v287
        %v1592 = vunpack.c.l.b16 %v288
        %v1593 = vunpack.c.h.b16 %v288
        %v1594 = vunpack.c.l.b16 %v289
        %v1595 = vunpack.c.h.b16 %v289
        %v1596 = vunpack.c.l.b16 %v290
        %v1597 = vunpack.c.h.b16 %v290
        %v1598 = vunpack.c.l.b16 %v291
        %v1599 = vunpack.c.h.b16 %v291
        %v1600 = vunpack.c.l.b16 %v292
        %v1601 = vunpack.c.h.b16 %v292
        %v1602 = vunpack.c.l.b16 %v293
        %v1603 = vunpack.c.h.b16 %v293
        %v1604 = vunpack.c.l.b16 %v294
        %v1605 = vunpack.c.h.b16 %v294
        %v1606 = vunpack.c.l.b16 %v295
        %v1607 = vunpack.c.l.b16 %v296
        %v1608 = vunpack.c.h.b16 %v296
        %v1609 = vunpack.c.l.b16 %v297
        %v1610 = vunpack.c.h.b16 %v297
        %v1611 = vunpack.c.l.b16 %v298
        %v1612 = vunpack.c.h.b16 %v298
        %v1613 = vunpack.c.l.b16 %v299
        %v1614 = vunpack.c.h.b16 %v299
        %v1615 = vunpack.c.l.b16 %v300
        %v1616 = vunpack.c.h.b16 %v300
        %v1617 = vunpack.c.l.b16 %v301
        %v1618 = vunpack.c.h.b16 %v301
        %v1619 = vunpack.c.l.b16 %v302
        %v1620 = vunpack.c.h.b16 %v302
        %v1621 = vunpack.c.l.b16 %v303
        %v1622 = vunpack.c.h.b16 %v303
        %v1623 = vunpack.c.l.b16 %v304
        %v1624 = vunpack.c.h.b16 %v304
        %v1625 = vunpack.c.l.b16 %v305
        %v1626 = vunpack.c.h.b16 %v305
        %v1627 = vunpack.c.l.b16 %v306
        %v1628 = vunpack.c.h.b16 %v306
        %v1629 = vunpack.c.l.b16 %v307
        %v1630 = vunpack.c.h.b16 %v307
        %v1631 = vunpack.c.l.b16 %v308
        %v1632 = vunpack.c.h.b16 %v308
        %v1633 = vunpack.c.l.b16 %v309
        %v1634 = vunpack.c.h.b16 %v309
        %v1635 = vunpack.c.l.b16 %v310
        %v1636 = vunpack.c.h.b16 %v310
        %v1637 = vunpack.c.l.b16 %v311
        %v1638 = vunpack.c.h.b16 %v311
        %v1639 = vunpack.c.l.b16 %v312
        %v1640 = vunpack.c.l.b16 %v313
        %v1641 = vunpack.c.h.b16 %v313
        %v1642 = vunpack.c.l.b16 %v314
        %v1643 = vunpack.c.h.b16 %v314
        %v1644 = vunpack.c.l.b16 %v315
        %v1645 = vunpack.c.h.b16 %v315
        %v1646 = vunpack.c.l.b16 %v316
        %v1647 = vunpack.c.h.b16 %v316
        %v1648 = vunpack.c.l.b16 %v317
        %v1649 = vunpack.c.h.b16 %v317
        %v1650 = vunpack.c.l.b16 %v318
        %v1651 = vunpack.c.h.b16 %v318
        %v1652 = vunpack.c.l.b16 %v319
        %v1653 = vunpack.c.h.b16 %v319
        %v1654 = vunpack.c.l.b16 %v320
        %v1655 = vunpack.c.h.b16 %v320
        %v1656 = vunpack.c.l.b16 %v321
        %v1657 = vunpack.c.h.b16 %v321
        %v1658 = vunpack.c.l.b16 %v322
        %v1659 = vunpack.c.h.b16 %v322
        %v1660 = vunpack.c.l.b16 %v323
        %v1661 = vunpack.c.h.b16 %v323
        %v1662 = vunpack.c.l.b16 %v324
        %v1663 = vunpack.c.h.b16 %v324
        %v1664 = vunpack.c.l.b16 %v325
        %v1665 = vunpack.c.h.b16 %v325
        %v1666 = vunpack.c.l.b16 %v326
        %v1667 = vunpack.c.h.b16 %v326
        %v1668 = vunpack.c.l.b16 %v327
        %v1669 = vunpack.c.h.b16 %v327
        %v1670 = vunpack.c.l.b16 %v328
        %v1671 = vunpack.c.h.b16 %v328
        %v1672 = vunpack.c.l.b16 %v329
        %v1673 = vunpack.c.l.b16 %v330
        %v1674 = vunpack.c.h.b16 %v330
        %v1675 = vunpack.c.l.b16 %v331
        %v1676 = vunpack.c.h.b16 %v331
        %v1677 = vunpack.c.l.b16 %v332
        %v1678 = vunpack.c.h.b16 %v332
        %v1679 = vunpack.c.l.b16 %v333
        %v1680 = vunpack.c.h.b16 %v333
        %v1681 = vunpack.c.l.b16 %v334
        %v1682 = vunpack.c.h.b16 %v334
        %v1683 = vunpack.c.l.b16 %v335
        %v1684 = vunpack.c.h.b16 %v335
        %v1685 = vunpack.c.l.b16 %v336
        %v1686 = vunpack.c.h.b16 %v336
        %v1687 = vunpack.c.l.b16 %v337
        %v1688 = vunpack.c.h.b16 %v337
        %v1689 = vunpack.c.l.b16 %v338
        %v1690 = vunpack.c.h.b16 %v338
        %v1691 = vunpack.c.l.b16 %v339
        %v1692 = vunpack.c.h.b16 %v339
        %v1693 = vunpack.c.l.b16 %v340
        %v1694 = vunpack.c.h.b16 %v340
        %v1695 = vunpack.c.l.b16 %v341
        %v1696 = vunpack.c.h.b16 %v341
        %v1697 = vunpack.c.l.b16 %v342
        %v1698 = vunpack.c.h.b16 %v342
        %v1699 = vunpack.c.l.b16 %v343
        %v1700 = vunpack.c.h.b16 %v343
        %v1701 = vunpack.c.l.b16 %v344
        %v1702 = vunpack.c.h.b16 %v344
        %v1703 = vunpack.c.l.b16 %v345
        %v1704 = vunpack.c.h.b16 %v345
        %v1705 = vunpack.c.l.b16 %v346
        %v1706 = vunpack.c.l.b16 %v347
        %v1707 = vunpack.c.h.b16 %v347
        %v1708 = vunpack.c.l.b16 %v348
        %v1709 = vunpack.c.h.b16 %v348
        %v1710 = vunpack.c.l.b16 %v349
        %v1711 = vunpack.c.h.b16 %v349
        %v1712 = vunpack.c.l.b16 %v350
        %v1713 = vunpack.c.h.b16 %v350
        %v1714 = vunpack.c.l.b16 %v351
        %v1715 = vunpack.c.h.b16 %v351
        %v1716 = vunpack.c.l.b16 %v352
        %v1717 = vunpack.c.h.b16 %v352
        %v1718 = vunpack.c.l.b16 %v353
        %v1719 = vunpack.c.h.b16 %v353
        %v1720 = vunpack.c.l.b16 %v354
        %v1721 = vunpack.c.h.b16 %v354
        %v1722 = vunpack.c.l.b16 %v355
        %v1723 = vunpack.c.h.b16 %v355
        %v1724 = vunpack.c.l.b16 %v356
        %v1725 = vunpack.c.h.b16 %v356
        %v1726 = vunpack.c.l.b16 %v357
        %v1727 = vunpack.c.h.b16 %v357
        %v1728 = vunpack.c.l.b16 %v358
        %v1729 = vunpack.c.h.b16 %v358
        %v1730 = vunpack.c.l.b16 %v359
        %v1731 = vunpack.c.h.b16 %v359
        %v1732 = vunpack.c.l.b16 %v360
        %v1733 = vunpack.c.h.b16 %v360
        %v1734 = vunpack.c.l.b16 %v361
        %v1735 = vunpack.c.h.b16 %v361
        %v1736 = vunpack.c.l.b16 %v362
        %v1737 = vunpack.c.h.b16 %v362
        %v1738 = vunpack.c.l.b16 %v363
        %v1739 = vunpack.c.l.b16 %v364
        %v1740 = vunpack.c.h.b16 %v364
        %v1741 = vunpack.c.l.b16 %v365
        %v1742 = vunpack.c.h.b16 %v365
        %v1743 = vunpack.c.l.b16 %v366
        %v1744 = vunpack.c.h.b16 %v366
        %v1745 = vunpack.c.l.b16 %v367
        %v1746 = vunpack.c.h.b16 %v367
        %v1747 = vunpack.c.l.b16 %v368
        %v1748 = vunpack.c.h.b16 %v368
        %v1749 = vunpack.c.l.b16 %v369
        %v1750 = vunpack.c.h.b16 %v369
        %v1751 = vunpack.c.l.b16 %v370
        %v1752 = vunpack.c.h.b16 %v370
        %v1753 = vunpack.c.l.b16 %v371
        %v1754 = vunpack.c.h.b16 %v371
        %v1755 = vunpack.c.l.b16 %v372
        %v1756 = vunpack.c.h.b16 %v372
        %v1757 = vunpack.c.l.b16 %v373
        %v1758 = vunpack.c.h.b16 %v373
        %v1759 = vunpack.c.l.b16 %v374
        %v1760 = vunpack.c.h.b16 %v374
        %v1761 = vunpack.c.l.b16 %v375
        %v1762 = vunpack.c.h.b16 %v375
        %v1763 = vunpack.c.l.b16 %v376
        %v1764 = vunpack.c.h.b16 %v376
        %v1765 = vunpack.c.l.b16 %v377
        %v1766 = vunpack.c.h.b16 %v377
        %v1767 = vunpack.c.l.b16 %v378
        %v1768 = vunpack.c.h.b16 %v378
        %v1769 = vunpack.c.l.b16 %v379
        %v1770 = vunpack.c.h.b16 %v379
        %v1771 = vunpack.c.l.b16 %v380
        %v1772 = vunpack.c.l.b16 %v381
        %v1773 = vunpack.c.h.b16 %v381
        %v1774 = vunpack.c.l.b16 %v382
        %v1775 = vunpack.c.h.b16 %v382
        %v1776 = vunpack.c.l.b16 %v383
        %v1777 = vunpack.c.h.b16 %v383
        %v1778 = vunpack.c.l.b16 %v384
        %v1779 = vunpack.c.h.b16 %v384
        %v1780 = vunpack.c.l.b16 %v385
        %v1781 = vunpack.c.h.b16 %v385
        %v1782 = vunpack.c.l.b16 %v386
        %v1783 = vunpack.c.h.b16 %v386
        %v1784 = vunpack.c.l.b16 %v387
        %v1785 = vunpack.c.h.b16 %v387
        %v1786 = vunpack.c.l.b16 %v388
        %v1787 = vunpack.c.h.b16 %v388
        %v1788 = vunpack.c.l.b16 %v389
        %v1789 = vunpack.c.h.b16 %v389
        %v1790 = vunpack.c.l.b16 %v390
        %v1791 = vunpack.c.h.b16 %v390
        %v1792 = vunpack.c.l.b16 %v391
        %v1793 = vunpack.c.h.b16 %v391
        %v1794 = vunpack.c.l.b16 %v392
        %v1795 = vunpack.c.h.b16 %v392
        %v1796 = vunpack.c.l.b16 %v393
        %v1797 = vunpack.c.h.b16 %v393
        %v1798 = vunpack.c.l.b16 %v394
        %v1799 = vunpack.c.h.b16 %v394
        %v1800 = vunpack.c.l.b16 %v395
        %v1801 = vunpack.c.h.b16 %v395
        %v1802 = vunpack.c.l.b16 %v396
        %v1803 = vunpack.c.h.b16 %v396
        %v1804 = vunpack.c.l.b16 %v397
        %v1805 = vunpack.c.l.b16 %v398
        %v1806 = vunpack.c.h.b16 %v398
        %v1807 = vunpack.c.l.b16 %v399
        %v1808 = vunpack.c.h.b16 %v399
        %v1809 = vunpack.c.l.b16 %v400
        %v1810 = vunpack.c.h.b16 %v400
        %v1811 = vunpack.c.l.b16 %v401
        %v1812 = vunpack.c.h.b16 %v401
        %v1813 = vunpack.c.l.b16 %v402
        %v1814 = vunpack.c.h.b16 %v402
        %v1815 = vunpack.c.l.b16 %v403
        %v1816 = vunpack.c.h.b16 %v403
        %v1817 = vunpack.c.l.b16 %v404
        %v1818 = vunpack.c.h.b16 %v404
        %v1819 = vunpack.c.l.b16 %v405
        %v1820 = vunpack.c.h.b16 %v405
        %v1821 = vunpack.c.l.b16 %v406
        %v1822 = vunpack.c.h.b16 %v406
        %v1823 = vunpack.c.l.b16 %v407
        %v1824 = vunpack.c.h.b16 %v407
        %v1825 = vunpack.c.l.b16 %v408
        %v1826 = vunpack.c.h.b16 %v408
        %v1827 = vunpack.c.l.b16 %v409
        %v1828 = vunpack.c.h.b16 %v409
        %v1829 = vunpack.c.l.b16 %v410
        %v1830 = vunpack.c.h.b16 %v410
        %v1831 = vunpack.c.l.b16 %v411
        %v1832 = vunpack.c.h.b16 %v411
        %v1833 = vunpack.c.l.b16 %v412
        %v1834 = vunpack.c.h.b16 %v412
        %v1835 = vunpack.c.l.b16 %v413
        %v1836 = vunpack.c.h.b16 %v413
        %v1837 = vunpack.c.l.b16 %v414
        %v1838 = vunpack.c.l.b16 %v415
        %v1839 = vunpack.c.h.b16 %v415
        %v1840 = vunpack.c.l.b16 %v416
        %v1841 = vunpack.c.h.b16 %v416
        %v1842 = vunpack.c.l.b16 %v417
        %v1843 = vunpack.c.h.b16 %v417
        %v1844 = vunpack.c.l.b16 %v418
        %v1845 = vunpack.c.h.b16 %v418
        %v1846 = vunpack.c.l.b16 %v419
        %v1847 = vunpack.c.h.b16 %v419
        %v1848 = vunpack.c.l.b16 %v420
        %v1849 = vunpack.c.h.b16 %v420
        %v1850 = vunpack.c.l.b16 %v421
        %v1851 = vunpack.c.h.b16 %v421
        %v1852 = vunpack.c.l.b16 %v422
        %v1853 = vunpack.c.h.b16 %v422
        %v1854 = vunpack.c.l.b16 %v423
        %v1855 = vunpack.c.h.b16 %v423
        %v1856 = vunpack.c.l.b16 %v424
        %v1857 = vunpack.c.h.b16 %v424
        %v1858 = vunpack.c.l.b16 %v425
        %v1859 = vunpack.c.h.b16 %v425
        %v1860 = vunpack.c.l.b16 %v426
        %v1861 = vunpack.c.h.b16 %v426
        %v1862 = vunpack.c.l.b16 %v427
        %v1863 = vunpack.c.h.b16 %v427
        %v1864 = vunpack.c.l.b16 %v428
        %v1865 = vunpack.c.h.b16 %v428
        %v1866 = vunpack.c.l.b16 %v429
        %v1867 = vunpack.c.h.b16 %v429
        %v1868 = vunpack.c.l.b16 %v430
        %v1869 = vunpack.c.h.b16 %v430
        %v1870 = vunpack.c.l.b16 %v431
        %v1871 = vunpack.c.l.b16 %v432
        %v1872 = vunpack.c.h.b16 %v432
        %v1873 = vunpack.c.l.b16 %v433
        %v1874 = vunpack.c.h.b16 %v433
        %v1875 = vunpack.c.l.b16 %v434
        %v1876 = vunpack.c.h.b16 %v434
        %v1877 = vunpack.c.l.b16 %v435
        %v1878 = vunpack.c.h.b16 %v435
        %v1879 = vunpack.c.l.b16 %v436
        %v1880 = vunpack.c.h.b16 %v436
        %v1881 = vunpack.c.l.b16 %v437
        %v1882 = vunpack.c.h.b16 %v437
        %v1883 = vunpack.c.l.b16 %v438
        %v1884 = vunpack.c.h.b16 %v438
        %v1885 = vunpack.c.l.b16 %v439
        %v1886 = vunpack.c.h.b16 %v439
        %v1887 = vunpack.c.l.b16 %v440
        %v1888 = vunpack.c.h.b16 %v440
        %v1889 = vunpack.c.l.b16 %v441
        %v1890 = vunpack.c.h.b16 %v441
        %v1891 = vunpack.c.l.b16 %v442
        %v1892 = vunpack.c.h.b16 %v442
        %v1893 = vunpack.c.l.b16 %v443
        %v1894 = vunpack.c.h.b16 %v443
        %v1895 = vunpack.c.l.b16 %v444
        %v1896 = vunpack.c.h.b16 %v444
        %v1897 = vunpack.c.l.b16 %v445
        %v1898 = vunpack.c.h.b16 %v445
        %v1899 = vunpack.c.l.b16 %v446
        %v1900 = vunpack.c.h.b16 %v446
        %v1901 = vunpack.c.l.b16 %v447
        %v1902 = vunpack.c.h.b16 %v447
        %v1903 = vunpack.c.l.b16 %v448
        %v1904 = vunpack.c.l.b16 %v449
        %v1905 = vunpack.c.h.b16 %v449
        %v1906 = vunpack.c.l.b16 %v450
        %v1907 = vunpack.c.h.b16 %v450
        %v1908 = vunpack.c.l.b16 %v451
        %v1909 = vunpack.c.h.b16 %v451
        %v1910 = vunpack.c.l.b16 %v452
        %v1911 = vunpack.c.h.b16 %v452
        %v1912 = vunpack.c.l.b16 %v453
        %v1913 = vunpack.c.h.b16 %v453
        %v1914 = vunpack.c.l.b16 %v454
        %v1915 = vunpack.c.h.b16 %v454
        %v1916 = vunpack.c.l.b16 %v455
        %v1917 = vunpack.c.h.b16 %v455
        %v1918 = vunpack.c.l.b16 %v456
        %v1919 = vunpack.c.h.b16 %v456
        %v1920 = vunpack.c.l.b16 %v457
        %v1921 = vunpack.c.h.b16 %v457
        %v1922 = vunpack.c.l.b16 %v458
        %v1923 = vunpack.c.h.b16 %v458
        %v1924 = vunpack.c.l.b16 %v459
        %v1925 = vunpack.c.h.b16 %v459
        %v1926 = vunpack.c.l.b16 %v460
        %v1927 = vunpack.c.h.b16 %v460
        %v1928 = vunpack.c.l.b16 %v461
        %v1929 = vunpack.c.h.b16 %v461
        %v1930 = vunpack.c.l.b16 %v462
        %v1931 = vunpack.c.h.b16 %v462
        %v1932 = vunpack.c.l.b16 %v463
        %v1933 = vunpack.c.h.b16 %v463
        %v1934 = vunpack.c.l.b16 %v464
        %v1935 = vunpack.c.h.b16 %v464
        %v1936 = vunpack.c.l.b16 %v465
        %v1937 = vunpack.c.l.b16 %v466
        %v1938 = vunpack.c.h.b16 %v466
        %v1939 = vunpack.c.l.b16 %v467
        %v1940 = vunpack.c.h.b16 %v467
        %v1941 = vunpack.c.l.b16 %v468
        %v1942 = vunpack.c.h.b16 %v468
        %v1943 = vunpack.c.l.b16 %v469
        %v1944 = vunpack.c.h.b16 %v469
        %v1945 = vunpack.c.l.b16 %v470
        %v1946 = vunpack.c.h.b16 %v470
        %v1947 = vunpack.c.l.b16 %v471
        %v1948 = vunpack.c.h.b16 %v471
        %v1949 = vunpack.c.l.b16 %v472
        %v1950 = vunpack.c.h.b16 %v472
        %v1951 = vunpack.c.l.b16 %v473
        %v1952 = vunpack.c.h.b16 %v473
        %v1953 = vunpack.c.l.b16 %v474
        %v1954 = vunpack.c.h.b16 %v474
        %v1955 = vunpack.c.l.b16 %v475
        %v1956 = vunpack.c.h.b16 %v475
        %v1957 = vunpack.c.l.b16 %v476
        %v1958 = vunpack.c.h.b16 %v476
        %v1959 = vunpack.c.l.b16 %v477
        %v1960 = vunpack.c.h.b16 %v477
        %v1961 = vunpack.c.l.b16 %v478
        %v1962 = vunpack.c.h.b16 %v478
        %v1963 = vunpack.c.l.b16 %v479
        %v1964 = vunpack.c.h.b16 %v479
        %v1965 = vunpack.c.l.b16 %v480
        %v1966 = vunpack.c.h.b16 %v480
        %v1967 = vunpack.c.l.b16 %v481
        %v1968 = vunpack.c.h.b16 %v481
        %v1969 = vunpack.c.l.b16 %v482
        %v1970 = vunpack.c.l.b16 %v483
        %v1971 = vunpack.c.h.b16 %v483
        %v1972 = vunpack.c.l.b16 %v484
        %v1973 = vunpack.c.h.b16 %v484
        %v1974 = vunpack.c.l.b16 %v485
        %v1975 = vunpack.c.h.b16 %v485
        %v1976 = vunpack.c.l.b16 %v486
        %v1977 = vunpack.c.h.b16 %v486
        %v1978 = vunpack.c.l.b16 %v487
        %v1979 = vunpack.c.h.b16 %v487
        %v1980 = vunpack.c.l.b16 %v488
        %v1981 = vunpack.c.h.b16 %v488
        %v1982 = vunpack.c.l.b16 %v489
        %v1983 = vunpack.c.h.b16 %v489
        %v1984 = vunpack.c.l.b16 %v490
        %v1985 = vunpack.c.h.b16 %v490
        %v1986 = vunpack.c.l.b16 %v491
        %v1987 = vunpack.c.h.b16 %v491
        %v1988 = vunpack.c.l.b16 %v492
        %v1989 = vunpack.c.h.b16 %v492
        %v1990 = vunpack.c.l.b16 %v493
        %v1991 = vunpack.c.h.b16 %v493
        %v1992 = vunpack.c.l.b16 %v494
        %v1993 = vunpack.c.h.b16 %v494
        %v1994 = vunpack.c.l.b16 %v495
        %v1995 = vunpack.c.h.b16 %v495
        %v1996 = vunpack.c.l.b16 %v496
        %v1997 = vunpack.c.h.b16 %v496
        %v1998 = vunpack.c.l.b16 %v497
        %v1999 = vunpack.c.h.b16 %v497
        %v2000 = vunpack.c.l.b16 %v498
        %v2001 = vunpack.c.h.b16 %v498
        %v2002 = vunpack.c.l.b16 %v499
        %v2003 = vunpack.c.l.b16 %v500
        %v2004 = vunpack.c.h.b16 %v500
        %v2005 = vunpack.c.l.b16 %v501
        %v2006 = vunpack.c.h.b16 %v501
        %v2007 = vunpack.c.l.b16 %v502
        %v2008 = vunpack.c.h.b16 %v502
        %v2009 = vunpack.c.l.b16 %v503
        %v2010 = vunpack.c.h.b16 %v503
        %v2011 = vunpack.c.l.b16 %v504
        %v2012 = vunpack.c.h.b16 %v504
        %v2013 = vunpack.c.l.b16 %v505
        %v2014 = vunpack.c.h.b16 %v505
        %v2015 = vunpack.c.l.b16 %v506
        %v2016 = vunpack.c.h.b16 %v506
        %v2017 = vunpack.c.l.b16 %v507
        %v2018 = vunpack.c.h.b16 %v507
        %v2019 = vunpack.c.l.b16 %v508
        %v2020 = vunpack.c.h.b16 %v508
        %v2021 = vunpack.c.l.b16 %v509
        %v2022 = vunpack.c.h.b16 %v509
        %v2023 = vunpack.c.l.b16 %v510
        %v2024 = vunpack.c.h.b16 %v510
        %v2025 = vunpack.c.l.b16 %v511
        %v2026 = vunpack.c.h.b16 %v511
        %v2027 = vunpack.c.l.b16 %v512
        %v2028 = vunpack.c.h.b16 %v512
        %v2029 = vunpack.c.l.b16 %v513
        %v2030 = vunpack.c.h.b16 %v513
        %v2031 = vunpack.c.l.b16 %v514
        %v2032 = vunpack.c.h.b16 %v514
        %v2033 = vunpack.c.l.b16 %v515
        %v2034 = vunpack.c.h.b16 %v515
        %v2035 = vunpack.c.l.b16 %v516
        %v2036 = vunpack.c.l.b16 %v517
        %v2037 = vunpack.c.h.b16 %v517
        %v2038 = vunpack.c.l.b16 %v518
        %v2039 = vunpack.c.h.b16 %v518
        %v2040 = vunpack.c.l.b16 %v519
        %v2041 = vunpack.c.h.b16 %v519
        %v2042 = vunpack.c.l.b16 %v520
        %v2043 = vunpack.c.h.b16 %v520
        %v2044 = vunpack.c.l.b16 %v521
        %v2045 = vunpack.c.h.b16 %v521
        %v2046 = vunpack.c.l.b16 %v522
        %v2047 = vunpack.c.h.b16 %v522
        %v2048 = vunpack.c.l.b16 %v523
        %v2049 = vunpack.c.h.b16 %v523
        %v2050 = vunpack.c.l.b16 %v524
        %v2051 = vunpack.c.h.b16 %v524
        %v2052 = vunpack.c.l.b16 %v525
        %v2053 = vunpack.c.h.b16 %v525
        %v2054 = vunpack.c.l.b16 %v526
        %v2055 = vunpack.c.h.b16 %v526
        %v2056 = vunpack.c.l.b16 %v527
        %v2057 = vunpack.c.h.b16 %v527
        %v2058 = vunpack.c.l.b16 %v528
        %v2059 = vunpack.c.h.b16 %v528
        %v2060 = vunpack.c.l.b16 %v529
        %v2061 = vunpack.c.h.b16 %v529
        %v2062 = vunpack.c.l.b16 %v530
        %v2063 = vunpack.c.h.b16 %v530
        %v2064 = vunpack.c.l.b16 %v531
        %v2065 = vunpack.c.h.b16 %v531
        %v2066 = vunpack.c.l.b16 %v532
        %v2067 = vunpack.c.h.b16 %v532
        %v2068 = vunpack.c.l.b16 %v533
        %v2069 = vunpack.c.l.b16 %v534
        %v2070 = vunpack.c.h.b16 %v534
        %v2071 = vunpack.c.l.b16 %v535
        %v2072 = vunpack.c.h.b16 %v535
        %v2073 = vunpack.c.l.b16 %v536
        %v2074 = vunpack.c.h.b16 %v536
        %v2075 = vunpack.c.l.b16 %v537
        %v2076 = vunpack.c.h.b16 %v537
        %v2077 = vunpack.c.l.b16 %v538
        %v2078 = vunpack.c.h.b16 %v538
        %v2079 = vunpack.c.l.b16 %v539
        %v2080 = vunpack.c.h.b16 %v539
        %v2081 = vunpack.c.l.b16 %v540
        %v2082 = vunpack.c.h.b16 %v540
        %v2083 = vunpack.c.l.b16 %v541
        %v2084 = vunpack.c.h.b16 %v541
        %v2085 = vunpack.c.l.b16 %v542
        %v2086 = vunpack.c.h.b16 %v542
        %v2087 = vunpack.c.l.b16 %v543
        %v2088 = vunpack.c.h.b16 %v543
        %v2089 = vunpack.c.l.b16 %v544
        %v2090 = vunpack.c.h.b16 %v544
        %v2091 = vunpack.c.l.b16 %v545
        %v2092 = vunpack.c.h.b16 %v545
        %v2093 = vunpack.c.l.b16 %v546
        %v2094 = vunpack.c.h.b16 %v546
        %v2095 = vunpack.c.l.b16 %v547
        %v2096 = vunpack.c.h.b16 %v547
        %v2097 = vunpack.c.l.b16 %v548
        %v2098 = vunpack.c.h.b16 %v548
        %v2099 = vunpack.c.l.b16 %v549
        %v2100 = vunpack.c.h.b16 %v549
        %v2101 = vunpack.c.l.b16 %v550
        %v2102 = vunpack.c.l.b16 %v551
        %v2103 = vunpack.c.h.b16 %v551
        %v2104 = vunpack.c.l.b16 %v552
        %v2105 = vunpack.c.h.b16 %v552
        %v2106 = vunpack.c.l.b16 %v553
        %v2107 = vunpack.c.h.b16 %v553
        %v2108 = vunpack.c.l.b16 %v554
        %v2109 = vunpack.c.h.b16 %v554
        %v2110 = vunpack.c.l.b16 %v555
        %v2111 = vunpack.c.h.b16 %v555
        %v2112 = vunpack.c.l.b16 %v556
        %v2113 = vunpack.c.h.b16 %v556
        %v2114 = vunpack.c.l.b16 %v557
        %v2115 = vunpack.c.h.b16 %v557
        %v2116 = vunpack.c.l.b16 %v558
        %v2117 = vunpack.c.h.b16 %v558
        %v2118 = vunpack.c.l.b16 %v559
        %v2119 = vunpack.c.h.b16 %v559
        %v2120 = vunpack.c.l.b16 %v560
        %v2121 = vunpack.c.h.b16 %v560
        %v2122 = vunpack.c.l.b16 %v561
        %v2123 = vunpack.c.h.b16 %v561
        %v2124 = vunpack.c.l.b16 %v562
        %v2125 = vunpack.c.h.b16 %v562
        %v2126 = vunpack.c.l.b16 %v563
        %v2127 = vunpack.c.h.b16 %v563
        %v2128 = vunpack.c.l.b16 %v564
        %v2129 = vunpack.c.h.b16 %v564
        %v2130 = vunpack.c.l.b16 %v565
        %v2131 = vunpack.c.h.b16 %v565
        %v2132 = vunpack.c.l.b16 %v566
        %v2133 = vunpack.c.h.b16 %v566
        %v2134 = vunpack.c.l.b16 %v567
        %v2135 = vunpack.c.l.b16 %v568
        %v2136 = vunpack.c.h.b16 %v568
        %v2137 = vunpack.c.l.b16 %v569
        %v2138 = vunpack.c.h.b16 %v569
        %v2139 = vunpack.c.l.b16 %v570
        %v2140 = vunpack.c.h.b16 %v570
        %v2141 = vunpack.c.l.b16 %v571
        %v2142 = vunpack.c.h.b16 %v571
        %v2143 = vunpack.c.l.b16 %v572
        %v2144 = vunpack.c.h.b16 %v572
        %v2145 = vunpack.c.l.b16 %v573
        %v2146 = vunpack.c.h.b16 %v573
        %v2147 = vunpack.c.l.b16 %v574
        %v2148 = vunpack.c.h.b16 %v574
        %v2149 = vunpack.c.l.b16 %v575
        %v2150 = vunpack.c.h.b16 %v575
        %v2151 = vunpack.c.l.b16 %v576
        %v2152 = vunpack.c.h.b16 %v576
        %v2153 = vunpack.c.l.b16 %v577
        %v2154 = vunpack.c.h.b16 %v577
        %v2155 = vunpack.c.l.b16 %v578
        %v2156 = vunpack.c.h.b16 %v578
        %v2157 = vunpack.c.l.b16 %v579
        %v2158 = vunpack.c.h.b16 %v579
        %v2159 = vunpack.c.l.b16 %v580
        %v2160 = vunpack.c.h.b16 %v580
        %v2161 = vunpack.c.l.b16 %v581
        %v2162 = vunpack.c.h.b16 %v581
        %v2163 = vunpack.c.l.b16 %v582
        %v2164 = vunpack.c.h.b16 %v582
        %v2165 = vunpack.c.l.b16 %v583
        %v2166 = vunpack.c.h.b16 %v583
        %v2167 = vunpack.c.l.b16 %v584
        %v2168 = vunpack.c.l.b16 %v585
        %v2169 = vunpack.c.h.b16 %v585
        %v2170 = vunpack.c.l.b16 %v586
        %v2171 = vunpack.c.h.b16 %v586
        %v2172 = vunpack.c.l.b16 %v587
        %v2173 = vunpack.c.h.b16 %v587
        %v2174 = vunpack.c.l.b16 %v588
        %v2175 = vunpack.c.h.b16 %v588
        %v2176 = vunpack.c.l.b16 %v589
        %v2177 = vunpack.c.h.b16 %v589
        %v2178 = vunpack.c.l.b16 %v590
        %v2179 = vunpack.c.h.b16 %v590
        %v2180 = vunpack.c.l.b16 %v591
        %v2181 = vunpack.c.h.b16 %v591
        %v2182 = vunpack.c.l.b16 %v592
        %v2183 = vunpack.c.h.b16 %v592
        %v2184 = vunpack.c.l.b16 %v593
        %v2185 = vunpack.c.h.b16 %v593
        %v2186 = vunpack.c.l.b16 %v594
        %v2187 = vunpack.c.h.b16 %v594
        %v2188 = vunpack.c.l.b16 %v595
        %v2189 = vunpack.c.h.b16 %v595
        %v2190 = vunpack.c.l.b16 %v596
        %v2191 = vunpack.c.h.b16 %v596
        %v2192 = vunpack.c.l.b16 %v597
        %v2193 = vunpack.c.h.b16 %v597
        %v2194 = vunpack.c.l.b16 %v598
        %v2195 = vunpack.c.h.b16 %v598
        %v2196 = vunpack.c.l.b16 %v599
        %v2197 = vunpack.c.h.b16 %v599
        %v2198 = vunpack.c.l.b16 %v600
        %v2199 = vunpack.c.h.b16 %v600
        %v2200 = vunpack.c.l.b16 %v601
        %v2201 = vunpack.c.l.b16 %v602
        %v2202 = vunpack.c.h.b16 %v602
        %v2203 = vunpack.c.l.b16 %v603
        %v2204 = vunpack.c.h.b16 %v603
        %v2205 = vunpack.c.l.b16 %v604
        %v2206 = vunpack.c.h.b16 %v604
        %v2207 = vunpack.c.l.b16 %v605
        %v2208 = vunpack.c.h.b16 %v605
        %v2209 = vunpack.c.l.b16 %v606
        %v2210 = vunpack.c.h.b16 %v606
        %v2211 = vunpack.c.l.b16 %v607
        %v2212 = vunpack.c.h.b16 %v607
        %v2213 = vunpack.c.l.b16 %v608
        %v2214 = vunpack.c.h.b16 %v608
        %v2215 = vunpack.c.l.b16 %v609
        %v2216 = vunpack.c.h.b16 %v609
        %v2217 = vunpack.c.l.b16 %v610
        %v2218 = vunpack.c.h.b16 %v610
        %v2219 = vunpack.c.l.b16 %v611
        %v2220 = vunpack.c.h.b16 %v611
        %v2221 = vunpack.c.l.b16 %v612
        %v2222 = vunpack.c.h.b16 %v612
        %v2223 = vunpack.c.l.b16 %v613
        %v2224 = vunpack.c.h.b16 %v613
        %v2225 = vunpack.c.l.b16 %v614
        %v2226 = vunpack.c.h.b16 %v614
        %v2227 = vunpack.c.l.b16 %v615
        %v2228 = vunpack.c.h.b16 %v615
        %v2229 = vunpack.c.l.b16 %v616
        %v2230 = vunpack.c.h.b16 %v616
        %v2231 = vunpack.c.l.b16 %v617
        %v2232 = vunpack.c.h.b16 %v617
        %v2233 = vunpack.c.l.b16 %v618
        %v2234 = vunpack.c.l.b16 %v619
        %v2235 = vunpack.c.h.b16 %v619
        %v2236 = vunpack.c.l.b16 %v620
        %v2237 = vunpack.c.h.b16 %v620
        %v2238 = vunpack.c.l.b16 %v621
        %v2239 = vunpack.c.h.b16 %v621
        %v2240 = vunpack.c.l.b16 %v622
        %v2241 = vunpack.c.h.b16 %v622
        %v2242 = vunpack.c.l.b16 %v623
        %v2243 = vunpack.c.h.b16 %v623
        %v2244 = vunpack.c.l.b16 %v624
        %v2245 = vunpack.c.h.b16 %v624
        %v2246 = vunpack.c.l.b16 %v625
        %v2247 = vunpack.c.h.b16 %v625
        %v2248 = vunpack.c.l.b16 %v626
        %v2249 = vunpack.c.h.b16 %v626
        %v2250 = vunpack.c.l.b16 %v627
        %v2251 = vunpack.c.h.b16 %v627
        %v2252 = vunpack.c.l.b16 %v628
        %v2253 = vunpack.c.h.b16 %v628
        %v2254 = vunpack.c.l.b16 %v629
        %v2255 = vunpack.c.h.b16 %v629
        %v2256 = vunpack.c.l.b16 %v630
        %v2257 = vunpack.c.h.b16 %v630
        %v2258 = vunpack.c.l.b16 %v631
        %v2259 = vunpack.c.h.b16 %v631
        %v2260 = vunpack.c.l.b16 %v632
        %v2261 = vunpack.c.h.b16 %v632
        %v2262 = vunpack.c.l.b16 %v633
        %v2263 = vunpack.c.h.b16 %v633
        %v2264 = vunpack.c.l.b16 %v634
        %v2265 = vunpack.c.h.b16 %v634
        %v2266 = vunpack.c.l.b16 %v635
        %v2267 = vunpack.c.l.b16 %v636
        %v2268 = vunpack.c.h.b16 %v636
        %v2269 = vunpack.c.l.b16 %v637
        %v2270 = vunpack.c.h.b16 %v637
        %v2271 = vunpack.c.l.b16 %v638
        %v2272 = vunpack.c.h.b16 %v638
        %v2273 = vunpack.c.l.b16 %v639
        %v2274 = vunpack.c.h.b16 %v639
        %v2275 = vunpack.c.l.b16 %v640
        %v2276 = vunpack.c.h.b16 %v640
        %v2277 = vunpack.c.l.b16 %v641
        %v2278 = vunpack.c.h.b16 %v641
        %v2279 = vunpack.c.l.b16 %v642
        %v2280 = vunpack.c.h.b16 %v642
        %v2281 = vunpack.c.l.b16 %v643
        %v2282 = vunpack.c.h.b16 %v643
        %v2283 = vunpack.c.l.b16 %v644
        %v2284 = vunpack.c.h.b16 %v644
        %v2285 = vunpack.c.l.b16 %v645
        %v2286 = vunpack.c.h.b16 %v645
        %v2287 = vunpack.c.l.b16 %v646
        %v2288 = vunpack.c.h.b16 %v646
        %v2289 = vunpack.c.l.b16 %v647
        %v2290 = vunpack.c.h.b16 %v647
        %v2291 = vunpack.c.l.b16 %v648
        %v2292 = vunpack.c.h.b16 %v648
        %v2293 = vunpack.c.l.b16 %v649
        %v2294 = vunpack.c.h.b16 %v649
        %v2295 = vunpack.c.l.b16 %v650
        %v2296 = vunpack.c.h.b16 %v650
        %v2297 = vunpack.c.l.b16 %v651
        %v2298 = vunpack.c.h.b16 %v651
        %v2299 = vunpack.c.l.b16 %v652
        %v2300 = vunpack.c.l.b16 %v653
        %v2301 = vunpack.c.h.b16 %v653
        %v2302 = vunpack.c.l.b16 %v654
        %v2303 = vunpack.c.h.b16 %v654
        %v2304 = vunpack.c.l.b16 %v655
        %v2305 = vunpack.c.h.b16 %v655
        %v2306 = vunpack.c.l.b16 %v656
        %v2307 = vunpack.c.h.b16 %v656
        %v2308 = vunpack.c.l.b16 %v657
        %v2309 = vunpack.c.h.b16 %v657
        %v2310 = vunpack.c.l.b16 %v658
        %v2311 = vunpack.c.h.b16 %v658
        %v2312 = vunpack.c.l.b16 %v659
        %v2313 = vunpack.c.h.b16 %v659
        %v2314 = vunpack.c.l.b16 %v660
        %v2315 = vunpack.c.h.b16 %v660
        %v2316 = vunpack.c.l.b16 %v661
        %v2317 = vunpack.c.h.b16 %v661
        %v2318 = vunpack.c.l.b16 %v662
        %v2319 = vunpack.c.h.b16 %v662
        %v2320 = vunpack.c.l.b16 %v663
        %v2321 = vunpack.c.h.b16 %v663
        %v2322 = vunpack.c.l.b16 %v664
        %v2323 = vunpack.c.h.b16 %v664
        %v2324 = vunpack.c.l.b16 %v665
        %v2325 = vunpack.c.h.b16 %v665
        %v2326 = vunpack.c.l.b16 %v666
        %v2327 = vunpack.c.h.b16 %v666
        %v2328 = vunpack.c.l.b16 %v667
        %v2329 = vunpack.c.h.b16 %v667
        %v2330 = vunpack.c.l.b16 %v668
        %v2331 = vunpack.c.h.b16 %v668
        %v2332 = vunpack.c.l.b16 %v669
        %v2333 = vunpack.c.l.b16 %v670
        %v2334 = vunpack.c.h.b16 %v670
        %v2335 = vunpack.c.l.b16 %v671
        %v2336 = vunpack.c.h.b16 %v671
        %v2337 = vunpack.c.l.b16 %v672
        %v2338 = vunpack.c.h.b16 %v672
        %v2339 = vunpack.c.l.b16 %v673
        %v2340 = vunpack.c.h.b16 %v673
        %v2341 = vunpack.c.l.b16 %v674
        %v2342 = vunpack.c.h.b16 %v674
        %v2343 = vunpack.c.l.b16 %v675
        %v2344 = vunpack.c.h.b16 %v675
        %v2345 = vunpack.c.l.b16 %v676
        %v2346 = vunpack.c.h.b16 %v676
        %v2347 = vunpack.c.l.b16 %v677
        %v2348 = vunpack.c.h.b16 %v677
        %v2349 = vunpack.c.l.b16 %v678
        %v2350 = vunpack.c.h.b16 %v678
        %v2351 = vunpack.c.l.b16 %v679
        %v2352 = vunpack.c.h.b16 %v679
        %v2353 = vunpack.c.l.b16 %v680
        %v2354 = vunpack.c.h.b16 %v680
        %v2355 = vunpack.c.l.b16 %v681
        %v2356 = vunpack.c.h.b16 %v681
        %v2357 = vunpack.c.l.b16 %v682
        %v2358 = vunpack.c.h.b16 %v682
        %v2359 = vunpack.c.l.b16 %v683
        %v2360 = vunpack.c.h.b16 %v683
        %v2361 = vunpack.c.l.b16 %v684
        %v2362 = vunpack.c.h.b16 %v684
        %v2363 = vunpack.c.l.b16 %v685
        %v2364 = vunpack.c.h.b16 %v685
        %v2365 = vunpack.c.l.b16 %v686
        %v2366 = vunpack.c.l.b16 %v687
        %v2367 = vunpack.c.h.b16 %v687
        %v2368 = vunpack.c.l.b16 %v688
        %v2369 = vunpack.c.h.b16 %v688
        %v2370 = vunpack.c.l.b16 %v689
        %v2371 = vunpack.c.h.b16 %v689
        %v2372 = vunpack.c.l.b16 %v690
        %v2373 = vunpack.c.h.b16 %v690
        %v2374 = vunpack.c.l.b16 %v691
        %v2375 = vunpack.c.h.b16 %v691
        %v2376 = vunpack.c.l.b16 %v692
        %v2377 = vunpack.c.h.b16 %v692
        %v2378 = vunpack.c.l.b16 %v693
        %v2379 = vunpack.c.h.b16 %v693
        %v2380 = vunpack.c.l.b16 %v694
        %v2381 = vunpack.c.h.b16 %v694
        %v2382 = vunpack.c.l.b16 %v695
        %v2383 = vunpack.c.h.b16 %v695
        %v2384 = vunpack.c.l.b16 %v696
        %v2385 = vunpack.c.h.b16 %v696
        %v2386 = vunpack.c.l.b16 %v697
        %v2387 = vunpack.c.h.b16 %v697
        %v2388 = vunpack.c.l.b16 %v698
        %v2389 = vunpack.c.h.b16 %v698
        %v2390 = vunpack.c.l.b16 %v699
        %v2391 = vunpack.c.h.b16 %v699
        %v2392 = vunpack.c.l.b16 %v700
        %v2393 = vunpack.c.h.b16 %v700
        %v2394 = vunpack.c.l.b16 %v701
        %v2395 = vunpack.c.h.b16 %v701
        %v2396 = vunpack.c.l.b16 %v702
        %v2397 = vunpack.c.h.b16 %v702
        %v2398 = vunpack.c.l.b16 %v703
        %v2399 = vunpack.c.l.b16 %v704
        %v2400 = vunpack.c.h.b16 %v704
        %v2401 = vunpack.c.l.b16 %v705
        %v2402 = vunpack.c.h.b16 %v705
        %v2403 = vunpack.c.l.b16 %v706
        %v2404 = vunpack.c.h.b16 %v706
        %v2405 = vunpack.c.l.b16 %v707
        %v2406 = vunpack.c.h.b16 %v707
        %v2407 = vunpack.c.l.b16 %v708
        %v2408 = vunpack.c.h.b16 %v708
        %v2409 = vunpack.c.l.b16 %v709
        %v2410 = vunpack.c.h.b16 %v709
        %v2411 = vunpack.c.l.b16 %v710
        %v2412 = vunpack.c.h.b16 %v710
        %v2413 = vunpack.c.l.b16 %v711
        %v2414 = vunpack.c.h.b16 %v711
        %v2415 = vunpack.c.l.b16 %v712
        %v2416 = vunpack.c.h.b16 %v712
        %v2417 = vunpack.c.l.b16 %v713
        %v2418 = vunpack.c.h.b16 %v713
        %v2419 = vunpack.c.l.b16 %v714
        %v2420 = vunpack.c.h.b16 %v714
        %v2421 = vunpack.c.l.b16 %v715
        %v2422 = vunpack.c.h.b16 %v715
        %v2423 = vunpack.c.l.b16 %v716
        %v2424 = vunpack.c.h.b16 %v716
        %v2425 = vunpack.c.l.b16 %v717
        %v2426 = vunpack.c.h.b16 %v717
        %v2427 = vunpack.c.l.b16 %v718
        %v2428 = vunpack.c.h.b16 %v718
        %v2429 = vunpack.c.l.b16 %v719
        %v2430 = vunpack.c.h.b16 %v719
        %v2431 = vunpack.c.l.b16 %v720
        %v2432 = vunpack.c.l.b16 %v721
        %v2433 = vunpack.c.h.b16 %v721
        %v2434 = vunpack.c.l.b16 %v722
        %v2435 = vunpack.c.h.b16 %v722
        %v2436 = vunpack.c.l.b16 %v723
        %v2437 = vunpack.c.h.b16 %v723
        %v2438 = vunpack.c.l.b16 %v724
        %v2439 = vunpack.c.h.b16 %v724
        %v2440 = vunpack.c.l.b16 %v725
        %v2441 = vunpack.c.h.b16 %v725
        %v2442 = vunpack.c.l.b16 %v726
        %v2443 = vunpack.c.h.b16 %v726
        %v2444 = vunpack.c.l.b16 %v727
        %v2445 = vunpack.c.h.b16 %v727
        %v2446 = vunpack.c.l.b16 %v728
        %v2447 = vunpack.c.h.b16 %v728
        %v2448 = vunpack.c.l.b16 %v729
        %v2449 = vunpack.c.h.b16 %v729
        %v2450 = vunpack.c.l.b16 %v730
        %v2451 = vunpack.c.h.b16 %v730
        %v2452 = vunpack.c.l.b16 %v731
        %v2453 = vunpack.c.h.b16 %v731
        %v2454 = vunpack.c.l.b16 %v732
        %v2455 = vunpack.c.h.b16 %v732
        %v2456 = vunpack.c.l.b16 %v733
        %v2457 = vunpack.c.h.b16 %v733
        %v2458 = vunpack.c.l.b16 %v734
        %v2459 = vunpack.c.h.b16 %v734
        %v2460 = vunpack.c.l.b16 %v735
        %v2461 = vunpack.c.h.b16 %v735
        %v2462 = vunpack.c.l.b16 %v736
        %v2463 = vunpack.c.h.b16 %v736
        %v2464 = vunpack.c.l.b16 %v737
        %v2465 = vunpack.c.l.b16 %v738
        %v2466 = vunpack.c.h.b16 %v738
        %v2467 = vunpack.c.l.b16 %v739
        %v2468 = vunpack.c.h.b16 %v739
        %v2469 = vunpack.c.l.b16 %v740
        %v2470 = vunpack.c.h.b16 %v740
        %v2471 = vunpack.c.l.b16 %v741
        %v2472 = vunpack.c.h.b16 %v741
        %v2473 = vunpack.c.l.b16 %v742
        %v2474 = vunpack.c.h.b16 %v742
        %v2475 = vunpack.c.l.b16 %v743
        %v2476 = vunpack.c.h.b16 %v743
        %v2477 = vunpack.c.l.b16 %v744
        %v2478 = vunpack.c.h.b16 %v744
        %v2479 = vunpack.c.l.b16 %v745
        %v2480 = vunpack.c.h.b16 %v745
        %v2481 = vunpack.c.l.b16 %v746
        %v2482 = vunpack.c.h.b16 %v746
        %v2483 = vunpack.c.l.b16 %v747
        %v2484 = vunpack.c.h.b16 %v747
        %v2485 = vunpack.c.l.b16 %v748
        %v2486 = vunpack.c.h.b16 %v748
        %v2487 = vunpack.c.l.b16 %v749
        %v2488 = vunpack.c.h.b16 %v749
        %v2489 = vunpack.c.l.b16 %v750
        %v2490 = vunpack.c.h.b16 %v750
        %v2491 = vunpack.c.l.b16 %v751
        %v2492 = vunpack.c.h.b16 %v751
        %v2493 = vunpack.c.l.b16 %v752
        %v2494 = vunpack.c.h.b16 %v752
        %v2495 = vunpack.c.l.b16 %v753
        %v2496 = vunpack.c.h.b16 %v753
        %v2497 = vunpack.c.l.b16 %v754
        %v2498 = vunpack.c.l.b16 %v755
        %v2499 = vunpack.c.h.b16 %v755
        %v2500 = vunpack.c.l.b16 %v756
        %v2501 = vunpack.c.h.b16 %v756
        %v2502 = vunpack.c.l.b16 %v757
        %v2503 = vunpack.c.h.b16 %v757
        %v2504 = vunpack.c.l.b16 %v758
        %v2505 = vunpack.c.h.b16 %v758
        %v2506 = vunpack.c.l.b16 %v759
        %v2507 = vunpack.c.h.b16 %v759
        %v2508 = vunpack.c.l.b16 %v760
        %v2509 = vunpack.c.h.b16 %v760
        %v2510 = vunpack.c.l.b16 %v761
        %v2511 = vunpack.c.h.b16 %v761
        %v2512 = vunpack.c.l.b16 %v762
        %v2513 = vunpack.c.h.b16 %v762
        %v2514 = vunpack.c.l.b16 %v763
        %v2515 = vunpack.c.h.b16 %v763
        %v2516 = vunpack.c.l.b16 %v764
        %v2517 = vunpack.c.h.b16 %v764
        %v2518 = vunpack.c.l.b16 %v765
        %v2519 = vunpack.c.h.b16 %v765
        %v2520 = vunpack.c.l.b16 %v766
        %v2521 = vunpack.c.h.b16 %v766
        %v2522 = vunpack.c.l.b16 %v767
        %v2523 = vunpack.c.h.b16 %v767
        %v2524 = vunpack.c.l.b16 %v768
        %v2525 = vunpack.c.h.b16 %v768
        %v2526 = vunpack.c.l.b16 %v769
        %v2527 = vunpack.c.h.b16 %v769
        %v2528 = vunpack.c.l.b16 %v770
        %v2529 = vunpack.c.h.b16 %v770
        %v2530 = vunpack.c.l.b16 %v771
        %v2531 = vunpack.c.l.b16 %v772
        %v2532 = vunpack.c.h.b16 %v772
        %v2533 = vunpack.c.l.b16 %v773
        %v2534 = vunpack.c.h.b16 %v773
        %v2535 = vunpack.c.l.b16 %v774
        %v2536 = vunpack.c.h.b16 %v774
        %v2537 = vunpack.c.l.b16 %v775
        %v2538 = vunpack.c.h.b16 %v775
        %v2539 = vunpack.c.l.b16 %v776
        %v2540 = vunpack.c.h.b16 %v776
        %v2541 = vunpack.c.l.b16 %v777
        %v2542 = vunpack.c.h.b16 %v777
        %v2543 = vunpack.c.l.b16 %v778
        %v2544 = vunpack.c.h.b16 %v778
        %v2545 = vunpack.c.l.b16 %v779
        %v2546 = vunpack.c.h.b16 %v779
        %v2547 = vunpack.c.l.b16 %v780
        %v2548 = vunpack.c.h.b16 %v780
        %v2549 = vunpack.c.l.b16 %v781
        %v2550 = vunpack.c.h.b16 %v781
        %v2551 = vunpack.c.l.b16 %v782
        %v2552 = vunpack.c.h.b16 %v782
        %v2553 = vunpack.c.l.b16 %v783
        %v2554 = vunpack.c.h.b16 %v783
        %v2555 = vunpack.c.l.b16 %v784
        %v2556 = vunpack.c.h.b16 %v784
        %v2557 = vunpack.c.l.b16 %v785
        %v2558 = vunpack.c.h.b16 %v785
        %v2559 = vunpack.c.l.b16 %v786
        %v2560 = vunpack.c.h.b16 %v786
        %v2561 = vunpack.c.l.b16 %v787
        %v2562 = vunpack.c.h.b16 %v787
        %v2563 = vunpack.c.l.b16 %v788
        %v2564 = vpack.c.b16 %v1541, %v1508
        %v2565 = vpack.c.b16 %v1542, %v1509
        %v2566 = vpack.c.b16 %v1543, %v1510
        %v2567 = vpack.c.b16 %v1544, %v1511
        %v2568 = vpack.c.b16 %v1545, %v1512
        %v2569 = vpack.c.b16 %v1546, %v1513
        %v2570 = vpack.c.b16 %v1547, %v1514
        %v2571 = vpack.c.b16 %v1548, %v1515
        %v2572 = vpack.c.b16 %v1549, %v1516
        %v2573 = vpack.c.b16 %v1550, %v1517
        %v2574 = vpack.c.b16 %v1551, %v1518
        %v2575 = vpack.c.b16 %v1552, %v1519
        %v2576 = vpack.c.b16 %v1553, %v1520
        %v2577 = vpack.c.b16 %v1554, %v1521
        %v2578 = vpack.c.b16 %v1555, %v1522
        %v2579 = vpack.c.b16 %v1556, %v1523
        %v2580 = vpack.c.b16 %v1557, %v1524
        %v2581 = vpack.c.b16 %v1558, %v1525
        %v2582 = vpack.c.b16 %v1559, %v1526
        %v2583 = vpack.c.b16 %v1560, %v1527
        %v2584 = vpack.c.b16 %v1561, %v1528
        %v2585 = vpack.c.b16 %v1562, %v1529
        %v2586 = vpack.c.b16 %v1563, %v1530
        %v2587 = vpack.c.b16 %v1564, %v1531
        %v2588 = vpack.c.b16 %v1565, %v1532
        %v2589 = vpack.c.b16 %v1566, %v1533
        %v2590 = vpack.c.b16 %v1567, %v1534
        %v2591 = vpack.c.b16 %v1568, %v1535
        %v2592 = vpack.c.b16 %v1569, %v1536
        %v2593 = vpack.c.b16 %v1570, %v1537
        %v2594 = vpack.c.b16 %v1571, %v1538
        %v2595 = vpack.c.b16 %v1572, %v1539
        %v2596 = vpack.c.b16 %v1573, %v1540
        %v2597 = vpack.c.b16 %v1607, %v1574
        %v2598 = vpack.c.b16 %v1608, %v1575
        %v2599 = vpack.c.b16 %v1609, %v1576
        %v2600 = vpack.c.b16 %v1610, %v1577
        %v2601 = vpack.c.b16 %v1611, %v1578
        %v2602 = vpack.c.b16 %v1612, %v1579
        %v2603 = vpack.c.b16 %v1613, %v1580
        %v2604 = vpack.c.b16 %v1614, %v1581
        %v2605 = vpack.c.b16 %v1615, %v1582
        %v2606 = vpack.c.b16 %v1616, %v1583
        %v2607 = vpack.c.b16 %v1617, %v1584
        %v2608 = vpack.c.b16 %v1618, %v1585
        %v2609 = vpack.c.b16 %v1619, %v1586
        %v2610 = vpack.c.b16 %v1620, %v1587
        %v2611 = vpack.c.b16 %v1621, %v1588
        %v2612 = vpack.c.b16 %v1622, %v1589
        %v2613 = vpack.c.b16 %v1623, %v1590
        %v2614 = vpack.c.b16 %v1624, %v1591
        %v2615 = vpack.c.b16 %v1625, %v1592
        %v2616 = vpack.c.b16 %v1626, %v1593
        %v2617 = vpack.c.b16 %v1627, %v1594
        %v2618 = vpack.c.b16 %v1628, %v1595
        %v2619 = vpack.c.b16 %v1629, %v1596
        %v2620 = vpack.c.b16 %v1630, %v1597
        %v2621 = vpack.c.b16 %v1631, %v1598
        %v2622 = vpack.c.b16 %v1632, %v1599
        %v2623 = vpack.c.b16 %v1633, %v1600
        %v2624 = vpack.c.b16 %v1634, %v1601
        %v2625 = vpack.c.b16 %v1635, %v1602
        %v2626 = vpack.c.b16 %v1636, %v1603
        %v2627 = vpack.c.b16 %v1637, %v1604
        %v2628 = vpack.c.b16 %v1638, %v1605
        %v2629 = vpack.c.b16 %v1639, %v1606
        %v2630 = vpack.c.b16 %v1673, %v1640
        %v2631 = vpack.c.b16 %v1674, %v1641
        %v2632 = vpack.c.b16 %v1675, %v1642
        %v2633 = vpack.c.b16 %v1676, %v1643
        %v2634 = vpack.c.b16 %v1677, %v1644
        %v2635 = vpack.c.b16 %v1678, %v1645
        %v2636 = vpack.c.b16 %v1679, %v1646
        %v2637 = vpack.c.b16 %v1680, %v1647
        %v2638 = vpack.c.b16 %v1681, %v1648
        %v2639 = vpack.c.b16 %v1682, %v1649
        %v2640 = vpack.c.b16 %v1683, %v1650
        %v2641 = vpack.c.b16 %v1684, %v1651
        %v2642 = vpack.c.b16 %v1685, %v1652
        %v2643 = vpack.c.b16 %v1686, %v1653
        %v2644 = vpack.c.b16 %v1687, %v1654
        %v2645 = vpack.c.b16 %v1688, %v1655
        %v2646 = vpack.c.b16 %v1689, %v1656
        %v2647 = vpack.c.b16 %v1690, %v1657
        %v2648 = vpack.c.b16 %v1691, %v1658
        %v2649 = vpack.c.b16 %v1692, %v1659
        %v2650 = vpack.c.b16 %v1693, %v1660
        %v2651 = vpack.c.b16 %v1694, %v1661
        %v2652 = vpack.c.b16 %v1695, %v1662
        %v2653 = vpack.c.b16 %v1696, %v1663
        %v2654 = vpack.c.b16 %v1697, %v1664
        %v2655 = vpack.c.b16 %v1698, %v1665
        %v2656 = vpack.c.b16 %v1699, %v1666
        %v2657 = vpack.c.b16 %v1700, %v1667
        %v2658 = vpack.c.b16 %v1701, %v1668
        %v2659 = vpack.c.b16 %v1702, %v1669
        %v2660 = vpack.c.b16 %v1703, %v1670
        %v2661 = vpack.c.b16 %v1704, %v1671
        %v2662 = vpack.c.b16 %v1705, %v1672
        %v2663 = vpack.c.b16 %v1739, %v1706
        %v2664 = vpack.c.b16 %v1740, %v1707
        %v2665 = vpack.c.b16 %v1741, %v1708
        %v2666 = vpack.c.b16 %v1742, %v1709
        %v2667 = vpack.c.b16 %v1743, %v1710
        %v2668 = vpack.c.b16 %v1744, %v1711
        %v2669 = vpack.c.b16 %v1745, %v1712
        %v2670 = vpack.c.b16 %v1746, %v1713
        %v2671 = vpack.c.b16 %v1747, %v1714
        %v2672 = vpack.c.b16 %v1748, %v1715
        %v2673 = vpack.c.b16 %v1749, %v1716
        %v2674 = vpack.c.b16 %v1750, %v1717
        %v2675 = vpack.c.b16 %v1751, %v1718
        %v2676 = vpack.c.b16 %v1752, %v1719
        %v2677 = vpack.c.b16 %v1753, %v1720
        %v2678 = vpack.c.b16 %v1754, %v1721
        %v2679 = vpack.c.b16 %v1755, %v1722
        %v2680 = vpack.c.b16 %v1756, %v1723
        %v2681 = vpack.c.b16 %v1757, %v1724
        %v2682 = vpack.c.b16 %v1758, %v1725
        %v2683 = vpack.c.b16 %v1759, %v1726
        %v2684 = vpack.c.b16 %v1760, %v1727
        %v2685 = vpack.c.b16 %v1761, %v1728
        %v2686 = vpack.c.b16 %v1762, %v1729
        %v2687 = vpack.c.b16 %v1763, %v1730
        %v2688 = vpack.c.b16 %v1764, %v1731
        %v2689 = vpack.c.b16 %v1765, %v1732
        %v2690 = vpack.c.b16 %v1766, %v1733
        %v2691 = vpack.c.b16 %v1767, %v1734
        %v2692 = vpack.c.b16 %v1768, %v1735
        %v2693 = vpack.c.b16 %v1769, %v1736
        %v2694 = vpack.c.b16 %v1770, %v1737
        %v2695 = vpack.c.b16 %v1771, %v1738
        %v2696 = vpack.c.b16 %v1805, %v1772
        %v2697 = vpack.c.b16 %v1806, %v1773
        %v2698 = vpack.c.b16 %v1807, %v1774
        %v2699 = vpack.c.b16 %v1808, %v1775
        %v2700 = vpack.c.b16 %v1809, %v1776
        %v2701 = vpack.c.b16 %v1810, %v1777
        %v2702 = vpack.c.b16 %v1811, %v1778
        %v2703 = vpack.c.b16 %v1812, %v1779
        %v2704 = vpack.c.b16 %v1813, %v1780
        %v2705 = vpack.c.b16 %v1814, %v1781
        %v2706 = vpack.c.b16 %v1815, %v1782
        %v2707 = vpack.c.b16 %v1816, %v1783
        %v2708 = vpack.c.b16 %v1817, %v1784
        %v2709 = vpack.c.b16 %v1818, %v1785
        %v2710 = vpack.c.b16 %v1819, %v1786
        %v2711 = vpack.c.b16 %v1820, %v1787
        %v2712 = vpack.c.b16 %v1821, %v1788
        %v2713 = vpack.c.b16 %v1822, %v1789
        %v2714 = vpack.c.b16 %v1823, %v1790
        %v2715 = vpack.c.b16 %v1824, %v1791
        %v2716 = vpack.c.b16 %v1825, %v1792
        %v2717 = vpack.c.b16 %v1826, %v1793
        %v2718 = vpack.c.b16 %v1827, %v1794
        %v2719 = vpack.c.b16 %v1828, %v1795
        %v2720 = vpack.c.b16 %v1829, %v1796
        %v2721 = vpack.c.b16 %v1830, %v1797
        %v2722 = vpack.c.b16 %v1831, %v1798
        %v2723 = vpack.c.b16 %v1832, %v1799
        %v2724 = vpack.c.b16 %v1833, %v1800
        %v2725 = vpack.c.b16 %v1834, %v1801
        %v2726 = vpack.c.b16 %v1835, %v1802
        %v2727 = vpack.c.b16 %v1836, %v1803
        %v2728 = vpack.c.b16 %v1837, %v1804
        %v2729 = vpack.c.b16 %v1871, %v1838
        %v2730 = vpack.c.b16 %v1872, %v1839
        %v2731 = vpack.c.b16 %v1873, %v1840
        %v2732 = vpack.c.b16 %v1874, %v1841
        %v2733 = vpack.c.b16 %v1875, %v1842
        %v2734 = vpack.c.b16 %v1876, %v1843
        %v2735 = vpack.c.b16 %v1877, %v1844
        %v2736 = vpack.c.b16 %v1878, %v1845
        %v2737 = vpack.c.b16 %v1879, %v1846
        %v2738 = vpack.c.b16 %v1880, %v1847
        %v2739 = vpack.c.b16 %v1881, %v1848
        %v2740 = vpack.c.b16 %v1882, %v1849
        %v2741 = vpack.c.b16 %v1883, %v1850
        %v2742 = vpack.c.b16 %v1884, %v1851
        %v2743 = vpack.c.b16 %v1885, %v1852
        %v2744 = vpack.c.b16 %v1886, %v1853
        %v2745 = vpack.c.b16 %v1887, %v1854
        %v2746 = vpack.c.b16 %v1888, %v1855
        %v2747 = vpack.c.b16 %v1889, %v1856
        %v2748 = vpack.c.b16 %v1890, %v1857
        %v2749 = vpack.c.b16 %v1891, %v1858
        %v2750 = vpack.c.b16 %v1892, %v1859
        %v2751 = vpack.c.b16 %v1893, %v1860
        %v2752 = vpack.c.b16 %v1894, %v1861
        %v2753 = vpack.c.b16 %v1895, %v1862
        %v2754 = vpack.c.b16 %v1896, %v1863
        %v2755 = vpack.c.b16 %v1897, %v1864
        %v2756 = vpack.c.b16 %v1898, %v1865
        %v2757 = vpack.c.b16 %v1899, %v1866
        %v2758 = vpack.c.b16 %v1900, %v1867
        %v2759 = vpack.c.b16 %v1901, %v1868
        %v2760 = vpack.c.b16 %v1902, %v1869
        %v2761 = vpack.c.b16 %v1903, %v1870
        %v2762 = vpack.c.b16 %v1937, %v1904
        %v2763 = vpack.c.b16 %v1938, %v1905
        %v2764 = vpack.c.b16 %v1939, %v1906
        %v2765 = vpack.c.b16 %v1940, %v1907
        %v2766 = vpack.c.b16 %v1941, %v1908
        %v2767 = vpack.c.b16 %v1942, %v1909
        %v2768 = vpack.c.b16 %v1943, %v1910
        %v2769 = vpack.c.b16 %v1944, %v1911
        %v2770 = vpack.c.b16 %v1945, %v1912
        %v2771 = vpack.c.b16 %v1946, %v1913
        %v2772 = vpack.c.b16 %v1947, %v1914
        %v2773 = vpack.c.b16 %v1948, %v1915
        %v2774 = vpack.c.b16 %v1949, %v1916
        %v2775 = vpack.c.b16 %v1950, %v1917
        %v2776 = vpack.c.b16 %v1951, %v1918
        %v2777 = vpack.c.b16 %v1952, %v1919
        %v2778 = vpack.c.b16 %v1953, %v1920
        %v2779 = vpack.c.b16 %v1954, %v1921
        %v2780 = vpack.c.b16 %v1955, %v1922
        %v2781 = vpack.c.b16 %v1956, %v1923
        %v2782 = vpack.c.b16 %v1957, %v1924
        %v2783 = vpack.c.b16 %v1958, %v1925
        %v2784 = vpack.c.b16 %v1959, %v1926
        %v2785 = vpack.c.b16 %v1960, %v1927
        %v2786 = vpack.c.b16 %v1961, %v1928
        %v2787 = vpack.c.b16 %v1962, %v1929
        %v2788 = vpack.c.b16 %v1963, %v1930
        %v2789 = vpack.c.b16 %v1964, %v1931
        %v2790 = vpack.c.b16 %v1965, %v1932
        %v2791 = vpack.c.b16 %v1966, %v1933
        %v2792 = vpack.c.b16 %v1967, %v1934
        %v2793 = vpack.c.b16 %v1968, %v1935
        %v2794 = vpack.c.b16 %v1969, %v1936
        %v2795 = vpack.c.b16 %v2003, %v1970
        %v2796 = vpack.c.b16 %v2004, %v1971
        %v2797 = vpack.c.b16 %v2005, %v1972
        %v2798 = vpack.c.b16 %v2006, %v1973
        %v2799 = vpack.c.b16 %v2007, %v1974
        %v2800 = vpack.c.b16 %v2008, %v1975
        %v2801 = vpack.c.b16 %v2009, %v1976
        %v2802 = vpack.c.b16 %v2010, %v1977
        %v2803 = vpack.c.b16 %v2011, %v1978
        %v2804 = vpack.c.b16 %v2012, %v1979
        %v2805 = vpack.c.b16 %v2013, %v1980
        %v2806 = vpack.c.b16 %v2014, %v1981
        %v2807 = vpack.c.b16 %v2015, %v1982
        %v2808 = vpack.c.b16 %v2016, %v1983
        %v2809 = vpack.c.b16 %v2017, %v1984
        %v2810 = vpack.c.b16 %v2018, %v1985
        %v2811 = vpack.c.b16 %v2019, %v1986
        %v2812 = vpack.c.b16 %v2020, %v1987
        %v2813 = vpack.c.b16 %v2021, %v1988
        %v2814 = vpack.c.b16 %v2022, %v1989
        %v2815 = vpack.c.b16 %v2023, %v1990
        %v2816 = vpack.c.b16 %v2024, %v1991
        %v2817 = vpack.c.b16 %v2025, %v1992
        %v2818 = vpack.c.b16 %v2026, %v1993
        %v2819 = vpack.c.b16 %v2027, %v1994
        %v2820 = vpack.c.b16 %v2028, %v1995
        %v2821 = vpack.c.b16 %v2029, %v1996
        %v2822 = vpack.c.b16 %v2030, %v1997
        %v2823 = vpack.c.b16 %v2031, %v1998
        %v2824 = vpack.c.b16 %v2032, %v1999
        %v2825 = vpack.c.b16 %v2033, %v2000
        %v2826 = vpack.c.b16 %v2034, %v2001
        %v2827 = vpack.c.b16 %v2035, %v2002
        %v2828 = vpack.c.b16 %v2069, %v2036
        %v2829 = vpack.c.b16 %v2070, %v2037
        %v2830 = vpack.c.b16 %v2071, %v2038
        %v2831 = vpack.c.b16 %v2072, %v2039
        %v2832 = vpack.c.b16 %v2073, %v2040
        %v2833 = vpack.c.b16 %v2074, %v2041
        %v2834 = vpack.c.b16 %v2075, %v2042
        %v2835 = vpack.c.b16 %v2076, %v2043
        %v2836 = vpack.c.b16 %v2077, %v2044
        %v2837 = vpack.c.b16 %v2078, %v2045
        %v2838 = vpack.c.b16 %v2079, %v2046
        %v2839 = vpack.c.b16 %v2080, %v2047
        %v2840 = vpack.c.b16 %v2081, %v2048
        %v2841 = vpack.c.b16 %v2082, %v2049
        %v2842 = vpack.c.b16 %v2083, %v2050
        %v2843 = vpack.c.b16 %v2084, %v2051
        %v2844 = vpack.c.b16 %v2085, %v2052
        %v2845 = vpack.c.b16 %v2086, %v2053
        %v2846 = vpack.c.b16 %v2087, %v2054
        %v2847 = vpack.c.b16 %v2088, %v2055
        %v2848 = vpack.c.b16 %v2089, %v2056
        %v2849 = vpack.c.b16 %v2090, %v2057
        %v2850 = vpack.c.b16 %v2091, %v2058
        %v2851 = vpack.c.b16 %v2092, %v2059
        %v2852 = vpack.c.b16 %v2093, %v2060
        %v2853 = vpack.c.b16 %v2094, %v2061
        %v2854 = vpack.c.b16 %v2095, %v2062
        %v2855 = vpack.c.b16 %v2096, %v2063
        %v2856 = vpack.c.b16 %v2097, %v2064
        %v2857 = vpack.c.b16 %v2098, %v2065
        %v2858 = vpack.c.b16 %v2099, %v2066
        %v2859 = vpack.c.b16 %v2100, %v2067
        %v2860 = vpack.c.b16 %v2101, %v2068
        %v2861 = vpack.c.b16 %v2135, %v2102
        %v2862 = vpack.c.b16 %v2136, %v2103
        %v2863 = vpack.c.b16 %v2137, %v2104
        %v2864 = vpack.c.b16 %v2138, %v2105
        %v2865 = vpack.c.b16 %v2139, %v2106
        %v2866 = vpack.c.b16 %v2140, %v2107
        %v2867 = vpack.c.b16 %v2141, %v2108
        %v2868 = vpack.c.b16 %v2142, %v2109
        %v2869 = vpack.c.b16 %v2143, %v2110
        %v2870 = vpack.c.b16 %v2144, %v2111
        %v2871 = vpack.c.b16 %v2145, %v2112
        %v2872 = vpack.c.b16 %v2146, %v2113
        %v2873 = vpack.c.b16 %v2147, %v2114
        %v2874 = vpack.c.b16 %v2148, %v2115
        %v2875 = vpack.c.b16 %v2149, %v2116
        %v2876 = vpack.c.b16 %v2150, %v2117
        %v2877 = vpack.c.b16 %v2151, %v2118
        %v2878 = vpack.c.b16 %v2152, %v2119
        %v2879 = vpack.c.b16 %v2153, %v2120
        %v2880 = vpack.c.b16 %v2154, %v2121
        %v2881 = vpack.c.b16 %v2155, %v2122
        %v2882 = vpack.c.b16 %v2156, %v2123
        %v2883 = vpack.c.b16 %v2157, %v2124
        %v2884 = vpack.c.b16 %v2158, %v2125
        %v2885 = vpack.c.b16 %v2159, %v2126
        %v2886 = vpack.c.b16 %v2160, %v2127
        %v2887 = vpack.c.b16 %v2161, %v2128
        %v2888 = vpack.c.b16 %v2162, %v2129
        %v2889 = vpack.c.b16 %v2163, %v2130
        %v2890 = vpack.c.b16 %v2164, %v2131
        %v2891 = vpack.c.b16 %v2165, %v2132
        %v2892 = vpack.c.b16 %v2166, %v2133
        %v2893 = vpack.c.b16 %v2167, %v2134
        %v2894 = vpack.c.b16 %v2201, %v2168
        %v2895 = vpack.c.b16 %v2202, %v2169
        %v2896 = vpack.c.b16 %v2203, %v2170
        %v2897 = vpack.c.b16 %v2204, %v2171
        %v2898 = vpack.c.b16 %v2205, %v2172
        %v2899 = vpack.c.b16 %v2206, %v2173
        %v2900 = vpack.c.b16 %v2207, %v2174
        %v2901 = vpack.c.b16 %v2208, %v2175
        %v2902 = vpack.c.b16 %v2209, %v2176
        %v2903 = vpack.c.b16 %v2210, %v2177
        %v2904 = vpack.c.b16 %v2211, %v2178
        %v2905 = vpack.c.b16 %v2212, %v2179
        %v2906 = vpack.c.b16 %v2213, %v2180
        %v2907 = vpack.c.b16 %v2214, %v2181
        %v2908 = vpack.c.b16 %v2215, %v2182
        %v2909 = vpack.c.b16 %v2216, %v2183
        %v2910 = vpack.c.b16 %v2217, %v2184
        %v2911 = vpack.c.b16 %v2218, %v2185
        %v2912 = vpack.c.b16 %v2219, %v2186
        %v2913 = vpack.c.b16 %v2220, %v2187
        %v2914 = vpack.c.b16 %v2221, %v2188
        %v2915 = vpack.c.b16 %v2222, %v2189
        %v2916 = vpack.c.b16 %v2223, %v2190
        %v2917 = vpack.c.b16 %v2224, %v2191
        %v2918 = vpack.c.b16 %v2225, %v2192
        %v2919 = vpack.c.b16 %v2226, %v2193
        %v2920 = vpack.c.b16 %v2227, %v2194
        %v2921 = vpack.c.b16 %v2228, %v2195
        %v2922 = vpack.c.b16 %v2229, %v2196
        %v2923 = vpack.c.b16 %v2230, %v2197
        %v2924 = vpack.c.b16 %v2231, %v2198
        %v2925 = vpack.c.b16 %v2232, %v2199
        %v2926 = vpack.c.b16 %v2233, %v2200
        %v2927 = vpack.c.b16 %v2267, %v2234
        %v2928 = vpack.c.b16 %v2268, %v2235
        %v2929 = vpack.c.b16 %v2269, %v2236
        %v2930 = vpack.c.b16 %v2270, %v2237
        %v2931 = vpack.c.b16 %v2271, %v2238
        %v2932 = vpack.c.b16 %v2272, %v2239
        %v2933 = vpack.c.b16 %v2273, %v2240
        %v2934 = vpack.c.b16 %v2274, %v2241
        %v2935 = vpack.c.b16 %v2275, %v2242
        %v2936 = vpack.c.b16 %v2276, %v2243
        %v2937 = vpack.c.b16 %v2277, %v2244
        %v2938 = vpack.c.b16 %v2278, %v2245
        %v2939 = vpack.c.b16 %v2279, %v2246
        %v2940 = vpack.c.b16 %v2280, %v2247
        %v2941 = vpack.c.b16 %v2281, %v2248
        %v2942 = vpack.c.b16 %v2282, %v2249
        %v2943 = vpack.c.b16 %v2283, %v2250
        %v2944 = vpack.c.b16 %v2284, %v2251
        %v2945 = vpack.c.b16 %v2285, %v2252
        %v2946 = vpack.c.b16 %v2286, %v2253
        %v2947 = vpack.c.b16 %v2287, %v2254
        %v2948 = vpack.c.b16 %v2288, %v2255
        %v2949 = vpack.c.b16 %v2289, %v2256
        %v2950 = vpack.c.b16 %v2290, %v2257
        %v2951 = vpack.c.b16 %v2291, %v2258
        %v2952 = vpack.c.b16 %v2292, %v2259
        %v2953 = vpack.c.b16 %v2293, %v2260
        %v2954 = vpack.c.b16 %v2294, %v2261
        %v2955 = vpack.c.b16 %v2295, %v2262
        %v2956 = vpack.c.b16 %v2296, %v2263
        %v2957 = vpack.c.b16 %v2297, %v2264
        %v2958 = vpack.c.b16 %v2298, %v2265
        %v2959 = vpack.c.b16 %v2299, %v2266
        %v2960 = vpack.c.b16 %v2333, %v2300
        %v2961 = vpack.c.b16 %v2334, %v2301
        %v2962 = vpack.c.b16 %v2335, %v2302
        %v2963 = vpack.c.b16 %v2336, %v2303
        %v2964 = vpack.c.b16 %v2337, %v2304
        %v2965 = vpack.c.b16 %v2338, %v2305
        %v2966 = vpack.c.b16 %v2339, %v2306
        %v2967 = vpack.c.b16 %v2340, %v2307
        %v2968 = vpack.c.b16 %v2341, %v2308
        %v2969 = vpack.c.b16 %v2342, %v2309
        %v2970 = vpack.c.b16 %v2343, %v2310
        %v2971 = vpack.c.b16 %v2344, %v2311
        %v2972 = vpack.c.b16 %v2345, %v2312
        %v2973 = vpack.c.b16 %v2346, %v2313
        %v2974 = vpack.c.b16 %v2347, %v2314
        %v2975 = vpack.c.b16 %v2348, %v2315
        %v2976 = vpack.c.b16 %v2349, %v2316
        %v2977 = vpack.c.b16 %v2350, %v2317
        %v2978 = vpack.c.b16 %v2351, %v2318
        %v2979 = vpack.c.b16 %v2352, %v2319
        %v2980 = vpack.c.b16 %v2353, %v2320
        %v2981 = vpack.c.b16 %v2354, %v2321
        %v2982 = vpack.c.b16 %v2355, %v2322
        %v2983 = vpack.c.b16 %v2356, %v2323
        %v2984 = vpack.c.b16 %v2357, %v2324
        %v2985 = vpack.c.b16 %v2358, %v2325
        %v2986 = vpack.c.b16 %v2359, %v2326
        %v2987 = vpack.c.b16 %v2360, %v2327
        %v2988 = vpack.c.b16 %v2361, %v2328
        %v2989 = vpack.c.b16 %v2362, %v2329
        %v2990 = vpack.c.b16 %v2363, %v2330
        %v2991 = vpack.c.b16 %v2364, %v2331
        %v2992 = vpack.c.b16 %v2365, %v2332
        %v2993 = vpack.c.b16 %v2399, %v2366
        %v2994 = vpack.c.b16 %v2400, %v2367
        %v2995 = vpack.c.b16 %v2401, %v2368
        %v2996 = vpack.c.b16 %v2402, %v2369
        %v2997 = vpack.c.b16 %v2403, %v2370
        %v2998 = vpack.c.b16 %v2404, %v2371
        %v2999 = vpack.c.b16 %v2405, %v2372
        %v3000 = vpack.c.b16 %v2406, %v2373
        %v3001 = vpack.c.b16 %v2407, %v2374
        %v3002 = vpack.c.b16 %v2408, %v2375
        %v3003 = vpack.c.b16 %v2409, %v2376
        %v3004 = vpack.c.b16 %v2410, %v2377
        %v3005 = vpack.c.b16 %v2411, %v2378
        %v3006 = vpack.c.b16 %v2412, %v2379
        %v3007 = vpack.c.b16 %v2413, %v2380
        %v3008 = vpack.c.b16 %v2414, %v2381
        %v3009 = vpack.c.b16 %v2415, %v2382
        %v3010 = vpack.c.b16 %v2416, %v2383
        %v3011 = vpack.c.b16 %v2417, %v2384
        %v3012 = vpack.c.b16 %v2418, %v2385
        %v3013 = vpack.c.b16 %v2419, %v2386
        %v3014 = vpack.c.b16 %v2420, %v2387
        %v3015 = vpack.c.b16 %v2421, %v2388
        %v3016 = vpack.c.b16 %v2422, %v2389
        %v3017 = vpack.c.b16 %v2423, %v2390
        %v3018 = vpack.c.b16 %v2424, %v2391
        %v3019 = vpack.c.b16 %v2425, %v2392
        %v3020 = vpack.c.b16 %v2426, %v2393
        %v3021 = vpack.c.b16 %v2427, %v2394
        %v3022 = vpack.c.b16 %v2428, %v2395
        %v3023 = vpack.c.b16 %v2429, %v2396
        %v3024 = vpack.c.b16 %v2430, %v2397
        %v3025 = vpack.c.b16 %v2431, %v2398
        %v3026 = vpack.c.b16 %v2465, %v2432
        %v3027 = vpack.c.b16 %v2466, %v2433
        %v3028 = vpack.c.b16 %v2467, %v2434
        %v3029 = vpack.c.b16 %v2468, %v2435
        %v3030 = vpack.c.b16 %v2469, %v2436
        %v3031 = vpack.c.b16 %v2470, %v2437
        %v3032 = vpack.c.b16 %v2471, %v2438
        %v3033 = vpack.c.b16 %v2472, %v2439
        %v3034 = vpack.c.b16 %v2473, %v2440
        %v3035 = vpack.c.b16 %v2474, %v2441
        %v3036 = vpack.c.b16 %v2475, %v2442
        %v3037 = vpack.c.b16 %v2476, %v2443
        %v3038 = vpack.c.b16 %v2477, %v2444
        %v3039 = vpack.c.b16 %v2478, %v2445
        %v3040 = vpack.c.b16 %v2479, %v2446
        %v3041 = vpack.c.b16 %v2480, %v2447
        %v3042 = vpack.c.b16 %v2481, %v2448
        %v3043 = vpack.c.b16 %v2482, %v2449
        %v3044 = vpack.c.b16 %v2483, %v2450
        %v3045 = vpack.c.b16 %v2484, %v2451
        %v3046 = vpack.c.b16 %v2485, %v2452
        %v3047 = vpack.c.b16 %v2486, %v2453
        %v3048 = vpack.c.b16 %v2487, %v2454
        %v3049 = vpack.c.b16 %v2488, %v2455
        %v3050 = vpack.c.b16 %v2489, %v2456
        %v3051 = vpack.c.b16 %v2490, %v2457
        %v3052 = vpack.c.b16 %v2491, %v2458
        %v3053 = vpack.c.b16 %v2492, %v2459
        %v3054 = vpack.c.b16 %v2493, %v2460
        %v3055 = vpack.c.b16 %v2494, %v2461
        %v3056 = vpack.c.b16 %v2495, %v2462
        %v3057 = vpack.c.b16 %v2496, %v2463
        %v3058 = vpack.c.b16 %v2497, %v2464
        %v3059 = vpack.c.b16 %v2531, %v2498
        %v3060 = vpack.c.b16 %v2532, %v2499
        %v3061 = vpack.c.b16 %v2533, %v2500
        %v3062 = vpack.c.b16 %v2534, %v2501
        %v3063 = vpack.c.b16 %v2535, %v2502
        %v3064 = vpack.c.b16 %v2536, %v2503
        %v3065 = vpack.c.b16 %v2537, %v2504
        %v3066 = vpack.c.b16 %v2538, %v2505
        %v3067 = vpack.c.b16 %v2539, %v2506
        %v3068 = vpack.c.b16 %v2540, %v2507
        %v3069 = vpack.c.b16 %v2541, %v2508
        %v3070 = vpack.c.b16 %v2542, %v2509
        %v3071 = vpack.c.b16 %v2543, %v2510
        %v3072 = vpack.c.b16 %v2544, %v2511
        %v3073 = vpack.c.b16 %v2545, %v2512
        %v3074 = vpack.c.b16 %v2546, %v2513
        %v3075 = vpack.c.b16 %v2547, %v2514
        %v3076 = vpack.c.b16 %v2548, %v2515
        %v3077 = vpack.c.b16 %v2549, %v2516
        %v3078 = vpack.c.b16 %v2550, %v2517
        %v3079 = vpack.c.b16 %v2551, %v2518
        %v3080 = vpack.c.b16 %v2552, %v2519
        %v3081 = vpack.c.b16 %v2553, %v2520
        %v3082 = vpack.c.b16 %v2554, %v2521
        %v3083 = vpack.c.b16 %v2555, %v2522
        %v3084 = vpack.c.b16 %v2556, %v2523
        %v3085 = vpack.c.b16 %v2557, %v2524
        %v3086 = vpack.c.b16 %v2558, %v2525
        %v3087 = vpack.c.b16 %v2559, %v2526
        %v3088 = vpack.c.b16 %v2560, %v2527
        %v3089 = vpack.c.b16 %v2561, %v2528
        %v3090 = vpack.c.b16 %v2562, %v2529
        %v3091 = vpack.c.b16 %v2563, %v2530
        %3620 = vmatprep.subr.bf16.mxu0 %v2796
        %3621 = vmatpush1.bf16.msra.mxu0 %v2795
        %3622 = vmatprep.subr.bf16.mxu0 %v2763
        %3623 = vmatpush1.bf16.msra.mxu0 %v2762
        %3624 = vmatprep.subr.bf16.mxu0 %v2730
        %3625 = vmatpush1.bf16.msra.mxu0 %v2729
        %3626 = vmatprep.subr.bf16.mxu0 %v2697
        %3627 = vmatpush1.bf16.msra.mxu0 %v2696
        %3628 = vmatprep.subr.bf16.mxu0 %v2664
        %3629 = vmatpush1.bf16.msra.mxu0 %v2663
        %3630 = vmatprep.subr.bf16.mxu0 %v2631
        %3631 = vmatpush1.bf16.msra.mxu0 %v2630
        %3632 = vmatprep.subr.bf16.mxu0 %v2598
        %3633 = vmatpush1.bf16.msra.mxu0 %v2597
        %3634 = vmatprep.subr.bf16.mxu0 %v2565
        %3635 = vmatpush1.bf16.msra.mxu0 %v2564
        %3636 = vmatprep.subr.bf16.mxu0 %v3060
        %3637 = vmatpush2.bf16.msra.mxu0 %v3059
        %3638 = vmatprep.subr.bf16.mxu0 %v3027
        %3639 = vmatpush2.bf16.msra.mxu0 %v3026
        %3640 = vmatprep.subr.bf16.mxu0 %v2994
        %3641 = vmatpush2.bf16.msra.mxu0 %v2993
        %3642 = vmatprep.subr.bf16.mxu0 %v2961
        %3643 = vmatpush2.bf16.msra.mxu0 %v2960
        %3644 = vmatprep.subr.bf16.mxu0 %v2928
        %3645 = vmatpush2.bf16.msra.mxu0 %v2927
        %3646 = vmatprep.subr.bf16.mxu0 %v2895
        %3647 = vmatpush2.bf16.msra.mxu0 %v2894
        %3648 = vmatprep.subr.bf16.mxu0 %v2862
        %3649 = vmatpush2.bf16.msra.mxu0 %v2861
        %3650 = vmatprep.subr.bf16.mxu0 %v2829
        %3651 = vmatpush2.bf16.msra.mxu0 %v2828
        %3652 = vmatprep.mubr.bf16.mxu0 %v244
        %3653 = vmatmul.mubr.bf16.gmra.mxu0 %v243
        %v3654 = vpop.f32.mrf.mxu0
        %v3655 = vadd.f32 %v802, %v3654
        %v3656 = vpop.f32.mrf.mxu0
        %v3657 = vadd.f32 %v806, %v3656
        %v3658 = vpop.f32.mrf.mxu0
        %v3659 = vpop.f32.mrf.mxu0
        %3660 = vdwg.mxu0
        %3661 = vmatprep.subr.bf16.mxu0 %v2798
        %3662 = vmatpush1.bf16.msra.mxu0 %v2797
        %3663 = vmatprep.subr.bf16.mxu0 %v2765
        %3664 = vmatpush1.bf16.msra.mxu0 %v2764
        %3665 = vmatprep.subr.bf16.mxu0 %v2732
        %3666 = vmatpush1.bf16.msra.mxu0 %v2731
        %3667 = vmatprep.subr.bf16.mxu0 %v2699
        %3668 = vmatpush1.bf16.msra.mxu0 %v2698
        %3669 = vmatprep.subr.bf16.mxu0 %v2666
        %3670 = vmatpush1.bf16.msra.mxu0 %v2665
        %3671 = vmatprep.subr.bf16.mxu0 %v2633
        %3672 = vmatpush1.bf16.msra.mxu0 %v2632
        %3673 = vmatprep.subr.bf16.mxu0 %v2600
        %3674 = vmatpush1.bf16.msra.mxu0 %v2599
        %3675 = vmatprep.subr.bf16.mxu0 %v2567
        %3676 = vmatpush1.bf16.msra.mxu0 %v2566
        %3677 = vmatprep.subr.bf16.mxu0 %v3062
        %3678 = vmatpush2.bf16.msra.mxu0 %v3061
        %3679 = vmatprep.subr.bf16.mxu0 %v3029
        %3680 = vmatpush2.bf16.msra.mxu0 %v3028
        %3681 = vmatprep.subr.bf16.mxu0 %v2996
        %3682 = vmatpush2.bf16.msra.mxu0 %v2995
        %3683 = vmatprep.subr.bf16.mxu0 %v2963
        %3684 = vmatpush2.bf16.msra.mxu0 %v2962
        %3685 = vmatprep.subr.bf16.mxu0 %v2930
        %3686 = vmatpush2.bf16.msra.mxu0 %v2929
        %3687 = vmatprep.subr.bf16.mxu0 %v2897
        %3688 = vmatpush2.bf16.msra.mxu0 %v2896
        %3689 = vmatprep.subr.bf16.mxu0 %v2864
        %3690 = vmatpush2.bf16.msra.mxu0 %v2863
        %3691 = vmatprep.subr.bf16.mxu0 %v2831
        %3692 = vmatpush2.bf16.msra.mxu0 %v2830
        %3693 = vmatprep.mubr.bf16.mxu0 %v244
        %3694 = vmatmul.mubr.bf16.gmra.mxu0 %v243
        %v3695 = vpop.f32.mrf.mxu0
        %v3696 = vadd.f32 %v810, %v3695
        %v3697 = vpop.f32.mrf.mxu0
        %v3698 = vadd.f32 %v814, %v3697
        %v3699 = vpop.f32.mrf.mxu0
        %v3700 = vpop.f32.mrf.mxu0
        %3701 = vdwg.mxu0
        %3702 = vmatprep.subr.bf16.mxu0 %v2800
        %3703 = vmatpush1.bf16.msra.mxu0 %v2799
        %3704 = vmatprep.subr.bf16.mxu0 %v2767
        %3705 = vmatpush1.bf16.msra.mxu0 %v2766
        %3706 = vmatprep.subr.bf16.mxu0 %v2734
        %3707 = vmatpush1.bf16.msra.mxu0 %v2733
        %3708 = vmatprep.subr.bf16.mxu0 %v2701
        %3709 = vmatpush1.bf16.msra.mxu0 %v2700
        %3710 = vmatprep.subr.bf16.mxu0 %v2668
        %3711 = vmatpush1.bf16.msra.mxu0 %v2667
        %3712 = vmatprep.subr.bf16.mxu0 %v2635
        %3713 = vmatpush1.bf16.msra.mxu0 %v2634
        %3714 = vmatprep.subr.bf16.mxu0 %v2602
        %3715 = vmatpush1.bf16.msra.mxu0 %v2601
        %3716 = vmatprep.subr.bf16.mxu0 %v2569
        %3717 = vmatpush1.bf16.msra.mxu0 %v2568
        %3718 = vmatprep.subr.bf16.mxu0 %v3064
        %3719 = vmatpush2.bf16.msra.mxu0 %v3063
        %3720 = vmatprep.subr.bf16.mxu0 %v3031
        %3721 = vmatpush2.bf16.msra.mxu0 %v3030
        %3722 = vmatprep.subr.bf16.mxu0 %v2998
        %3723 = vmatpush2.bf16.msra.mxu0 %v2997
        %3724 = vmatprep.subr.bf16.mxu0 %v2965
        %3725 = vmatpush2.bf16.msra.mxu0 %v2964
        %3726 = vmatprep.subr.bf16.mxu0 %v2932
        %3727 = vmatpush2.bf16.msra.mxu0 %v2931
        %3728 = vmatprep.subr.bf16.mxu0 %v2899
        %3729 = vmatpush2.bf16.msra.mxu0 %v2898
        %3730 = vmatprep.subr.bf16.mxu0 %v2866
        %3731 = vmatpush2.bf16.msra.mxu0 %v2865
        %3732 = vmatprep.subr.bf16.mxu0 %v2833
        %3733 = vmatpush2.bf16.msra.mxu0 %v2832
        %3734 = vmatprep.mubr.bf16.mxu0 %v244
        %3735 = vmatmul.mubr.bf16.gmra.mxu0 %v243
        %v3736 = vpop.f32.mrf.mxu0
        %v3737 = vadd.f32 %v818, %v3736
        %v3738 = vpop.f32.mrf.mxu0
        %v3739 = vadd.f32 %v822, %v3738
        %v3740 = vpop.f32.mrf.mxu0
        %v3741 = vpop.f32.mrf.mxu0
        %3742 = vdwg.mxu0
        %3743 = vmatprep.subr.bf16.mxu0 %v2802
        %3744 = vmatpush1.bf16.msra.mxu0 %v2801
        %3745 = vmatprep.subr.bf16.mxu0 %v2769
        %3746 = vmatpush1.bf16.msra.mxu0 %v2768
        %3747 = vmatprep.subr.bf16.mxu0 %v2736
        %3748 = vmatpush1.bf16.msra.mxu0 %v2735
        %3749 = vmatprep.subr.bf16.mxu0 %v2703
        %3750 = vmatpush1.bf16.msra.mxu0 %v2702
        %3751 = vmatprep.subr.bf16.mxu0 %v2670
        %3752 = vmatpush1.bf16.msra.mxu0 %v2669
        %3753 = vmatprep.subr.bf16.mxu0 %v2637
        %3754 = vmatpush1.bf16.msra.mxu0 %v2636
        %3755 = vmatprep.subr.bf16.mxu0 %v2604
        %3756 = vmatpush1.bf16.msra.mxu0 %v2603
        %3757 = vmatprep.subr.bf16.mxu0 %v2571
        %3758 = vmatpush1.bf16.msra.mxu0 %v2570
        %3759 = vmatprep.subr.bf16.mxu0 %v3066
        %3760 = vmatpush2.bf16.msra.mxu0 %v3065
        %3761 = vmatprep.subr.bf16.mxu0 %v3033
        %3762 = vmatpush2.bf16.msra.mxu0 %v3032
        %3763 = vmatprep.subr.bf16.mxu0 %v3000
        %3764 = vmatpush2.bf16.msra.mxu0 %v2999
        %3765 = vmatprep.subr.bf16.mxu0 %v2967
        %3766 = vmatpush2.bf16.msra.mxu0 %v2966
        %3767 = vmatprep.subr.bf16.mxu0 %v2934
        %3768 = vmatpush2.bf16.msra.mxu0 %v2933
        %3769 = vmatprep.subr.bf16.mxu0 %v2901
        %3770 = vmatpush2.bf16.msra.mxu0 %v2900
        %3771 = vmatprep.subr.bf16.mxu0 %v2868
        %3772 = vmatpush2.bf16.msra.mxu0 %v2867
        %3773 = vmatprep.subr.bf16.mxu0 %v2835
        %3774 = vmatpush2.bf16.msra.mxu0 %v2834
        %3775 = vmatprep.mubr.bf16.mxu0 %v244
        %3776 = vmatmul.mubr.bf16.gmra.mxu0 %v243
        %v3777 = vpop.f32.mrf.mxu0
        %v3778 = vadd.f32 %v826, %v3777
        %v3779 = vpop.f32.mrf.mxu0
        %v3780 = vadd.f32 %v830, %v3779
        %v3781 = vpop.f32.mrf.mxu0
        %v3782 = vpop.f32.mrf.mxu0
        %3783 = vdwg.mxu0
        %3784 = vmatprep.subr.bf16.mxu0 %v2804
        %3785 = vmatpush1.bf16.msra.mxu0 %v2803
        %3786 = vmatprep.subr.bf16.mxu0 %v2771
        %3787 = vmatpush1.bf16.msra.mxu0 %v2770
        %3788 = vmatprep.subr.bf16.mxu0 %v2738
        %3789 = vmatpush1.bf16.msra.mxu0 %v2737
        %3790 = vmatprep.subr.bf16.mxu0 %v2705
        %3791 = vmatpush1.bf16.msra.mxu0 %v2704
        %3792 = vmatprep.subr.bf16.mxu0 %v2672
        %3793 = vmatpush1.bf16.msra.mxu0 %v2671
        %3794 = vmatprep.subr.bf16.mxu0 %v2639
        %3795 = vmatpush1.bf16.msra.mxu0 %v2638
        %3796 = vmatprep.subr.bf16.mxu0 %v2606
        %3797 = vmatpush1.bf16.msra.mxu0 %v2605
        %3798 = vmatprep.subr.bf16.mxu0 %v2573
        %3799 = vmatpush1.bf16.msra.mxu0 %v2572
        %3800 = vmatprep.subr.bf16.mxu0 %v3068
        %3801 = vmatpush2.bf16.msra.mxu0 %v3067
        %3802 = vmatprep.subr.bf16.mxu0 %v3035
        %3803 = vmatpush2.bf16.msra.mxu0 %v3034
        %3804 = vmatprep.subr.bf16.mxu0 %v3002
        %3805 = vmatpush2.bf16.msra.mxu0 %v3001
        %3806 = vmatprep.subr.bf16.mxu0 %v2969
        %3807 = vmatpush2.bf16.msra.mxu0 %v2968
        %3808 = vmatprep.subr.bf16.mxu0 %v2936
        %3809 = vmatpush2.bf16.msra.mxu0 %v2935
        %3810 = vmatprep.subr.bf16.mxu0 %v2903
        %3811 = vmatpush2.bf16.msra.mxu0 %v2902
        %3812 = vmatprep.subr.bf16.mxu0 %v2870
        %3813 = vmatpush2.bf16.msra.mxu0 %v2869
        %3814 = vmatprep.subr.bf16.mxu0 %v2837
        %3815 = vmatpush2.bf16.msra.mxu0 %v2836
        %3816 = vmatprep.mubr.bf16.mxu0 %v244
        %3817 = vmatmul.mubr.bf16.gmra.mxu0 %v243
        %v3818 = vpop.f32.mrf.mxu0
        %v3819 = vadd.f32 %v834, %v3818
        %v3820 = vpop.f32.mrf.mxu0
        %v3821 = vadd.f32 %v838, %v3820
        %v3822 = vpop.f32.mrf.mxu0
        %v3823 = vpop.f32.mrf.mxu0
        %3824 = vdwg.mxu0
        %3825 = vmatprep.subr.bf16.mxu0 %v2806
        %3826 = vmatpush1.bf16.msra.mxu0 %v2805
        %3827 = vmatprep.subr.bf16.mxu0 %v2773
        %3828 = vmatpush1.bf16.msra.mxu0 %v2772
        %3829 = vmatprep.subr.bf16.mxu0 %v2740
        %3830 = vmatpush1.bf16.msra.mxu0 %v2739
        %3831 = vmatprep.subr.bf16.mxu0 %v2707
        %3832 = vmatpush1.bf16.msra.mxu0 %v2706
        %3833 = vmatprep.subr.bf16.mxu0 %v2674
        %3834 = vmatpush1.bf16.msra.mxu0 %v2673
        %3835 = vmatprep.subr.bf16.mxu0 %v2641
        %3836 = vmatpush1.bf16.msra.mxu0 %v2640
        %3837 = vmatprep.subr.bf16.mxu0 %v2608
        %3838 = vmatpush1.bf16.msra.mxu0 %v2607
        %3839 = vmatprep.subr.bf16.mxu0 %v2575
        %3840 = vmatpush1.bf16.msra.mxu0 %v2574
        %3841 = vmatprep.subr.bf16.mxu0 %v3070
        %3842 = vmatpush2.bf16.msra.mxu0 %v3069
        %3843 = vmatprep.subr.bf16.mxu0 %v3037
        %3844 = vmatpush2.bf16.msra.mxu0 %v3036
        %3845 = vmatprep.subr.bf16.mxu0 %v3004
        %3846 = vmatpush2.bf16.msra.mxu0 %v3003
        %3847 = vmatprep.subr.bf16.mxu0 %v2971
        %3848 = vmatpush2.bf16.msra.mxu0 %v2970
        %3849 = vmatprep.subr.bf16.mxu0 %v2938
        %3850 = vmatpush2.bf16.msra.mxu0 %v2937
        %3851 = vmatprep.subr.bf16.mxu0 %v2905
        %3852 = vmatpush2.bf16.msra.mxu0 %v2904
        %3853 = vmatprep.subr.bf16.mxu0 %v2872
        %3854 = vmatpush2.bf16.msra.mxu0 %v2871
        %3855 = vmatprep.subr.bf16.mxu0 %v2839
        %3856 = vmatpush2.bf16.msra.mxu0 %v2838
        %3857 = vmatprep.mubr.bf16.mxu0 %v244
        %3858 = vmatmul.mubr.bf16.gmra.mxu0 %v243
        %v3859 = vpop.f32.mrf.mxu0
        %v3860 = vadd.f32 %v842, %v3859
        %v3861 = vpop.f32.mrf.mxu0
        %v3862 = vadd.f32 %v846, %v3861
        %v3863 = vpop.f32.mrf.mxu0
        %v3864 = vpop.f32.mrf.mxu0
        %3865 = vdwg.mxu0
        %3866 = vmatprep.subr.bf16.mxu0 %v2808
        %3867 = vmatpush1.bf16.msra.mxu0 %v2807
        %3868 = vmatprep.subr.bf16.mxu0 %v2775
        %3869 = vmatpush1.bf16.msra.mxu0 %v2774
        %3870 = vmatprep.subr.bf16.mxu0 %v2742
        %3871 = vmatpush1.bf16.msra.mxu0 %v2741
        %3872 = vmatprep.subr.bf16.mxu0 %v2709
        %3873 = vmatpush1.bf16.msra.mxu0 %v2708
        %3874 = vmatprep.subr.bf16.mxu0 %v2676
        %3875 = vmatpush1.bf16.msra.mxu0 %v2675
        %3876 = vmatprep.subr.bf16.mxu0 %v2643
        %3877 = vmatpush1.bf16.msra.mxu0 %v2642
        %3878 = vmatprep.subr.bf16.mxu0 %v2610
        %3879 = vmatpush1.bf16.msra.mxu0 %v2609
        %3880 = vmatprep.subr.bf16.mxu0 %v2577
        %3881 = vmatpush1.bf16.msra.mxu0 %v2576
        %3882 = vmatprep.subr.bf16.mxu0 %v3072
        %3883 = vmatpush2.bf16.msra.mxu0 %v3071
        %3884 = vmatprep.subr.bf16.mxu0 %v3039
        %3885 = vmatpush2.bf16.msra.mxu0 %v3038
        %3886 = vmatprep.subr.bf16.mxu0 %v3006
        %3887 = vmatpush2.bf16.msra.mxu0 %v3005
        %3888 = vmatprep.subr.bf16.mxu0 %v2973
        %3889 = vmatpush2.bf16.msra.mxu0 %v2972
        %3890 = vmatprep.subr.bf16.mxu0 %v2940
        %3891 = vmatpush2.bf16.msra.mxu0 %v2939
        %3892 = vmatprep.subr.bf16.mxu0 %v2907
        %3893 = vmatpush2.bf16.msra.mxu0 %v2906
        %3894 = vmatprep.subr.bf16.mxu0 %v2874
        %3895 = vmatpush2.bf16.msra.mxu0 %v2873
        %3896 = vmatprep.subr.bf16.mxu0 %v2841
        %3897 = vmatpush2.bf16.msra.mxu0 %v2840
        %3898 = vmatprep.mubr.bf16.mxu0 %v244
        %3899 = vmatmul.mubr.bf16.gmra.mxu0 %v243
        %v3900 = vpop.f32.mrf.mxu0
        %v3901 = vadd.f32 %v850, %v3900
        %v3902 = vpop.f32.mrf.mxu0
        %v3903 = vadd.f32 %v854, %v3902
        %v3904 = vpop.f32.mrf.mxu0
        %v3905 = vpop.f32.mrf.mxu0
        %3906 = vdwg.mxu0
        %3907 = vmatprep.subr.bf16.mxu0 %v2810
        %3908 = vmatpush1.bf16.msra.mxu0 %v2809
        %3909 = vmatprep.subr.bf16.mxu0 %v2777
        %3910 = vmatpush1.bf16.msra.mxu0 %v2776
        %3911 = vmatprep.subr.bf16.mxu0 %v2744
        %3912 = vmatpush1.bf16.msra.mxu0 %v2743
        %3913 = vmatprep.subr.bf16.mxu0 %v2711
        %3914 = vmatpush1.bf16.msra.mxu0 %v2710
        %3915 = vmatprep.subr.bf16.mxu0 %v2678
        %3916 = vmatpush1.bf16.msra.mxu0 %v2677
        %3917 = vmatprep.subr.bf16.mxu0 %v2645
        %3918 = vmatpush1.bf16.msra.mxu0 %v2644
        %3919 = vmatprep.subr.bf16.mxu0 %v2612
        %3920 = vmatpush1.bf16.msra.mxu0 %v2611
        %3921 = vmatprep.subr.bf16.mxu0 %v2579
        %3922 = vmatpush1.bf16.msra.mxu0 %v2578
        %3923 = vmatprep.subr.bf16.mxu0 %v3074
        %3924 = vmatpush2.bf16.msra.mxu0 %v3073
        %3925 = vmatprep.subr.bf16.mxu0 %v3041
        %3926 = vmatpush2.bf16.msra.mxu0 %v3040
        %3927 = vmatprep.subr.bf16.mxu0 %v3008
        %3928 = vmatpush2.bf16.msra.mxu0 %v3007
        %3929 = vmatprep.subr.bf16.mxu0 %v2975
        %3930 = vmatpush2.bf16.msra.mxu0 %v2974
        %3931 = vmatprep.subr.bf16.mxu0 %v2942
        %3932 = vmatpush2.bf16.msra.mxu0 %v2941
        %3933 = vmatprep.subr.bf16.mxu0 %v2909
        %3934 = vmatpush2.bf16.msra.mxu0 %v2908
        %3935 = vmatprep.subr.bf16.mxu0 %v2876
        %3936 = vmatpush2.bf16.msra.mxu0 %v2875
        %3937 = vmatprep.subr.bf16.mxu0 %v2843
        %3938 = vmatpush2.bf16.msra.mxu0 %v2842
        %3939 = vmatprep.mubr.bf16.mxu0 %v244
        %3940 = vmatmul.mubr.bf16.gmra.mxu0 %v243
        %v3941 = vpop.f32.mrf.mxu0
        %v3942 = vadd.f32 %v858, %v3941
        %v3943 = vpop.f32.mrf.mxu0
        %v3944 = vadd.f32 %v862, %v3943
        %v3945 = vpop.f32.mrf.mxu0
        %v3946 = vpop.f32.mrf.mxu0
        %3947 = vdwg.mxu0
        %3948 = vmatprep.subr.bf16.mxu0 %v2812
        %3949 = vmatpush1.bf16.msra.mxu0 %v2811
        %3950 = vmatprep.subr.bf16.mxu0 %v2779
        %3951 = vmatpush1.bf16.msra.mxu0 %v2778
        %3952 = vmatprep.subr.bf16.mxu0 %v2746
        %3953 = vmatpush1.bf16.msra.mxu0 %v2745
        %3954 = vmatprep.subr.bf16.mxu0 %v2713
        %3955 = vmatpush1.bf16.msra.mxu0 %v2712
        %3956 = vmatprep.subr.bf16.mxu0 %v2680
        %3957 = vmatpush1.bf16.msra.mxu0 %v2679
        %3958 = vmatprep.subr.bf16.mxu0 %v2647
        %3959 = vmatpush1.bf16.msra.mxu0 %v2646
        %3960 = vmatprep.subr.bf16.mxu0 %v2614
        %3961 = vmatpush1.bf16.msra.mxu0 %v2613
        %3962 = vmatprep.subr.bf16.mxu0 %v2581
        %3963 = vmatpush1.bf16.msra.mxu0 %v2580
        %3964 = vmatprep.subr.bf16.mxu0 %v3076
        %3965 = vmatpush2.bf16.msra.mxu0 %v3075
        %3966 = vmatprep.subr.bf16.mxu0 %v3043
        %3967 = vmatpush2.bf16.msra.mxu0 %v3042
        %3968 = vmatprep.subr.bf16.mxu0 %v3010
        %3969 = vmatpush2.bf16.msra.mxu0 %v3009
        %3970 = vmatprep.subr.bf16.mxu0 %v2977
        %3971 = vmatpush2.bf16.msra.mxu0 %v2976
        %3972 = vmatprep.subr.bf16.mxu0 %v2944
        %3973 = vmatpush2.bf16.msra.mxu0 %v2943
        %3974 = vmatprep.subr.bf16.mxu0 %v2911
        %3975 = vmatpush2.bf16.msra.mxu0 %v2910
        %3976 = vmatprep.subr.bf16.mxu0 %v2878
        %3977 = vmatpush2.bf16.msra.mxu0 %v2877
        %3978 = vmatprep.subr.bf16.mxu0 %v2845
        %3979 = vmatpush2.bf16.msra.mxu0 %v2844
        %3980 = vmatprep.mubr.bf16.mxu0 %v244
        %3981 = vmatmul.mubr.bf16.gmra.mxu0 %v243
        %v3982 = vpop.f32.mrf.mxu0
        %v3983 = vadd.f32 %v866, %v3982
        %v3984 = vpop.f32.mrf.mxu0
        %v3985 = vadd.f32 %v870, %v3984
        %v3986 = vpop.f32.mrf.mxu0
        %v3987 = vpop.f32.mrf.mxu0
        %3988 = vdwg.mxu0
        %3989 = vmatprep.subr.bf16.mxu0 %v2814
        %3990 = vmatpush1.bf16.msra.mxu0 %v2813
        %3991 = vmatprep.subr.bf16.mxu0 %v2781
        %3992 = vmatpush1.bf16.msra.mxu0 %v2780
        %3993 = vmatprep.subr.bf16.mxu0 %v2748
        %3994 = vmatpush1.bf16.msra.mxu0 %v2747
        %3995 = vmatprep.subr.bf16.mxu0 %v2715
        %3996 = vmatpush1.bf16.msra.mxu0 %v2714
        %3997 = vmatprep.subr.bf16.mxu0 %v2682
        %3998 = vmatpush1.bf16.msra.mxu0 %v2681
        %3999 = vmatprep.subr.bf16.mxu0 %v2649
        %4000 = vmatpush1.bf16.msra.mxu0 %v2648
        %4001 = vmatprep.subr.bf16.mxu0 %v2616
        %4002 = vmatpush1.bf16.msra.mxu0 %v2615
        %4003 = vmatprep.subr.bf16.mxu0 %v2583
        %4004 = vmatpush1.bf16.msra.mxu0 %v2582
        %4005 = vmatprep.subr.bf16.mxu0 %v3078
        %4006 = vmatpush2.bf16.msra.mxu0 %v3077
        %4007 = vmatprep.subr.bf16.mxu0 %v3045
        %4008 = vmatpush2.bf16.msra.mxu0 %v3044
        %4009 = vmatprep.subr.bf16.mxu0 %v3012
        %4010 = vmatpush2.bf16.msra.mxu0 %v3011
        %4011 = vmatprep.subr.bf16.mxu0 %v2979
        %4012 = vmatpush2.bf16.msra.mxu0 %v2978
        %4013 = vmatprep.subr.bf16.mxu0 %v2946
        %4014 = vmatpush2.bf16.msra.mxu0 %v2945
        %4015 = vmatprep.subr.bf16.mxu0 %v2913
        %4016 = vmatpush2.bf16.msra.mxu0 %v2912
        %4017 = vmatprep.subr.bf16.mxu0 %v2880
        %4018 = vmatpush2.bf16.msra.mxu0 %v2879
        %4019 = vmatprep.subr.bf16.mxu0 %v2847
        %4020 = vmatpush2.bf16.msra.mxu0 %v2846
        %4021 = vmatprep.mubr.bf16.mxu0 %v244
        %4022 = vmatmul.mubr.bf16.gmra.mxu0 %v243
        %v4023 = vpop.f32.mrf.mxu0
        %v4024 = vadd.f32 %v874, %v4023
        %v4025 = vpop.f32.mrf.mxu0
        %v4026 = vadd.f32 %v878, %v4025
        %v4027 = vpop.f32.mrf.mxu0
        %v4028 = vpop.f32.mrf.mxu0
        %4029 = vdwg.mxu0
        %4030 = vmatprep.subr.bf16.mxu0 %v2816
        %4031 = vmatpush1.bf16.msra.mxu0 %v2815
        %4032 = vmatprep.subr.bf16.mxu0 %v2783
        %4033 = vmatpush1.bf16.msra.mxu0 %v2782
        %4034 = vmatprep.subr.bf16.mxu0 %v2750
        %4035 = vmatpush1.bf16.msra.mxu0 %v2749
        %4036 = vmatprep.subr.bf16.mxu0 %v2717
        %4037 = vmatpush1.bf16.msra.mxu0 %v2716
        %4038 = vmatprep.subr.bf16.mxu0 %v2684
        %4039 = vmatpush1.bf16.msra.mxu0 %v2683
        %4040 = vmatprep.subr.bf16.mxu0 %v2651
        %4041 = vmatpush1.bf16.msra.mxu0 %v2650
        %4042 = vmatprep.subr.bf16.mxu0 %v2618
        %4043 = vmatpush1.bf16.msra.mxu0 %v2617
        %4044 = vmatprep.subr.bf16.mxu0 %v2585
        %4045 = vmatpush1.bf16.msra.mxu0 %v2584
        %4046 = vmatprep.subr.bf16.mxu0 %v3080
        %4047 = vmatpush2.bf16.msra.mxu0 %v3079
        %4048 = vmatprep.subr.bf16.mxu0 %v3047
        %4049 = vmatpush2.bf16.msra.mxu0 %v3046
        %4050 = vmatprep.subr.bf16.mxu0 %v3014
        %4051 = vmatpush2.bf16.msra.mxu0 %v3013
        %4052 = vmatprep.subr.bf16.mxu0 %v2981
        %4053 = vmatpush2.bf16.msra.mxu0 %v2980
        %4054 = vmatprep.subr.bf16.mxu0 %v2948
        %4055 = vmatpush2.bf16.msra.mxu0 %v2947
        %4056 = vmatprep.subr.bf16.mxu0 %v2915
        %4057 = vmatpush2.bf16.msra.mxu0 %v2914
        %4058 = vmatprep.subr.bf16.mxu0 %v2882
        %4059 = vmatpush2.bf16.msra.mxu0 %v2881
        %4060 = vmatprep.subr.bf16.mxu0 %v2849
        %4061 = vmatpush2.bf16.msra.mxu0 %v2848
        %4062 = vmatprep.mubr.bf16.mxu0 %v244
        %4063 = vmatmul.mubr.bf16.gmra.mxu0 %v243
        %v4064 = vpop.f32.mrf.mxu0
        %v4065 = vadd.f32 %v882, %v4064
        %v4066 = vpop.f32.mrf.mxu0
        %v4067 = vadd.f32 %v886, %v4066
        %v4068 = vpop.f32.mrf.mxu0
        %v4069 = vpop.f32.mrf.mxu0
        %4070 = vdwg.mxu0
        %4071 = vmatprep.subr.bf16.mxu0 %v2818
        %4072 = vmatpush1.bf16.msra.mxu0 %v2817
        %4073 = vmatprep.subr.bf16.mxu0 %v2785
        %4074 = vmatpush1.bf16.msra.mxu0 %v2784
        %4075 = vmatprep.subr.bf16.mxu0 %v2752
        %4076 = vmatpush1.bf16.msra.mxu0 %v2751
        %4077 = vmatprep.subr.bf16.mxu0 %v2719
        %4078 = vmatpush1.bf16.msra.mxu0 %v2718
        %4079 = vmatprep.subr.bf16.mxu0 %v2686
        %4080 = vmatpush1.bf16.msra.mxu0 %v2685
        %4081 = vmatprep.subr.bf16.mxu0 %v2653
        %4082 = vmatpush1.bf16.msra.mxu0 %v2652
        %4083 = vmatprep.subr.bf16.mxu0 %v2620
        %4084 = vmatpush1.bf16.msra.mxu0 %v2619
        %4085 = vmatprep.subr.bf16.mxu0 %v2587
        %4086 = vmatpush1.bf16.msra.mxu0 %v2586
        %4087 = vmatprep.subr.bf16.mxu0 %v3082
        %4088 = vmatpush2.bf16.msra.mxu0 %v3081
        %4089 = vmatprep.subr.bf16.mxu0 %v3049
        %4090 = vmatpush2.bf16.msra.mxu0 %v3048
        %4091 = vmatprep.subr.bf16.mxu0 %v3016
        %4092 = vmatpush2.bf16.msra.mxu0 %v3015
        %4093 = vmatprep.subr.bf16.mxu0 %v2983
        %4094 = vmatpush2.bf16.msra.mxu0 %v2982
        %4095 = vmatprep.subr.bf16.mxu0 %v2950
        %4096 = vmatpush2.bf16.msra.mxu0 %v2949
        %4097 = vmatprep.subr.bf16.mxu0 %v2917
        %4098 = vmatpush2.bf16.msra.mxu0 %v2916
        %4099 = vmatprep.subr.bf16.mxu0 %v2884
        %4100 = vmatpush2.bf16.msra.mxu0 %v2883
        %4101 = vmatprep.subr.bf16.mxu0 %v2851
        %4102 = vmatpush2.bf16.msra.mxu0 %v2850
        %4103 = vmatprep.mubr.bf16.mxu0 %v244
        %4104 = vmatmul.mubr.bf16.gmra.mxu0 %v243
        %v4105 = vpop.f32.mrf.mxu0
        %v4106 = vadd.f32 %v890, %v4105
        %v4107 = vpop.f32.mrf.mxu0
        %v4108 = vadd.f32 %v894, %v4107
        %v4109 = vpop.f32.mrf.mxu0
        %v4110 = vpop.f32.mrf.mxu0
        %4111 = vdwg.mxu0
        %4112 = vmatprep.subr.bf16.mxu0 %v2820
        %4113 = vmatpush1.bf16.msra.mxu0 %v2819
        %4114 = vmatprep.subr.bf16.mxu0 %v2787
        %4115 = vmatpush1.bf16.msra.mxu0 %v2786
        %4116 = vmatprep.subr.bf16.mxu0 %v2754
        %4117 = vmatpush1.bf16.msra.mxu0 %v2753
        %4118 = vmatprep.subr.bf16.mxu0 %v2721
        %4119 = vmatpush1.bf16.msra.mxu0 %v2720
        %4120 = vmatprep.subr.bf16.mxu0 %v2688
        %4121 = vmatpush1.bf16.msra.mxu0 %v2687
        %4122 = vmatprep.subr.bf16.mxu0 %v2655
        %4123 = vmatpush1.bf16.msra.mxu0 %v2654
        %4124 = vmatprep.subr.bf16.mxu0 %v2622
        %4125 = vmatpush1.bf16.msra.mxu0 %v2621
        %4126 = vmatprep.subr.bf16.mxu0 %v2589
        %4127 = vmatpush1.bf16.msra.mxu0 %v2588
        %4128 = vmatprep.subr.bf16.mxu0 %v3084
        %4129 = vmatpush2.bf16.msra.mxu0 %v3083
        %4130 = vmatprep.subr.bf16.mxu0 %v3051
        %4131 = vmatpush2.bf16.msra.mxu0 %v3050
        %4132 = vmatprep.subr.bf16.mxu0 %v3018
        %4133 = vmatpush2.bf16.msra.mxu0 %v3017
        %4134 = vmatprep.subr.bf16.mxu0 %v2985
        %4135 = vmatpush2.bf16.msra.mxu0 %v2984
        %4136 = vmatprep.subr.bf16.mxu0 %v2952
        %4137 = vmatpush2.bf16.msra.mxu0 %v2951
        %4138 = vmatprep.subr.bf16.mxu0 %v2919
        %4139 = vmatpush2.bf16.msra.mxu0 %v2918
        %4140 = vmatprep.subr.bf16.mxu0 %v2886
        %4141 = vmatpush2.bf16.msra.mxu0 %v2885
        %4142 = vmatprep.subr.bf16.mxu0 %v2853
        %4143 = vmatpush2.bf16.msra.mxu0 %v2852
        %4144 = vmatprep.mubr.bf16.mxu0 %v244
        %4145 = vmatmul.mubr.bf16.gmra.mxu0 %v243
        %v4146 = vpop.f32.mrf.mxu0
        %v4147 = vadd.f32 %v898, %v4146
        %v4148 = vpop.f32.mrf.mxu0
        %v4149 = vadd.f32 %v902, %v4148
        %v4150 = vpop.f32.mrf.mxu0
        %v4151 = vpop.f32.mrf.mxu0
        %4152 = vdwg.mxu0
        %4153 = vmatprep.subr.bf16.mxu0 %v2822
        %4154 = vmatpush1.bf16.msra.mxu0 %v2821
        %4155 = vmatprep.subr.bf16.mxu0 %v2789
        %4156 = vmatpush1.bf16.msra.mxu0 %v2788
        %4157 = vmatprep.subr.bf16.mxu0 %v2756
        %4158 = vmatpush1.bf16.msra.mxu0 %v2755
        %4159 = vmatprep.subr.bf16.mxu0 %v2723
        %4160 = vmatpush1.bf16.msra.mxu0 %v2722
        %4161 = vmatprep.subr.bf16.mxu0 %v2690
        %4162 = vmatpush1.bf16.msra.mxu0 %v2689
        %4163 = vmatprep.subr.bf16.mxu0 %v2657
        %4164 = vmatpush1.bf16.msra.mxu0 %v2656
        %4165 = vmatprep.subr.bf16.mxu0 %v2624
        %4166 = vmatpush1.bf16.msra.mxu0 %v2623
        %4167 = vmatprep.subr.bf16.mxu0 %v2591
        %4168 = vmatpush1.bf16.msra.mxu0 %v2590
        %4169 = vmatprep.subr.bf16.mxu0 %v3086
        %4170 = vmatpush2.bf16.msra.mxu0 %v3085
        %4171 = vmatprep.subr.bf16.mxu0 %v3053
        %4172 = vmatpush2.bf16.msra.mxu0 %v3052
        %4173 = vmatprep.subr.bf16.mxu0 %v3020
        %4174 = vmatpush2.bf16.msra.mxu0 %v3019
        %4175 = vmatprep.subr.bf16.mxu0 %v2987
        %4176 = vmatpush2.bf16.msra.mxu0 %v2986
        %4177 = vmatprep.subr.bf16.mxu0 %v2954
        %4178 = vmatpush2.bf16.msra.mxu0 %v2953
        %4179 = vmatprep.subr.bf16.mxu0 %v2921
        %4180 = vmatpush2.bf16.msra.mxu0 %v2920
        %4181 = vmatprep.subr.bf16.mxu0 %v2888
        %4182 = vmatpush2.bf16.msra.mxu0 %v2887
        %4183 = vmatprep.subr.bf16.mxu0 %v2855
        %4184 = vmatpush2.bf16.msra.mxu0 %v2854
        %4185 = vmatprep.mubr.bf16.mxu0 %v244
        %4186 = vmatmul.mubr.bf16.gmra.mxu0 %v243
        %v4187 = vpop.f32.mrf.mxu0
        %v4188 = vadd.f32 %v906, %v4187
        %v4189 = vpop.f32.mrf.mxu0
        %v4190 = vadd.f32 %v910, %v4189
        %v4191 = vpop.f32.mrf.mxu0
        %v4192 = vpop.f32.mrf.mxu0
        %4193 = vdwg.mxu0
        %4194 = vmatprep.subr.bf16.mxu0 %v2824
        %4195 = vmatpush1.bf16.msra.mxu0 %v2823
        %4196 = vmatprep.subr.bf16.mxu0 %v2791
        %4197 = vmatpush1.bf16.msra.mxu0 %v2790
        %4198 = vmatprep.subr.bf16.mxu0 %v2758
        %4199 = vmatpush1.bf16.msra.mxu0 %v2757
        %4200 = vmatprep.subr.bf16.mxu0 %v2725
        %4201 = vmatpush1.bf16.msra.mxu0 %v2724
        %4202 = vmatprep.subr.bf16.mxu0 %v2692
        %4203 = vmatpush1.bf16.msra.mxu0 %v2691
        %4204 = vmatprep.subr.bf16.mxu0 %v2659
        %4205 = vmatpush1.bf16.msra.mxu0 %v2658
        %4206 = vmatprep.subr.bf16.mxu0 %v2626
        %4207 = vmatpush1.bf16.msra.mxu0 %v2625
        %4208 = vmatprep.subr.bf16.mxu0 %v2593
        %4209 = vmatpush1.bf16.msra.mxu0 %v2592
        %4210 = vmatprep.subr.bf16.mxu0 %v3088
        %4211 = vmatpush2.bf16.msra.mxu0 %v3087
        %4212 = vmatprep.subr.bf16.mxu0 %v3055
        %4213 = vmatpush2.bf16.msra.mxu0 %v3054
        %4214 = vmatprep.subr.bf16.mxu0 %v3022
        %4215 = vmatpush2.bf16.msra.mxu0 %v3021
        %4216 = vmatprep.subr.bf16.mxu0 %v2989
        %4217 = vmatpush2.bf16.msra.mxu0 %v2988
        %4218 = vmatprep.subr.bf16.mxu0 %v2956
        %4219 = vmatpush2.bf16.msra.mxu0 %v2955
        %4220 = vmatprep.subr.bf16.mxu0 %v2923
        %4221 = vmatpush2.bf16.msra.mxu0 %v2922
        %4222 = vmatprep.subr.bf16.mxu0 %v2890
        %4223 = vmatpush2.bf16.msra.mxu0 %v2889
        %4224 = vmatprep.subr.bf16.mxu0 %v2857
        %4225 = vmatpush2.bf16.msra.mxu0 %v2856
        %4226 = vmatprep.mubr.bf16.mxu0 %v244
        %4227 = vmatmul.mubr.bf16.gmra.mxu0 %v243
        %v4228 = vpop.f32.mrf.mxu0
        %v4229 = vadd.f32 %v914, %v4228
        %v4230 = vpop.f32.mrf.mxu0
        %v4231 = vadd.f32 %v918, %v4230
        %v4232 = vpop.f32.mrf.mxu0
        %v4233 = vpop.f32.mrf.mxu0
        %4234 = vdwg.mxu0
        %4235 = vmatprep.subr.bf16.mxu0 %v2826
        %4236 = vmatpush1.bf16.msra.mxu0 %v2825
        %4237 = vmatprep.subr.bf16.mxu0 %v2793
        %4238 = vmatpush1.bf16.msra.mxu0 %v2792
        %4239 = vmatprep.subr.bf16.mxu0 %v2760
        %4240 = vmatpush1.bf16.msra.mxu0 %v2759
        %4241 = vmatprep.subr.bf16.mxu0 %v2727
        %4242 = vmatpush1.bf16.msra.mxu0 %v2726
        %4243 = vmatprep.subr.bf16.mxu0 %v2694
        %4244 = vmatpush1.bf16.msra.mxu0 %v2693
        %4245 = vmatprep.subr.bf16.mxu0 %v2661
        %4246 = vmatpush1.bf16.msra.mxu0 %v2660
        %4247 = vmatprep.subr.bf16.mxu0 %v2628
        %4248 = vmatpush1.bf16.msra.mxu0 %v2627
        %4249 = vmatprep.subr.bf16.mxu0 %v2595
        %4250 = vmatpush1.bf16.msra.mxu0 %v2594
        %4251 = vmatprep.subr.bf16.mxu0 %v3090
        %4252 = vmatpush2.bf16.msra.mxu0 %v3089
        %4253 = vmatprep.subr.bf16.mxu0 %v3057
        %4254 = vmatpush2.bf16.msra.mxu0 %v3056
        %4255 = vmatprep.subr.bf16.mxu0 %v3024
        %4256 = vmatpush2.bf16.msra.mxu0 %v3023
        %4257 = vmatprep.subr.bf16.mxu0 %v2991
        %4258 = vmatpush2.bf16.msra.mxu0 %v2990
        %4259 = vmatprep.subr.bf16.mxu0 %v2958
        %4260 = vmatpush2.bf16.msra.mxu0 %v2957
        %4261 = vmatprep.subr.bf16.mxu0 %v2925
        %4262 = vmatpush2.bf16.msra.mxu0 %v2924
        %4263 = vmatprep.subr.bf16.mxu0 %v2892
        %4264 = vmatpush2.bf16.msra.mxu0 %v2891
        %4265 = vmatprep.subr.bf16.mxu0 %v2859
        %4266 = vmatpush2.bf16.msra.mxu0 %v2858
        %4267 = vmatprep.mubr.bf16.mxu0 %v244
        %4268 = vmatmul.mubr.bf16.gmra.mxu0 %v243
        %v4269 = vpop.f32.mrf.mxu0
        %v4270 = vadd.f32 %v922, %v4269
        %v4271 = vpop.f32.mrf.mxu0
        %v4272 = vadd.f32 %v926, %v4271
        %v4273 = vpop.f32.mrf.mxu0
        %v4274 = vpop.f32.mrf.mxu0
        %4275 = vdwg.mxu0
        %4276 = vmatprep.subr.bf16.mxu0 0
        %4277 = vmatpush1.bf16.msra.mxu0 %v2827
        %4278 = vmatprep.subr.bf16.mxu0 0
        %4279 = vmatpush1.bf16.msra.mxu0 %v2794
        %4280 = vmatprep.subr.bf16.mxu0 0
        %4281 = vmatpush1.bf16.msra.mxu0 %v2761
        %4282 = vmatprep.subr.bf16.mxu0 0
        %4283 = vmatpush1.bf16.msra.mxu0 %v2728
        %4284 = vmatprep.subr.bf16.mxu0 0
        %4285 = vmatpush1.bf16.msra.mxu0 %v2695
        %4286 = vmatprep.subr.bf16.mxu0 0
        %4287 = vmatpush1.bf16.msra.mxu0 %v2662
        %4288 = vmatprep.subr.bf16.mxu0 0
        %4289 = vmatpush1.bf16.msra.mxu0 %v2629
        %4290 = vmatprep.subr.bf16.mxu0 0
        %4291 = vmatpush1.bf16.msra.mxu0 %v2596
        %4292 = vmatprep.subr.bf16.mxu0 0
        %4293 = vmatpush2.bf16.msra.mxu0 %v3091
        %4294 = vmatprep.subr.bf16.mxu0 0
        %4295 = vmatpush2.bf16.msra.mxu0 %v3058
        %4296 = vmatprep.subr.bf16.mxu0 0
        %4297 = vmatpush2.bf16.msra.mxu0 %v3025
        %4298 = vmatprep.subr.bf16.mxu0 0
        %4299 = vmatpush2.bf16.msra.mxu0 %v2992
        %4300 = vmatprep.subr.bf16.mxu0 0
        %4301 = vmatpush2.bf16.msra.mxu0 %v2959
        %4302 = vmatprep.subr.bf16.mxu0 0
        %4303 = vmatpush2.bf16.msra.mxu0 %v2926
        %4304 = vmatprep.subr.bf16.mxu0 0
        %4305 = vmatpush2.bf16.msra.mxu0 %v2893
        %4306 = vmatprep.subr.bf16.mxu0 0
        %4307 = vmatpush2.bf16.msra.mxu0 %v2860
        %4308 = vmatprep.mubr.bf16.mxu0 %v244
        %4309 = vmatmul.mubr.bf16.gmra.mxu0 %v243
        %v4310 = vpop.f32.mrf.mxu0
        %v4311 = vadd.f32 %v930, %v4310
        %v4312 = vpop.f32.mrf.mxu0
        %v4313 = vpop.f32.mrf.mxu0
        %v4314 = vpop.f32.mrf.mxu0
        %4315 = vdwg.mxu0
        %v4316 = vtanh.pop %v3655
        %v4317 = vtanh.pop %v3657
        %v4318 = vtanh.pop %v3696
        %v4319 = vtanh.pop %v3698
        %v4320 = vtanh.pop %v3737
        %v4321 = vtanh.pop %v3739
        %v4322 = vtanh.pop %v3778
        %v4323 = vtanh.pop %v3780
        %v4324 = vtanh.pop %v3819
        %v4325 = vtanh.pop %v3821
        %v4326 = vtanh.pop %v3860
        %v4327 = vtanh.pop %v3862
        %v4328 = vtanh.pop %v3901
        %v4329 = vtanh.pop %v3903
        %v4330 = vtanh.pop %v3942
        %v4331 = vtanh.pop %v3944
        %v4332 = vtanh.pop %v3983
        %v4333 = vtanh.pop %v3985
        %v4334 = vtanh.pop %v4024
        %v4335 = vtanh.pop %v4026
        %v4336 = vtanh.pop %v4065
        %v4337 = vtanh.pop %v4067
        %v4338 = vtanh.pop %v4106
        %v4339 = vtanh.pop %v4108
        %v4340 = vtanh.pop %v4147
        %v4341 = vtanh.pop %v4149
        %v4342 = vtanh.pop %v4188
        %v4343 = vtanh.pop %v4190
        %v4344 = vtanh.pop %v4229
        %v4345 = vtanh.pop %v4231
        %v4346 = vtanh.pop %v4270
        %v4347 = vtanh.pop %v4272
        %v4348 = vtanh.pop %v4311
        %v4382 = vcombine.low %v4316, %v4317
        %v4383 = vcombine.low %v4318, %v4319
        %v4385 = vunpack.c.l.s4 1983009808
        %v4386 = vunpack.c.0.s8 %v4385
        %v4387 = vlaneseq
        %v4388 = vshrl.u32 %v4387, 7
        %v4389 = vsub.s32 %v4386, %v4388
        %v4390 = vrot.slane %v4382, %v4389
        %v4392 = vunpack.c.l.s4 1983009808
        %v4393 = vunpack.c.0.s8 %v4392
        %v4394 = vlaneseq
        %v4395 = vshrl.u32 %v4394, 7
        %v4396 = vsub.s32 %v4393, %v4395
        %v4397 = vrot.slane %v4383, %v4396
        %v4398 = vcombine.low %v4390, %v4397
        %v4399 = vcombine.low %v4320, %v4321
        %v4400 = vcombine.low %v4322, %v4323
        %v4402 = vunpack.c.l.s4 1983009808
        %v4403 = vunpack.c.0.s8 %v4402
        %v4404 = vlaneseq
        %v4405 = vshrl.u32 %v4404, 7
        %v4406 = vsub.s32 %v4403, %v4405
        %v4407 = vrot.slane %v4399, %v4406
        %v4409 = vunpack.c.l.s4 1983009808
        %v4410 = vunpack.c.0.s8 %v4409
        %v4411 = vlaneseq
        %v4412 = vshrl.u32 %v4411, 7
        %v4413 = vsub.s32 %v4410, %v4412
        %v4414 = vrot.slane %v4400, %v4413
        %v4415 = vcombine.low %v4407, %v4414
        %v4416 = vcombine.low %v4324, %v4325
        %v4417 = vcombine.low %v4326, %v4327
        %v4419 = vunpack.c.l.s4 1983009808
        %v4420 = vunpack.c.0.s8 %v4419
        %v4421 = vlaneseq
        %v4422 = vshrl.u32 %v4421, 7
        %v4423 = vsub.s32 %v4420, %v4422
        %v4424 = vrot.slane %v4416, %v4423
        %v4426 = vunpack.c.l.s4 1983009808
        %v4427 = vunpack.c.0.s8 %v4426
        %v4428 = vlaneseq
        %v4429 = vshrl.u32 %v4428, 7
        %v4430 = vsub.s32 %v4427, %v4429
        %v4431 = vrot.slane %v4417, %v4430
        %v4432 = vcombine.low %v4424, %v4431
        %v4433 = vcombine.low %v4328, %v4329
        %v4434 = vcombine.low %v4330, %v4331
        %v4436 = vunpack.c.l.s4 1983009808
        %v4437 = vunpack.c.0.s8 %v4436
        %v4438 = vlaneseq
        %v4439 = vshrl.u32 %v4438, 7
        %v4440 = vsub.s32 %v4437, %v4439
        %v4441 = vrot.slane %v4433, %v4440
        %v4443 = vunpack.c.l.s4 1983009808
        %v4444 = vunpack.c.0.s8 %v4443
        %v4445 = vlaneseq
        %v4446 = vshrl.u32 %v4445, 7
        %v4447 = vsub.s32 %v4444, %v4446
        %v4448 = vrot.slane %v4434, %v4447
        %v4449 = vcombine.low %v4441, %v4448
        %v4450 = vcombine.low %v4332, %v4333
        %v4451 = vcombine.low %v4334, %v4335
        %v4453 = vunpack.c.l.s4 1983009808
        %v4454 = vunpack.c.0.s8 %v4453
        %v4455 = vlaneseq
        %v4456 = vshrl.u32 %v4455, 7
        %v4457 = vsub.s32 %v4454, %v4456
        %v4458 = vrot.slane %v4450, %v4457
        %v4460 = vunpack.c.l.s4 1983009808
        %v4461 = vunpack.c.0.s8 %v4460
        %v4462 = vlaneseq
        %v4463 = vshrl.u32 %v4462, 7
        %v4464 = vsub.s32 %v4461, %v4463
        %v4465 = vrot.slane %v4451, %v4464
        %v4466 = vcombine.low %v4458, %v4465
        %v4467 = vcombine.low %v4336, %v4337
        %v4468 = vcombine.low %v4338, %v4339
        %v4470 = vunpack.c.l.s4 1983009808
        %v4471 = vunpack.c.0.s8 %v4470
        %v4472 = vlaneseq
        %v4473 = vshrl.u32 %v4472, 7
        %v4474 = vsub.s32 %v4471, %v4473
        %v4475 = vrot.slane %v4467, %v4474
        %v4477 = vunpack.c.l.s4 1983009808
        %v4478 = vunpack.c.0.s8 %v4477
        %v4479 = vlaneseq
        %v4480 = vshrl.u32 %v4479, 7
        %v4481 = vsub.s32 %v4478, %v4480
        %v4482 = vrot.slane %v4468, %v4481
        %v4483 = vcombine.low %v4475, %v4482
        %v4484 = vcombine.low %v4340, %v4341
        %v4485 = vcombine.low %v4342, %v4343
        %v4487 = vunpack.c.l.s4 1983009808
        %v4488 = vunpack.c.0.s8 %v4487
        %v4489 = vlaneseq
        %v4490 = vshrl.u32 %v4489, 7
        %v4491 = vsub.s32 %v4488, %v4490
        %v4492 = vrot.slane %v4484, %v4491
        %v4494 = vunpack.c.l.s4 1983009808
        %v4495 = vunpack.c.0.s8 %v4494
        %v4496 = vlaneseq
        %v4497 = vshrl.u32 %v4496, 7
        %v4498 = vsub.s32 %v4495, %v4497
        %v4499 = vrot.slane %v4485, %v4498
        %v4500 = vcombine.low %v4492, %v4499
        %v4501 = vcombine.low %v4344, %v4345
        %v4502 = vcombine.low %v4346, %v4347
        %v4504 = vunpack.c.l.s4 1983009808
        %v4505 = vunpack.c.0.s8 %v4504
        %v4506 = vlaneseq
        %v4507 = vshrl.u32 %v4506, 7
        %v4508 = vsub.s32 %v4505, %v4507
        %v4509 = vrot.slane %v4501, %v4508
        %v4511 = vunpack.c.l.s4 1983009808
        %v4512 = vunpack.c.0.s8 %v4511
        %v4513 = vlaneseq
        %v4514 = vshrl.u32 %v4513, 7
        %v4515 = vsub.s32 %v4512, %v4514
        %v4516 = vrot.slane %v4502, %v4515
        %v4517 = vcombine.low %v4509, %v4516
        %v4519 = vunpack.c.l.s4 1983009808
        %v4520 = vunpack.c.0.s8 %v4519
        %v4521 = vlaneseq
        %v4522 = vshrl.u32 %v4521, 7
        %v4523 = vsub.s32 %v4520, %v4522
        %v4524 = vrot.slane %v4348, %v4523
        %4534 = vst [vmem:[%s226] sm:$0xff] %v4398
        %4535 = vst [vmem:[%s226 + $0x8] sm:$0xff] %v4415
        %4536 = vst [vmem:[%s226 + $0x10] sm:$0xff] %v4432
        %4537 = vst [vmem:[%s226 + $0x18] sm:$0xff] %v4449
        %4538 = vst [vmem:[%s226 + $0x20] sm:$0xff] %v4466
        %4539 = vst [vmem:[%s226 + $0x28] sm:$0xff] %v4483
        %4540 = vst [vmem:[%s226 + $0x30] sm:$0xff] %v4500
        %4541 = vst [vmem:[%s226 + $0x38] sm:$0xff] %v4517
        %4542 = vst [vmem:[%s226 + $0x40] sm:$0x3] %v4524
        %s4543 = sand.u32 %s104, 1
        %s4544 = scalar_lea.sflag [#allocation4], %s4543
        %s4545 = sand.u32 %s104, 1
        %s4546 = smul.addr %s4545, 66
        %s4547 = scalar_lea.vmem [#allocation7], %s4546
        // Predicated region
        $region41: #{autoencoder_forward.5} parent=31 // pred_check
          %p4548 = pneg %p114
        $region42: #{autoencoder_forward.5} parent=31 // pred_check_branch
          %4550 = sbr.rel (%p4548) target = $region44
        $region43: #{autoencoder_forward.5} parent=31 // pred_region
          %s4551 = smul.u32 33, %s23
          %s4553 = ssub.s32 1056, 1056
          %4554 = vsyncadd %s4544, %s4553
          %s4555 = smul.addr %s4551, 32
          %s4556 = scalar_lea.hbm %s3, %s4555
          %s4558 = sshll.u32 %s4547, 4
          %s4559 = int_to_ptr.vmem [resolvable:$true] %s4558
          %4561 = dma.vmem_to_hbm [thread:$0]  %s4559, 1056, %s4556, %s4544
        $region44: #{autoencoder_forward.5} parent=31 // pred_fallthru
          _
      $region32: #{autoencoder_forward.5} parent=5 // pred_fallthru
        _
      %p4562 = scmp.le.s32.totalorder 2, %s18
      // Predicated region
      $region45: #{autoencoder_forward.5} parent=5 // pred_check
        %p4563 = pneg %p4562
      $region46: #{autoencoder_forward.5} parent=5 // pred_check_branch
        %4565 = sbr.rel (%p4563) target = $region48
      $region47: #{autoencoder_forward.5} parent=5 // pred_region
        %s4566 = ssub.s32 %s18, 2
        // Predicated region
        $region49: #{autoencoder_forward.5} parent=47 // pred_check
          %p4567 = pneg %p120
        $region50: #{autoencoder_forward.5} parent=47 // pred_check_branch
          %4569 = sbr.rel (%p4567) target = $region52
        $region51: #{autoencoder_forward.5} parent=47 // pred_region
          %s4570 = sand.u32 %s105, 1
          %s4571 = scalar_lea.sflag [#allocation4], %s4570
          %s4572 = sand.u32 %s105, 1
          %s4573 = smul.addr %s4572, 66
          %s4574 = scalar_lea.vmem [#allocation7], %s4573
          %4575 = dma.done %s4571, 1056
        $region52: #{autoencoder_forward.5} parent=47 // pred_fallthru
          _
      $region48: #{autoencoder_forward.5} parent=5 // pred_fallthru
        _
    $region6: #{autoencoder_forward.5} parent=1 // loop_footer
      %s22 = sadd.s32 1, %s18
    $region7: #{autoencoder_forward.5} parent=1 // loop_footer_branch
      %17 = sbr.rel target = $region3
    $region8: #{autoencoder_forward.5} parent=1 // loop_exit
      _
    %4576 = vsyncpa [#allocation3], 1
    %s4577 = scalar_lea.sflag [#allocation3], 1
    %4578 = vsyncpa %s4577, 1
    %4579 = vsyncpa [#allocation6], 1
    %s4580 = scalar_lea.sflag [#allocation6], 1
    %4581 = vsyncpa %s4580, 1
    %4582 = vsyncpa [#allocation4], 1
    %s4583 = scalar_lea.sflag [#allocation4], 1
    %4584 = vsyncpa %s4583, 1

</llo_original>
